<compile_context>
chip_gen: v7x
topology: tpu7x:2x2x1
jax: 0.10.0
libtpu: 0.0.40
codegen_flags: <defaults>
</compile_context>

<pallas_src>
import functools

import jax
import jax.numpy as jnp
from jax import lax
from jax.experimental import pallas as pl
from jax.experimental.pallas import tpu as pltpu

BN_EPS = 1e-5
LRELU_SLOPE = 0.01          # PyTorch LeakyReLU default
_UNROLL_T_MAX = 32          # fully unroll the time loop for short sequences


# ---------------------------------------------------------------------------
# Fused kernel: BN + LeakyReLU + n_layers GRU + final-step extraction
# ---------------------------------------------------------------------------
def _fused_gru_block_kernel(n_layers, T, B, C, H, *refs):
    """Ref layout (positional):
       inputs : x2d(T*B,C) f32, gamma(1,C) f32, beta(1,C) f32,
                then per layer: w_ih_t(D_in,3H) bf16, w_hh_t(H,3H) bf16,
                                b_rzn(1,3H) f32, b_hn(1,H) f32
       outputs: out(B,H) f32
       scratch: gi_scr(T*B,3H) f32, seq_scr(T*B,H) f32
    """
    x_ref, gamma_ref, beta_ref = refs[0], refs[1], refs[2]
    layer_refs = refs[3:3 + 4 * n_layers]
    out_ref = refs[3 + 4 * n_layers]
    gi_scr = refs[3 + 4 * n_layers + 1]
    seq_scr = refs[3 + 4 * n_layers + 2]

    # ---- BatchNorm1d (training-mode batch stats over batch*time) + LeakyReLU
    x = x_ref[...]                                   # (T*B, C), rows = t*B + b
    mean = jnp.mean(x, axis=0, keepdims=True)        # (1, C)
    diff = x - mean
    var = jnp.mean(diff * diff, axis=0, keepdims=True)
    y = diff * lax.rsqrt(var + BN_EPS)
    y = y * gamma_ref[...] + beta_ref[...]
    y = jnp.where(y >= 0, y, LRELU_SLOPE * y)        # (T*B, C), f32
    y_bf16 = y.astype(jnp.bfloat16)                  # MXU operand for layer 0

    h_last = None
    for layer in range(n_layers):
        w_ih_ref, w_hh_ref, b_rzn_ref, b_hn_ref = \
            layer_refs[4 * layer:4 * layer + 4]

        # Hoisted input projection for ALL timesteps at once (one MXU matmul,
        # bf16 operands, f32 accumulation).
        layer_in = y_bf16 if layer == 0 else seq_scr[...].astype(jnp.bfloat16)
        gi_scr[...] = (jnp.dot(layer_in, w_ih_ref[...],
                               preferred_element_type=jnp.float32)
                       + b_rzn_ref[...])             # (T*B, 3H) f32

        w_hh = w_hh_ref[...]                         # (H, 3H) bf16, read once;
        b_hn = b_hn_ref[...]                         # loop-invariant MXU RHS
        write_seq = layer != n_layers - 1            # last layer: h only

        # ---- peeled t = 0: h0 == 0  =>  gh == 0, no recurrence matmul.
        gi0 = gi_scr[pl.ds(0, B), :]                 # (B, 3H)
        rz0 = jax.nn.sigmoid(gi0[:, :2 * H])         # fused r|z EUP stream
        z0 = rz0[:, H:]
        n0 = jnp.tanh(gi0[:, 2 * H:] + rz0[:, :H] * b_hn)
        h = (1.0 - z0) * n0                          # (B, H) f32
        if write_seq:
            seq_scr[pl.ds(0, B), :] = h

        def step(t, h, w_hh=w_hh, b_hn=b_hn, write_seq=write_seq):
            row = t * B
            if not isinstance(row, int):
                row = pl.multiple_of(row, B)
            gi = gi_scr[pl.ds(row, B), :]            # (B, 3H) f32
            gh = jnp.dot(h.astype(jnp.bfloat16), w_hh,
                         preferred_element_type=jnp.float32)
            rz = jax.nn.sigmoid(gi[:, :2 * H] + gh[:, :2 * H])  # one EUP stream
            r, z = rz[:, :H], rz[:, H:]
            n = jnp.tanh(gi[:, 2 * H:] + r * (gh[:, 2 * H:] + b_hn))
            h_new = (1.0 - z) * n + z * h            # f32 gate math everywhere
            if write_seq:
                seq_scr[pl.ds(row, B), :] = h_new
            return h_new

        if T <= _UNROLL_T_MAX:
            for t in range(1, T):                    # full unroll, static slices
                h = step(t, h)
        else:
            h = lax.fori_loop(1, T, step, h)
        h_last = h

    out_ref[...] = h_last.astype(out_ref.dtype)


# ---------------------------------------------------------------------------
# Wrapper
# ---------------------------------------------------------------------------
def gru_block_forward(x, params):
    """x: (B, in_dim, T) float32 -> (B, h_dim) float32."""
    B, C, T = x.shape
    H = params["gru"][0]["w_hh_t"].shape[0]
    n_layers = len(params["gru"])

    # Alignment assumptions made explicit (sublane / lane tiling).
    assert B % 8 == 0, "batch must be a multiple of 8 (sublane alignment)"
    assert H % 128 == 0, "hidden dim must be a multiple of 128 (lane alignment)"

    # (B, C, T) -> time-major 2-D slab (T*B, C), built once in the wrapper so
    # the kernel sees a clean 2-D block (no in-kernel reshape / relayout).
    seq = jnp.transpose(x, (2, 0, 1)).reshape(T * B, C)

    gamma = params["bn_gamma"].reshape(1, C).astype(jnp.float32)
    beta = params["bn_beta"].reshape(1, C).astype(jnp.float32)

    inputs = [seq, gamma, beta]
    in_specs = [
        pl.BlockSpec((T * B, C), lambda: (0, 0)),
        pl.BlockSpec((1, C), lambda: (0, 0)),
        pl.BlockSpec((1, C), lambda: (0, 0)),
    ]
    for lp in params["gru"]:
        d_in = lp["w_ih_t"].shape[0]
        inputs += [lp["w_ih_t"], lp["w_hh_t"], lp["b_rzn"], lp["b_hn"]]
        in_specs += [
            pl.BlockSpec((d_in, 3 * H), lambda: (0, 0)),
            pl.BlockSpec((H, 3 * H), lambda: (0, 0)),
            pl.BlockSpec((1, 3 * H), lambda: (0, 0)),
            pl.BlockSpec((1, H), lambda: (0, 0)),
        ]

    # Right-size the scoped VMEM limit to the actual footprint (+ headroom)
    # instead of requesting 64 MiB (= all physical VMEM per TC on v7x).
    footprint = seq.size * 4 + gamma.size * 4 + beta.size * 4
    footprint += T * B * 3 * H * 4 + T * B * H * 4 + B * H * 4   # scratch + out
    for lp in params["gru"]:
        footprint += sum(int(v.size) * v.dtype.itemsize for v in lp.values())
    vmem_limit = int(max(4 << 20, min(4 * footprint + (1 << 20), 48 << 20)))

    kernel = functools.partial(_fused_gru_block_kernel, n_layers, T, B, C, H)
    return pl.pallas_call(
        kernel,
        out_shape=jax.ShapeDtypeStruct((B, H), jnp.float32),
        in_specs=in_specs,
        out_specs=pl.BlockSpec((B, H), lambda: (0, 0)),
        scratch_shapes=[
            pltpu.VMEM((T * B, 3 * H), jnp.float32),   # per-layer gi (all t)
            pltpu.VMEM((T * B, H), jnp.float32),       # inter-layer sequence
        ],
        compiler_params=pltpu.CompilerParams(vmem_limit_bytes=vmem_limit),
    )(*inputs)


# ---------------------------------------------------------------------------
# Parameter init (PyTorch-style uniform(-1/sqrt(H), 1/sqrt(H)))
# ---------------------------------------------------------------------------
def init_params(key, in_dim, h_dim, n_gru):
    params = {
        "bn_gamma": jnp.ones((in_dim,), jnp.float32),
        "bn_beta": jnp.zeros((in_dim,), jnp.float32),
        "gru": [],
    }
    k = 1.0 / jnp.sqrt(jnp.float32(h_dim))
    H = h_dim
    for layer in range(n_gru):
        d_in = in_dim if layer == 0 else h_dim
        key, k1, k2, k3, k4 = jax.random.split(key, 5)
        w_ih = jax.random.uniform(k1, (3 * H, d_in), jnp.float32, -k, k)
        w_hh = jax.random.uniform(k2, (3 * H, H), jnp.float32, -k, k)
        b_ih = jax.random.uniform(k3, (3 * H,), jnp.float32, -k, k)
        b_hh = jax.random.uniform(k4, (3 * H,), jnp.float32, -k, k)
        # Pre-fold r/z biases; keep b_hn separate (it lives inside r * (...)).
        b_rzn = jnp.concatenate([b_ih[:2 * H] + b_hh[:2 * H], b_ih[2 * H:]])
        params["gru"].append({
            # bf16 weights: native MXU dtype, f32 accumulation in the kernel.
            "w_ih_t": w_ih.T.astype(jnp.bfloat16),     # (D_in, 3H) for x @ W
            "w_hh_t": w_hh.T.astype(jnp.bfloat16),     # (H, 3H)   for h @ W
            "b_rzn": b_rzn.reshape(1, 3 * H).astype(jnp.float32),
            "b_hn": b_hh[2 * H:].reshape(1, H).astype(jnp.float32),
        })
    return params


if __name__ == "__main__":
    B, IN_DIM, T = 8, 8, 8
    H_DIM, N_GRU = 128, 3

    key = jax.random.PRNGKey(0)
    key, kx = jax.random.split(key)
    x = jax.random.normal(kx, (B, IN_DIM, T), jnp.float32)   # NCT, like PyTorch

    params = init_params(key, IN_DIM, H_DIM, N_GRU)

    fwd = jax.jit(gru_block_forward)
    out = fwd(x, params)
    out = jax.block_until_ready(out)
    assert out.shape == (B, H_DIM)
    assert bool(jnp.all(jnp.isfinite(out)))
    print("KERNEL_OK")
</pallas_src>

<mosaic_0001>
module attributes {stable_mosaic.version = 11 : i64} {
  func.func @_fused_gru_block_kernel(%arg0: memref<64x8xf32, #tpu.memory_space<vmem>>, %arg1: memref<1x8xf32, #tpu.memory_space<vmem>>, %arg2: memref<1x8xf32, #tpu.memory_space<vmem>>, %arg3: memref<8x384xbf16, #tpu.memory_space<vmem>>, %arg4: memref<128x384xbf16, #tpu.memory_space<vmem>>, %arg5: memref<1x384xf32, #tpu.memory_space<vmem>>, %arg6: memref<1x128xf32, #tpu.memory_space<vmem>>, %arg7: memref<128x384xbf16, #tpu.memory_space<vmem>>, %arg8: memref<128x384xbf16, #tpu.memory_space<vmem>>, %arg9: memref<1x384xf32, #tpu.memory_space<vmem>>, %arg10: memref<1x128xf32, #tpu.memory_space<vmem>>, %arg11: memref<128x384xbf16, #tpu.memory_space<vmem>>, %arg12: memref<128x384xbf16, #tpu.memory_space<vmem>>, %arg13: memref<1x384xf32, #tpu.memory_space<vmem>>, %arg14: memref<1x128xf32, #tpu.memory_space<vmem>>, %arg15: memref<8x128xf32, #tpu.memory_space<vmem>>, %arg16: memref<64x384xf32, #tpu.memory_space<vmem>>, %arg17: memref<64x128xf32, #tpu.memory_space<vmem>>) attributes {dimension_semantics = [], scalar_prefetch = 0 : i64, scratch_operands = 2 : i64, tpu.core_type = #tpu.core_type<tc>} {
    %c0 = arith.constant 0 : index
    %c0_0 = arith.constant 0 : index
    %0 = vector.load %arg0[%c0, %c0_0] : memref<64x8xf32, #tpu.memory_space<vmem>>, vector<64x8xf32>
    %cst = arith.constant dense<0.000000e+00> : vector<8xf32>
    %1 = vector.multi_reduction <add>, %0, %cst [0] : vector<64x8xf32> to vector<8xf32>
    %2 = vector.shape_cast %1 : vector<8xf32> to vector<1x8xf32>
    %cst_1 = arith.constant 6.400000e+01 : f32
    %3 = vector.broadcast %cst_1 : f32 to vector<1x8xf32>
    %4 = arith.divf %2, %3 : vector<1x8xf32>
    %5 = vector.broadcast %4 : vector<1x8xf32> to vector<64x8xf32>
    %6 = arith.subf %0, %5 : vector<64x8xf32>
    %7 = arith.mulf %6, %6 : vector<64x8xf32>
    %cst_2 = arith.constant dense<0.000000e+00> : vector<8xf32>
    %8 = vector.multi_reduction <add>, %7, %cst_2 [0] : vector<64x8xf32> to vector<8xf32>
    %9 = vector.shape_cast %8 : vector<8xf32> to vector<1x8xf32>
    %cst_3 = arith.constant 6.400000e+01 : f32
    %10 = vector.broadcast %cst_3 : f32 to vector<1x8xf32>
    %11 = arith.divf %9, %10 : vector<1x8xf32>
    %cst_4 = arith.constant 9.99999974E-6 : f32
    %12 = vector.broadcast %cst_4 : f32 to vector<1x8xf32>
    %13 = arith.addf %11, %12 : vector<1x8xf32>
    %14 = math.rsqrt %13 : vector<1x8xf32>
    %15 = vector.broadcast %14 : vector<1x8xf32> to vector<64x8xf32>
    %16 = arith.mulf %6, %15 : vector<64x8xf32>
    %c0_5 = arith.constant 0 : index
    %c0_6 = arith.constant 0 : index
    %17 = vector.load %arg1[%c0_5, %c0_6] : memref<1x8xf32, #tpu.memory_space<vmem>>, vector<1x8xf32>
    %18 = vector.broadcast %17 : vector<1x8xf32> to vector<64x8xf32>
    %19 = arith.mulf %16, %18 : vector<64x8xf32>
    %c0_7 = arith.constant 0 : index
    %c0_8 = arith.constant 0 : index
    %20 = vector.load %arg2[%c0_7, %c0_8] : memref<1x8xf32, #tpu.memory_space<vmem>>, vector<1x8xf32>
    %21 = vector.broadcast %20 : vector<1x8xf32> to vector<64x8xf32>
    %22 = arith.addf %19, %21 : vector<64x8xf32>
    %cst_9 = arith.constant 0.000000e+00 : f32
    %23 = vector.broadcast %cst_9 : f32 to vector<64x8xf32>
    %24 = arith.cmpf oge, %22, %23 : vector<64x8xf32>
    %cst_10 = arith.constant 0.00999999977 : f32
    %25 = vector.broadcast %cst_10 : f32 to vector<64x8xf32>
    %26 = arith.mulf %25, %22 : vector<64x8xf32>
    %27 = arith.select %24, %22, %26 : vector<64x8xi1>, vector<64x8xf32>
    %28 = arith.truncf %27 : vector<64x8xf32> to vector<64x8xbf16>
    %c0_11 = arith.constant 0 : index
    %c0_12 = arith.constant 0 : index
    %29 = vector.load %arg3[%c0_11, %c0_12] : memref<8x384xbf16, #tpu.memory_space<vmem>>, vector<8x384xbf16>
    %cst_13 = arith.constant dense<0.000000e+00> : vector<64x384xf32>
    %30 = tpu.matmul %28, %29, %cst_13 {dimension_numbers = #tpu.dot_dimension_numbers<[1], [0], [0], [1], [0, 0, 1, 1], [], []>} : vector<64x8xbf16>, vector<8x384xbf16>, vector<64x384xf32> -> vector<64x384xf32>
    %c0_14 = arith.constant 0 : index
    %c0_15 = arith.constant 0 : index
    %31 = vector.load %arg5[%c0_14, %c0_15] : memref<1x384xf32, #tpu.memory_space<vmem>>, vector<1x384xf32>
    %32 = vector.broadcast %31 : vector<1x384xf32> to vector<64x384xf32>
    %33 = arith.addf %30, %32 : vector<64x384xf32>
    %c0_16 = arith.constant 0 : index
    %c0_17 = arith.constant 0 : index
    %34 = vector.load %arg16[%c0_16, %c0_17] : memref<64x384xf32, #tpu.memory_space<vmem>>, vector<64x384xf32>
    tpu.vector_store %arg16[%c0_16, %c0_17], %33 {strides = array<i32>} : memref<64x384xf32, #tpu.memory_space<vmem>>, vector<64x384xf32>,
    %c0_18 = arith.constant 0 : index
    %c0_19 = arith.constant 0 : index
    %35 = vector.load %arg4[%c0_18, %c0_19] : memref<128x384xbf16, #tpu.memory_space<vmem>>, vector<128x384xbf16>
    %c0_20 = arith.constant 0 : index
    %c0_21 = arith.constant 0 : index
    %36 = vector.load %arg6[%c0_20, %c0_21] : memref<1x128xf32, #tpu.memory_space<vmem>>, vector<1x128xf32>
    %c0_22 = arith.constant 0 : index
    %c0_23 = arith.constant 0 : index
    %37 = vector.load %arg16[%c0_22, %c0_23] : memref<64x384xf32, #tpu.memory_space<vmem>>, vector<8x384xf32>
    %38 = vector.extract_strided_slice %37 {offsets = [0, 0], sizes = [8, 256], strides = [1, 1]} : vector<8x384xf32> to vector<8x256xf32>
    %39 = arith.negf %38 : vector<8x256xf32>
    %40 = math.exp %39 : vector<8x256xf32>
    %cst_24 = arith.constant 1.000000e+00 : f32
    %41 = vector.broadcast %cst_24 : f32 to vector<8x256xf32>
    %42 = arith.addf %41, %40 : vector<8x256xf32>
    %43 = arith.divf %41, %42 : vector<8x256xf32>
    %44 = vector.extract_strided_slice %43 {offsets = [0, 128], sizes = [8, 128], strides = [1, 1]} : vector<8x256xf32> to vector<8x128xf32>
    %45 = vector.extract_strided_slice %37 {offsets = [0, 256], sizes = [8, 128], strides = [1, 1]} : vector<8x384xf32> to vector<8x128xf32>
    %46 = vector.extract_strided_slice %43 {offsets = [0, 0], sizes = [8, 128], strides = [1, 1]} : vector<8x256xf32> to vector<8x128xf32>
    %47 = vector.broadcast %36 : vector<1x128xf32> to vector<8x128xf32>
    %48 = arith.mulf %46, %47 : vector<8x128xf32>
    %49 = arith.addf %45, %48 : vector<8x128xf32>
    %50 = math.tanh %49 : vector<8x128xf32>
    %cst_25 = arith.constant 1.000000e+00 : f32
    %51 = vector.broadcast %cst_25 : f32 to vector<8x128xf32>
    %52 = arith.subf %51, %44 : vector<8x128xf32>
    %53 = arith.mulf %52, %50 : vector<8x128xf32>
    %c0_26 = arith.constant 0 : index
    %c0_27 = arith.constant 0 : index
    %54 = vector.load %arg17[%c0_26, %c0_27] : memref<64x128xf32, #tpu.memory_space<vmem>>, vector<8x128xf32>
    tpu.vector_store %arg17[%c0_26, %c0_27], %53 {strides = array<i32>} : memref<64x128xf32, #tpu.memory_space<vmem>>, vector<8x128xf32>,
    %c8 = arith.constant 8 : index
    %c0_28 = arith.constant 0 : index
    %55 = vector.load %arg16[%c8, %c0_28] : memref<64x384xf32, #tpu.memory_space<vmem>>, vector<8x384xf32>
    %56 = arith.truncf %53 : vector<8x128xf32> to vector<8x128xbf16>
    %cst_29 = arith.constant dense<0.000000e+00> : vector<8x384xf32>
    %57 = tpu.matmul %56, %35, %cst_29 {dimension_numbers = #tpu.dot_dimension_numbers<[1], [0], [0], [1], [0, 0, 1, 1], [], []>} : vector<8x128xbf16>, vector<128x384xbf16>, vector<8x384xf32> -> vector<8x384xf32>
    %58 = vector.extract_strided_slice %55 {offsets = [0, 0], sizes = [8, 256], strides = [1, 1]} : vector<8x384xf32> to vector<8x256xf32>
    %59 = vector.extract_strided_slice %57 {offsets = [0, 0], sizes = [8, 256], strides = [1, 1]} : vector<8x384xf32> to vector<8x256xf32>
    %60 = arith.addf %58, %59 : vector<8x256xf32>
    %61 = arith.negf %60 : vector<8x256xf32>
    %62 = math.exp %61 : vector<8x256xf32>
    %cst_30 = arith.constant 1.000000e+00 : f32
    %63 = vector.broadcast %cst_30 : f32 to vector<8x256xf32>
    %64 = arith.addf %63, %62 : vector<8x256xf32>
    %65 = arith.divf %63, %64 : vector<8x256xf32>
    %66 = vector.extract_strided_slice %65 {offsets = [0, 0], sizes = [8, 128], strides = [1, 1]} : vector<8x256xf32> to vector<8x128xf32>
    %67 = vector.extract_strided_slice %65 {offsets = [0, 128], sizes = [8, 128], strides = [1, 1]} : vector<8x256xf32> to vector<8x128xf32>
    %68 = vector.extract_strided_slice %55 {offsets = [0, 256], sizes = [8, 128], strides = [1, 1]} : vector<8x384xf32> to vector<8x128xf32>
    %69 = vector.extract_strided_slice %57 {offsets = [0, 256], sizes = [8, 128], strides = [1, 1]} : vector<8x384xf32> to vector<8x128xf32>
    %70 = vector.broadcast %36 : vector<1x128xf32> to vector<8x128xf32>
    %71 = arith.addf %69, %70 : vector<8x128xf32>
    %72 = arith.mulf %66, %71 : vector<8x128xf32>
    %73 = arith.addf %68, %72 : vector<8x128xf32>
    %74 = math.tanh %73 : vector<8x128xf32>
    %cst_31 = arith.constant 1.000000e+00 : f32
    %75 = vector.broadcast %cst_31 : f32 to vector<8x128xf32>
    %76 = arith.subf %75, %67 : vector<8x128xf32>
    %77 = arith.mulf %76, %74 : vector<8x128xf32>
    %78 = arith.mulf %67, %53 : vector<8x128xf32>
    %79 = arith.addf %77, %78 : vector<8x128xf32>
    %c8_32 = arith.constant 8 : index
    %c0_33 = arith.constant 0 : index
    %80 = vector.load %arg17[%c8_32, %c0_33] : memref<64x128xf32, #tpu.memory_space<vmem>>, vector<8x128xf32>
    tpu.vector_store %arg17[%c8_32, %c0_33], %79 {strides = array<i32>} : memref<64x128xf32, #tpu.memory_space<vmem>>, vector<8x128xf32>,
    %c16 = arith.constant 16 : index
    %c0_34 = arith.constant 0 : index
    %81 = vector.load %arg16[%c16, %c0_34] : memref<64x384xf32, #tpu.memory_space<vmem>>, vector<8x384xf32>
    %82 = arith.truncf %79 : vector<8x128xf32> to vector<8x128xbf16>
    %cst_35 = arith.constant dense<0.000000e+00> : vector<8x384xf32>
    %83 = tpu.matmul %82, %35, %cst_35 {dimension_numbers = #tpu.dot_dimension_numbers<[1], [0], [0], [1], [0, 0, 1, 1], [], []>} : vector<8x128xbf16>, vector<128x384xbf16>, vector<8x384xf32> -> vector<8x384xf32>
    %84 = vector.extract_strided_slice %81 {offsets = [0, 0], sizes = [8, 256], strides = [1, 1]} : vector<8x384xf32> to vector<8x256xf32>
    %85 = vector.extract_strided_slice %83 {offsets = [0, 0], sizes = [8, 256], strides = [1, 1]} : vector<8x384xf32> to vector<8x256xf32>
    %86 = arith.addf %84, %85 : vector<8x256xf32>
    %87 = arith.negf %86 : vector<8x256xf32>
    %88 = math.exp %87 : vector<8x256xf32>
    %cst_36 = arith.constant 1.000000e+00 : f32
    %89 = vector.broadcast %cst_36 : f32 to vector<8x256xf32>
    %90 = arith.addf %89, %88 : vector<8x256xf32>
    %91 = arith.divf %89, %90 : vector<8x256xf32>
    %92 = vector.extract_strided_slice %91 {offsets = [0, 0], sizes = [8, 128], strides = [1, 1]} : vector<8x256xf32> to vector<8x128xf32>
    %93 = vector.extract_strided_slice %91 {offsets = [0, 128], sizes = [8, 128], strides = [1, 1]} : vector<8x256xf32> to vector<8x128xf32>
    %94 = vector.extract_strided_slice %81 {offsets = [0, 256], sizes = [8, 128], strides = [1, 1]} : vector<8x384xf32> to vector<8x128xf32>
    %95 = vector.extract_strided_slice %83 {offsets = [0, 256], sizes = [8, 128], strides = [1, 1]} : vector<8x384xf32> to vector<8x128xf32>
    %96 = vector.broadcast %36 : vector<1x128xf32> to vector<8x128xf32>
    %97 = arith.addf %95, %96 : vector<8x128xf32>
    %98 = arith.mulf %92, %97 : vector<8x128xf32>
    %99 = arith.addf %94, %98 : vector<8x128xf32>
    %100 = math.tanh %99 : vector<8x128xf32>
    %cst_37 = arith.constant 1.000000e+00 : f32
    %101 = vector.broadcast %cst_37 : f32 to vector<8x128xf32>
    %102 = arith.subf %101, %93 : vector<8x128xf32>
    %103 = arith.mulf %102, %100 : vector<8x128xf32>
    %104 = arith.mulf %93, %79 : vector<8x128xf32>
    %105 = arith.addf %103, %104 : vector<8x128xf32>
    %c16_38 = arith.constant 16 : index
    %c0_39 = arith.constant 0 : index
    %106 = vector.load %arg17[%c16_38, %c0_39] : memref<64x128xf32, #tpu.memory_space<vmem>>, vector<8x128xf32>
    tpu.vector_store %arg17[%c16_38, %c0_39], %105 {strides = array<i32>} : memref<64x128xf32, #tpu.memory_space<vmem>>, vector<8x128xf32>,
    %c24 = arith.constant 24 : index
    %c0_40 = arith.constant 0 : index
    %107 = vector.load %arg16[%c24, %c0_40] : memref<64x384xf32, #tpu.memory_space<vmem>>, vector<8x384xf32>
    %108 = arith.truncf %105 : vector<8x128xf32> to vector<8x128xbf16>
    %cst_41 = arith.constant dense<0.000000e+00> : vector<8x384xf32>
    %109 = tpu.matmul %108, %35, %cst_41 {dimension_numbers = #tpu.dot_dimension_numbers<[1], [0], [0], [1], [0, 0, 1, 1], [], []>} : vector<8x128xbf16>, vector<128x384xbf16>, vector<8x384xf32> -> vector<8x384xf32>
    %110 = vector.extract_strided_slice %107 {offsets = [0, 0], sizes = [8, 256], strides = [1, 1]} : vector<8x384xf32> to vector<8x256xf32>
    %111 = vector.extract_strided_slice %109 {offsets = [0, 0], sizes = [8, 256], strides = [1, 1]} : vector<8x384xf32> to vector<8x256xf32>
    %112 = arith.addf %110, %111 : vector<8x256xf32>
    %113 = arith.negf %112 : vector<8x256xf32>
    %114 = math.exp %113 : vector<8x256xf32>
    %cst_42 = arith.constant 1.000000e+00 : f32
    %115 = vector.broadcast %cst_42 : f32 to vector<8x256xf32>
    %116 = arith.addf %115, %114 : vector<8x256xf32>
    %117 = arith.divf %115, %116 : vector<8x256xf32>
    %118 = vector.extract_strided_slice %117 {offsets = [0, 0], sizes = [8, 128], strides = [1, 1]} : vector<8x256xf32> to vector<8x128xf32>
    %119 = vector.extract_strided_slice %117 {offsets = [0, 128], sizes = [8, 128], strides = [1, 1]} : vector<8x256xf32> to vector<8x128xf32>
    %120 = vector.extract_strided_slice %107 {offsets = [0, 256], sizes = [8, 128], strides = [1, 1]} : vector<8x384xf32> to vector<8x128xf32>
    %121 = vector.extract_strided_slice %109 {offsets = [0, 256], sizes = [8, 128], strides = [1, 1]} : vector<8x384xf32> to vector<8x128xf32>
    %122 = vector.broadcast %36 : vector<1x128xf32> to vector<8x128xf32>
    %123 = arith.addf %121, %122 : vector<8x128xf32>
    %124 = arith.mulf %118, %123 : vector<8x128xf32>
    %125 = arith.addf %120, %124 : vector<8x128xf32>
    %126 = math.tanh %125 : vector<8x128xf32>
    %cst_43 = arith.constant 1.000000e+00 : f32
    %127 = vector.broadcast %cst_43 : f32 to vector<8x128xf32>
    %128 = arith.subf %127, %119 : vector<8x128xf32>
    %129 = arith.mulf %128, %126 : vector<8x128xf32>
    %130 = arith.mulf %119, %105 : vector<8x128xf32>
    %131 = arith.addf %129, %130 : vector<8x128xf32>
    %c24_44 = arith.constant 24 : index
    %c0_45 = arith.constant 0 : index
    %132 = vector.load %arg17[%c24_44, %c0_45] : memref<64x128xf32, #tpu.memory_space<vmem>>, vector<8x128xf32>
    tpu.vector_store %arg17[%c24_44, %c0_45], %131 {strides = array<i32>} : memref<64x128xf32, #tpu.memory_space<vmem>>, vector<8x128xf32>,
    %c32 = arith.constant 32 : index
    %c0_46 = arith.constant 0 : index
    %133 = vector.load %arg16[%c32, %c0_46] : memref<64x384xf32, #tpu.memory_space<vmem>>, vector<8x384xf32>
    %134 = arith.truncf %131 : vector<8x128xf32> to vector<8x128xbf16>
    %cst_47 = arith.constant dense<0.000000e+00> : vector<8x384xf32>
    %135 = tpu.matmul %134, %35, %cst_47 {dimension_numbers = #tpu.dot_dimension_numbers<[1], [0], [0], [1], [0, 0, 1, 1], [], []>} : vector<8x128xbf16>, vector<128x384xbf16>, vector<8x384xf32> -> vector<8x384xf32>
    %136 = vector.extract_strided_slice %133 {offsets = [0, 0], sizes = [8, 256], strides = [1, 1]} : vector<8x384xf32> to vector<8x256xf32>
    %137 = vector.extract_strided_slice %135 {offsets = [0, 0], sizes = [8, 256], strides = [1, 1]} : vector<8x384xf32> to vector<8x256xf32>
    %138 = arith.addf %136, %137 : vector<8x256xf32>
    %139 = arith.negf %138 : vector<8x256xf32>
    %140 = math.exp %139 : vector<8x256xf32>
    %cst_48 = arith.constant 1.000000e+00 : f32
    %141 = vector.broadcast %cst_48 : f32 to vector<8x256xf32>
    %142 = arith.addf %141, %140 : vector<8x256xf32>
    %143 = arith.divf %141, %142 : vector<8x256xf32>
    %144 = vector.extract_strided_slice %143 {offsets = [0, 0], sizes = [8, 128], strides = [1, 1]} : vector<8x256xf32> to vector<8x128xf32>
    %145 = vector.extract_strided_slice %143 {offsets = [0, 128], sizes = [8, 128], strides = [1, 1]} : vector<8x256xf32> to vector<8x128xf32>
    %146 = vector.extract_strided_slice %133 {offsets = [0, 256], sizes = [8, 128], strides = [1, 1]} : vector<8x384xf32> to vector<8x128xf32>
    %147 = vector.extract_strided_slice %135 {offsets = [0, 256], sizes = [8, 128], strides = [1, 1]} : vector<8x384xf32> to vector<8x128xf32>
    %148 = vector.broadcast %36 : vector<1x128xf32> to vector<8x128xf32>
    %149 = arith.addf %147, %148 : vector<8x128xf32>
    %150 = arith.mulf %144, %149 : vector<8x128xf32>
    %151 = arith.addf %146, %150 : vector<8x128xf32>
    %152 = math.tanh %151 : vector<8x128xf32>
    %cst_49 = arith.constant 1.000000e+00 : f32
    %153 = vector.broadcast %cst_49 : f32 to vector<8x128xf32>
    %154 = arith.subf %153, %145 : vector<8x128xf32>
    %155 = arith.mulf %154, %152 : vector<8x128xf32>
    %156 = arith.mulf %145, %131 : vector<8x128xf32>
    %157 = arith.addf %155, %156 : vector<8x128xf32>
    %c32_50 = arith.constant 32 : index
    %c0_51 = arith.constant 0 : index
    %158 = vector.load %arg17[%c32_50, %c0_51] : memref<64x128xf32, #tpu.memory_space<vmem>>, vector<8x128xf32>
    tpu.vector_store %arg17[%c32_50, %c0_51], %157 {strides = array<i32>} : memref<64x128xf32, #tpu.memory_space<vmem>>, vector<8x128xf32>,
    %c40 = arith.constant 40 : index
    %c0_52 = arith.constant 0 : index
    %159 = vector.load %arg16[%c40, %c0_52] : memref<64x384xf32, #tpu.memory_space<vmem>>, vector<8x384xf32>
    %160 = arith.truncf %157 : vector<8x128xf32> to vector<8x128xbf16>
    %cst_53 = arith.constant dense<0.000000e+00> : vector<8x384xf32>
    %161 = tpu.matmul %160, %35, %cst_53 {dimension_numbers = #tpu.dot_dimension_numbers<[1], [0], [0], [1], [0, 0, 1, 1], [], []>} : vector<8x128xbf16>, vector<128x384xbf16>, vector<8x384xf32> -> vector<8x384xf32>
    %162 = vector.extract_strided_slice %159 {offsets = [0, 0], sizes = [8, 256], strides = [1, 1]} : vector<8x384xf32> to vector<8x256xf32>
    %163 = vector.extract_strided_slice %161 {offsets = [0, 0], sizes = [8, 256], strides = [1, 1]} : vector<8x384xf32> to vector<8x256xf32>
    %164 = arith.addf %162, %163 : vector<8x256xf32>
    %165 = arith.negf %164 : vector<8x256xf32>
    %166 = math.exp %165 : vector<8x256xf32>
    %cst_54 = arith.constant 1.000000e+00 : f32
    %167 = vector.broadcast %cst_54 : f32 to vector<8x256xf32>
    %168 = arith.addf %167, %166 : vector<8x256xf32>
    %169 = arith.divf %167, %168 : vector<8x256xf32>
    %170 = vector.extract_strided_slice %169 {offsets = [0, 0], sizes = [8, 128], strides = [1, 1]} : vector<8x256xf32> to vector<8x128xf32>
    %171 = vector.extract_strided_slice %169 {offsets = [0, 128], sizes = [8, 128], strides = [1, 1]} : vector<8x256xf32> to vector<8x128xf32>
    %172 = vector.extract_strided_slice %159 {offsets = [0, 256], sizes = [8, 128], strides = [1, 1]} : vector<8x384xf32> to vector<8x128xf32>
    %173 = vector.extract_strided_slice %161 {offsets = [0, 256], sizes = [8, 128], strides = [1, 1]} : vector<8x384xf32> to vector<8x128xf32>
    %174 = vector.broadcast %36 : vector<1x128xf32> to vector<8x128xf32>
    %175 = arith.addf %173, %174 : vector<8x128xf32>
    %176 = arith.mulf %170, %175 : vector<8x128xf32>
    %177 = arith.addf %172, %176 : vector<8x128xf32>
    %178 = math.tanh %177 : vector<8x128xf32>
    %cst_55 = arith.constant 1.000000e+00 : f32
    %179 = vector.broadcast %cst_55 : f32 to vector<8x128xf32>
    %180 = arith.subf %179, %171 : vector<8x128xf32>
    %181 = arith.mulf %180, %178 : vector<8x128xf32>
    %182 = arith.mulf %171, %157 : vector<8x128xf32>
    %183 = arith.addf %181, %182 : vector<8x128xf32>
    %c40_56 = arith.constant 40 : index
    %c0_57 = arith.constant 0 : index
    %184 = vector.load %arg17[%c40_56, %c0_57] : memref<64x128xf32, #tpu.memory_space<vmem>>, vector<8x128xf32>
    tpu.vector_store %arg17[%c40_56, %c0_57], %183 {strides = array<i32>} : memref<64x128xf32, #tpu.memory_space<vmem>>, vector<8x128xf32>,
    %c48 = arith.constant 48 : index
    %c0_58 = arith.constant 0 : index
    %185 = vector.load %arg16[%c48, %c0_58] : memref<64x384xf32, #tpu.memory_space<vmem>>, vector<8x384xf32>
    %186 = arith.truncf %183 : vector<8x128xf32> to vector<8x128xbf16>
    %cst_59 = arith.constant dense<0.000000e+00> : vector<8x384xf32>
    %187 = tpu.matmul %186, %35, %cst_59 {dimension_numbers = #tpu.dot_dimension_numbers<[1], [0], [0], [1], [0, 0, 1, 1], [], []>} : vector<8x128xbf16>, vector<128x384xbf16>, vector<8x384xf32> -> vector<8x384xf32>
    %188 = vector.extract_strided_slice %185 {offsets = [0, 0], sizes = [8, 256], strides = [1, 1]} : vector<8x384xf32> to vector<8x256xf32>
    %189 = vector.extract_strided_slice %187 {offsets = [0, 0], sizes = [8, 256], strides = [1, 1]} : vector<8x384xf32> to vector<8x256xf32>
    %190 = arith.addf %188, %189 : vector<8x256xf32>
    %191 = arith.negf %190 : vector<8x256xf32>
    %192 = math.exp %191 : vector<8x256xf32>
    %cst_60 = arith.constant 1.000000e+00 : f32
    %193 = vector.broadcast %cst_60 : f32 to vector<8x256xf32>
    %194 = arith.addf %193, %192 : vector<8x256xf32>
    %195 = arith.divf %193, %194 : vector<8x256xf32>
    %196 = vector.extract_strided_slice %195 {offsets = [0, 0], sizes = [8, 128], strides = [1, 1]} : vector<8x256xf32> to vector<8x128xf32>
    %197 = vector.extract_strided_slice %195 {offsets = [0, 128], sizes = [8, 128], strides = [1, 1]} : vector<8x256xf32> to vector<8x128xf32>
    %198 = vector.extract_strided_slice %185 {offsets = [0, 256], sizes = [8, 128], strides = [1, 1]} : vector<8x384xf32> to vector<8x128xf32>
    %199 = vector.extract_strided_slice %187 {offsets = [0, 256], sizes = [8, 128], strides = [1, 1]} : vector<8x384xf32> to vector<8x128xf32>
    %200 = vector.broadcast %36 : vector<1x128xf32> to vector<8x128xf32>
    %201 = arith.addf %199, %200 : vector<8x128xf32>
    %202 = arith.mulf %196, %201 : vector<8x128xf32>
    %203 = arith.addf %198, %202 : vector<8x128xf32>
    %204 = math.tanh %203 : vector<8x128xf32>
    %cst_61 = arith.constant 1.000000e+00 : f32
    %205 = vector.broadcast %cst_61 : f32 to vector<8x128xf32>
    %206 = arith.subf %205, %197 : vector<8x128xf32>
    %207 = arith.mulf %206, %204 : vector<8x128xf32>
    %208 = arith.mulf %197, %183 : vector<8x128xf32>
    %209 = arith.addf %207, %208 : vector<8x128xf32>
    %c48_62 = arith.constant 48 : index
    %c0_63 = arith.constant 0 : index
    %210 = vector.load %arg17[%c48_62, %c0_63] : memref<64x128xf32, #tpu.memory_space<vmem>>, vector<8x128xf32>
    tpu.vector_store %arg17[%c48_62, %c0_63], %209 {strides = array<i32>} : memref<64x128xf32, #tpu.memory_space<vmem>>, vector<8x128xf32>,
    %c56 = arith.constant 56 : index
    %c0_64 = arith.constant 0 : index
    %211 = vector.load %arg16[%c56, %c0_64] : memref<64x384xf32, #tpu.memory_space<vmem>>, vector<8x384xf32>
    %212 = arith.truncf %209 : vector<8x128xf32> to vector<8x128xbf16>
    %cst_65 = arith.constant dense<0.000000e+00> : vector<8x384xf32>
    %213 = tpu.matmul %212, %35, %cst_65 {dimension_numbers = #tpu.dot_dimension_numbers<[1], [0], [0], [1], [0, 0, 1, 1], [], []>} : vector<8x128xbf16>, vector<128x384xbf16>, vector<8x384xf32> -> vector<8x384xf32>
    %214 = vector.extract_strided_slice %211 {offsets = [0, 0], sizes = [8, 256], strides = [1, 1]} : vector<8x384xf32> to vector<8x256xf32>
    %215 = vector.extract_strided_slice %213 {offsets = [0, 0], sizes = [8, 256], strides = [1, 1]} : vector<8x384xf32> to vector<8x256xf32>
    %216 = arith.addf %214, %215 : vector<8x256xf32>
    %217 = arith.negf %216 : vector<8x256xf32>
    %218 = math.exp %217 : vector<8x256xf32>
    %cst_66 = arith.constant 1.000000e+00 : f32
    %219 = vector.broadcast %cst_66 : f32 to vector<8x256xf32>
    %220 = arith.addf %219, %218 : vector<8x256xf32>
    %221 = arith.divf %219, %220 : vector<8x256xf32>
    %222 = vector.extract_strided_slice %221 {offsets = [0, 0], sizes = [8, 128], strides = [1, 1]} : vector<8x256xf32> to vector<8x128xf32>
    %223 = vector.extract_strided_slice %221 {offsets = [0, 128], sizes = [8, 128], strides = [1, 1]} : vector<8x256xf32> to vector<8x128xf32>
    %224 = vector.extract_strided_slice %211 {offsets = [0, 256], sizes = [8, 128], strides = [1, 1]} : vector<8x384xf32> to vector<8x128xf32>
    %225 = vector.extract_strided_slice %213 {offsets = [0, 256], sizes = [8, 128], strides = [1, 1]} : vector<8x384xf32> to vector<8x128xf32>
    %226 = vector.broadcast %36 : vector<1x128xf32> to vector<8x128xf32>
    %227 = arith.addf %225, %226 : vector<8x128xf32>
    %228 = arith.mulf %222, %227 : vector<8x128xf32>
    %229 = arith.addf %224, %228 : vector<8x128xf32>
    %230 = math.tanh %229 : vector<8x128xf32>
    %cst_67 = arith.constant 1.000000e+00 : f32
    %231 = vector.broadcast %cst_67 : f32 to vector<8x128xf32>
    %232 = arith.subf %231, %223 : vector<8x128xf32>
    %233 = arith.mulf %232, %230 : vector<8x128xf32>
    %234 = arith.mulf %223, %209 : vector<8x128xf32>
    %235 = arith.addf %233, %234 : vector<8x128xf32>
    %c56_68 = arith.constant 56 : index
    %c0_69 = arith.constant 0 : index
    %236 = vector.load %arg17[%c56_68, %c0_69] : memref<64x128xf32, #tpu.memory_space<vmem>>, vector<8x128xf32>
    tpu.vector_store %arg17[%c56_68, %c0_69], %235 {strides = array<i32>} : memref<64x128xf32, #tpu.memory_space<vmem>>, vector<8x128xf32>,
    %c0_70 = arith.constant 0 : index
    %c0_71 = arith.constant 0 : index
    %237 = vector.load %arg17[%c0_70, %c0_71] : memref<64x128xf32, #tpu.memory_space<vmem>>, vector<64x128xf32>
    %238 = arith.truncf %237 : vector<64x128xf32> to vector<64x128xbf16>
    %c0_72 = arith.constant 0 : index
    %c0_73 = arith.constant 0 : index
    %239 = vector.load %arg7[%c0_72, %c0_73] : memref<128x384xbf16, #tpu.memory_space<vmem>>, vector<128x384xbf16>
    %cst_74 = arith.constant dense<0.000000e+00> : vector<64x384xf32>
    %240 = tpu.matmul %238, %239, %cst_74 {dimension_numbers = #tpu.dot_dimension_numbers<[1], [0], [0], [1], [0, 0, 1, 1], [], []>} : vector<64x128xbf16>, vector<128x384xbf16>, vector<64x384xf32> -> vector<64x384xf32>
    %c0_75 = arith.constant 0 : index
    %c0_76 = arith.constant 0 : index
    %241 = vector.load %arg9[%c0_75, %c0_76] : memref<1x384xf32, #tpu.memory_space<vmem>>, vector<1x384xf32>
    %242 = vector.broadcast %241 : vector<1x384xf32> to vector<64x384xf32>
    %243 = arith.addf %240, %242 : vector<64x384xf32>
    %c0_77 = arith.constant 0 : index
    %c0_78 = arith.constant 0 : index
    %244 = vector.load %arg16[%c0_77, %c0_78] : memref<64x384xf32, #tpu.memory_space<vmem>>, vector<64x384xf32>
    tpu.vector_store %arg16[%c0_77, %c0_78], %243 {strides = array<i32>} : memref<64x384xf32, #tpu.memory_space<vmem>>, vector<64x384xf32>,
    %c0_79 = arith.constant 0 : index
    %c0_80 = arith.constant 0 : index
    %245 = vector.load %arg8[%c0_79, %c0_80] : memref<128x384xbf16, #tpu.memory_space<vmem>>, vector<128x384xbf16>
    %c0_81 = arith.constant 0 : index
    %c0_82 = arith.constant 0 : index
    %246 = vector.load %arg10[%c0_81, %c0_82] : memref<1x128xf32, #tpu.memory_space<vmem>>, vector<1x128xf32>
    %c0_83 = arith.constant 0 : index
    %c0_84 = arith.constant 0 : index
    %247 = vector.load %arg16[%c0_83, %c0_84] : memref<64x384xf32, #tpu.memory_space<vmem>>, vector<8x384xf32>
    %248 = vector.extract_strided_slice %247 {offsets = [0, 0], sizes = [8, 256], strides = [1, 1]} : vector<8x384xf32> to vector<8x256xf32>
    %249 = arith.negf %248 : vector<8x256xf32>
    %250 = math.exp %249 : vector<8x256xf32>
    %cst_85 = arith.constant 1.000000e+00 : f32
    %251 = vector.broadcast %cst_85 : f32 to vector<8x256xf32>
    %252 = arith.addf %251, %250 : vector<8x256xf32>
    %253 = arith.divf %251, %252 : vector<8x256xf32>
    %254 = vector.extract_strided_slice %253 {offsets = [0, 128], sizes = [8, 128], strides = [1, 1]} : vector<8x256xf32> to vector<8x128xf32>
    %255 = vector.extract_strided_slice %247 {offsets = [0, 256], sizes = [8, 128], strides = [1, 1]} : vector<8x384xf32> to vector<8x128xf32>
    %256 = vector.extract_strided_slice %253 {offsets = [0, 0], sizes = [8, 128], strides = [1, 1]} : vector<8x256xf32> to vector<8x128xf32>
    %257 = vector.broadcast %246 : vector<1x128xf32> to vector<8x128xf32>
    %258 = arith.mulf %256, %257 : vector<8x128xf32>
    %259 = arith.addf %255, %258 : vector<8x128xf32>
    %260 = math.tanh %259 : vector<8x128xf32>
    %cst_86 = arith.constant 1.000000e+00 : f32
    %261 = vector.broadcast %cst_86 : f32 to vector<8x128xf32>
    %262 = arith.subf %261, %254 : vector<8x128xf32>
    %263 = arith.mulf %262, %260 : vector<8x128xf32>
    %c0_87 = arith.constant 0 : index
    %c0_88 = arith.constant 0 : index
    %264 = vector.load %arg17[%c0_87, %c0_88] : memref<64x128xf32, #tpu.memory_space<vmem>>, vector<8x128xf32>
    tpu.vector_store %arg17[%c0_87, %c0_88], %263 {strides = array<i32>} : memref<64x128xf32, #tpu.memory_space<vmem>>, vector<8x128xf32>,
    %c8_89 = arith.constant 8 : index
    %c0_90 = arith.constant 0 : index
    %265 = vector.load %arg16[%c8_89, %c0_90] : memref<64x384xf32, #tpu.memory_space<vmem>>, vector<8x384xf32>
    %266 = arith.truncf %263 : vector<8x128xf32> to vector<8x128xbf16>
    %cst_91 = arith.constant dense<0.000000e+00> : vector<8x384xf32>
    %267 = tpu.matmul %266, %245, %cst_91 {dimension_numbers = #tpu.dot_dimension_numbers<[1], [0], [0], [1], [0, 0, 1, 1], [], []>} : vector<8x128xbf16>, vector<128x384xbf16>, vector<8x384xf32> -> vector<8x384xf32>
    %268 = vector.extract_strided_slice %265 {offsets = [0, 0], sizes = [8, 256], strides = [1, 1]} : vector<8x384xf32> to vector<8x256xf32>
    %269 = vector.extract_strided_slice %267 {offsets = [0, 0], sizes = [8, 256], strides = [1, 1]} : vector<8x384xf32> to vector<8x256xf32>
    %270 = arith.addf %268, %269 : vector<8x256xf32>
    %271 = arith.negf %270 : vector<8x256xf32>
    %272 = math.exp %271 : vector<8x256xf32>
    %cst_92 = arith.constant 1.000000e+00 : f32
    %273 = vector.broadcast %cst_92 : f32 to vector<8x256xf32>
    %274 = arith.addf %273, %272 : vector<8x256xf32>
    %275 = arith.divf %273, %274 : vector<8x256xf32>
    %276 = vector.extract_strided_slice %275 {offsets = [0, 0], sizes = [8, 128], strides = [1, 1]} : vector<8x256xf32> to vector<8x128xf32>
    %277 = vector.extract_strided_slice %275 {offsets = [0, 128], sizes = [8, 128], strides = [1, 1]} : vector<8x256xf32> to vector<8x128xf32>
    %278 = vector.extract_strided_slice %265 {offsets = [0, 256], sizes = [8, 128], strides = [1, 1]} : vector<8x384xf32> to vector<8x128xf32>
    %279 = vector.extract_strided_slice %267 {offsets = [0, 256], sizes = [8, 128], strides = [1, 1]} : vector<8x384xf32> to vector<8x128xf32>
    %280 = vector.broadcast %246 : vector<1x128xf32> to vector<8x128xf32>
    %281 = arith.addf %279, %280 : vector<8x128xf32>
    %282 = arith.mulf %276, %281 : vector<8x128xf32>
    %283 = arith.addf %278, %282 : vector<8x128xf32>
    %284 = math.tanh %283 : vector<8x128xf32>
    %cst_93 = arith.constant 1.000000e+00 : f32
    %285 = vector.broadcast %cst_93 : f32 to vector<8x128xf32>
    %286 = arith.subf %285, %277 : vector<8x128xf32>
    %287 = arith.mulf %286, %284 : vector<8x128xf32>
    %288 = arith.mulf %277, %263 : vector<8x128xf32>
    %289 = arith.addf %287, %288 : vector<8x128xf32>
    %c8_94 = arith.constant 8 : index
    %c0_95 = arith.constant 0 : index
    %290 = vector.load %arg17[%c8_94, %c0_95] : memref<64x128xf32, #tpu.memory_space<vmem>>, vector<8x128xf32>
    tpu.vector_store %arg17[%c8_94, %c0_95], %289 {strides = array<i32>} : memref<64x128xf32, #tpu.memory_space<vmem>>, vector<8x128xf32>,
    %c16_96 = arith.constant 16 : index
    %c0_97 = arith.constant 0 : index
    %291 = vector.load %arg16[%c16_96, %c0_97] : memref<64x384xf32, #tpu.memory_space<vmem>>, vector<8x384xf32>
    %292 = arith.truncf %289 : vector<8x128xf32> to vector<8x128xbf16>
    %cst_98 = arith.constant dense<0.000000e+00> : vector<8x384xf32>
    %293 = tpu.matmul %292, %245, %cst_98 {dimension_numbers = #tpu.dot_dimension_numbers<[1], [0], [0], [1], [0, 0, 1, 1], [], []>} : vector<8x128xbf16>, vector<128x384xbf16>, vector<8x384xf32> -> vector<8x384xf32>
    %294 = vector.extract_strided_slice %291 {offsets = [0, 0], sizes = [8, 256], strides = [1, 1]} : vector<8x384xf32> to vector<8x256xf32>
    %295 = vector.extract_strided_slice %293 {offsets = [0, 0], sizes = [8, 256], strides = [1, 1]} : vector<8x384xf32> to vector<8x256xf32>
    %296 = arith.addf %294, %295 : vector<8x256xf32>
    %297 = arith.negf %296 : vector<8x256xf32>
    %298 = math.exp %297 : vector<8x256xf32>
    %cst_99 = arith.constant 1.000000e+00 : f32
    %299 = vector.broadcast %cst_99 : f32 to vector<8x256xf32>
    %300 = arith.addf %299, %298 : vector<8x256xf32>
    %301 = arith.divf %299, %300 : vector<8x256xf32>
    %302 = vector.extract_strided_slice %301 {offsets = [0, 0], sizes = [8, 128], strides = [1, 1]} : vector<8x256xf32> to vector<8x128xf32>
    %303 = vector.extract_strided_slice %301 {offsets = [0, 128], sizes = [8, 128], strides = [1, 1]} : vector<8x256xf32> to vector<8x128xf32>
    %304 = vector.extract_strided_slice %291 {offsets = [0, 256], sizes = [8, 128], strides = [1, 1]} : vector<8x384xf32> to vector<8x128xf32>
    %305 = vector.extract_strided_slice %293 {offsets = [0, 256], sizes = [8, 128], strides = [1, 1]} : vector<8x384xf32> to vector<8x128xf32>
    %306 = vector.broadcast %246 : vector<1x128xf32> to vector<8x128xf32>
    %307 = arith.addf %305, %306 : vector<8x128xf32>
    %308 = arith.mulf %302, %307 : vector<8x128xf32>
    %309 = arith.addf %304, %308 : vector<8x128xf32>
    %310 = math.tanh %309 : vector<8x128xf32>
    %cst_100 = arith.constant 1.000000e+00 : f32
    %311 = vector.broadcast %cst_100 : f32 to vector<8x128xf32>
    %312 = arith.subf %311, %303 : vector<8x128xf32>
    %313 = arith.mulf %312, %310 : vector<8x128xf32>
    %314 = arith.mulf %303, %289 : vector<8x128xf32>
    %315 = arith.addf %313, %314 : vector<8x128xf32>
    %c16_101 = arith.constant 16 : index
    %c0_102 = arith.constant 0 : index
    %316 = vector.load %arg17[%c16_101, %c0_102] : memref<64x128xf32, #tpu.memory_space<vmem>>, vector<8x128xf32>
    tpu.vector_store %arg17[%c16_101, %c0_102], %315 {strides = array<i32>} : memref<64x128xf32, #tpu.memory_space<vmem>>, vector<8x128xf32>,
    %c24_103 = arith.constant 24 : index
    %c0_104 = arith.constant 0 : index
    %317 = vector.load %arg16[%c24_103, %c0_104] : memref<64x384xf32, #tpu.memory_space<vmem>>, vector<8x384xf32>
    %318 = arith.truncf %315 : vector<8x128xf32> to vector<8x128xbf16>
    %cst_105 = arith.constant dense<0.000000e+00> : vector<8x384xf32>
    %319 = tpu.matmul %318, %245, %cst_105 {dimension_numbers = #tpu.dot_dimension_numbers<[1], [0], [0], [1], [0, 0, 1, 1], [], []>} : vector<8x128xbf16>, vector<128x384xbf16>, vector<8x384xf32> -> vector<8x384xf32>
    %320 = vector.extract_strided_slice %317 {offsets = [0, 0], sizes = [8, 256], strides = [1, 1]} : vector<8x384xf32> to vector<8x256xf32>
    %321 = vector.extract_strided_slice %319 {offsets = [0, 0], sizes = [8, 256], strides = [1, 1]} : vector<8x384xf32> to vector<8x256xf32>
    %322 = arith.addf %320, %321 : vector<8x256xf32>
    %323 = arith.negf %322 : vector<8x256xf32>
    %324 = math.exp %323 : vector<8x256xf32>
    %cst_106 = arith.constant 1.000000e+00 : f32
    %325 = vector.broadcast %cst_106 : f32 to vector<8x256xf32>
    %326 = arith.addf %325, %324 : vector<8x256xf32>
    %327 = arith.divf %325, %326 : vector<8x256xf32>
    %328 = vector.extract_strided_slice %327 {offsets = [0, 0], sizes = [8, 128], strides = [1, 1]} : vector<8x256xf32> to vector<8x128xf32>
    %329 = vector.extract_strided_slice %327 {offsets = [0, 128], sizes = [8, 128], strides = [1, 1]} : vector<8x256xf32> to vector<8x128xf32>
    %330 = vector.extract_strided_slice %317 {offsets = [0, 256], sizes = [8, 128], strides = [1, 1]} : vector<8x384xf32> to vector<8x128xf32>
    %331 = vector.extract_strided_slice %319 {offsets = [0, 256], sizes = [8, 128], strides = [1, 1]} : vector<8x384xf32> to vector<8x128xf32>
    %332 = vector.broadcast %246 : vector<1x128xf32> to vector<8x128xf32>
    %333 = arith.addf %331, %332 : vector<8x128xf32>
    %334 = arith.mulf %328, %333 : vector<8x128xf32>
    %335 = arith.addf %330, %334 : vector<8x128xf32>
    %336 = math.tanh %335 : vector<8x128xf32>
    %cst_107 = arith.constant 1.000000e+00 : f32
    %337 = vector.broadcast %cst_107 : f32 to vector<8x128xf32>
    %338 = arith.subf %337, %329 : vector<8x128xf32>
    %339 = arith.mulf %338, %336 : vector<8x128xf32>
    %340 = arith.mulf %329, %315 : vector<8x128xf32>
    %341 = arith.addf %339, %340 : vector<8x128xf32>
    %c24_108 = arith.constant 24 : index
    %c0_109 = arith.constant 0 : index
    %342 = vector.load %arg17[%c24_108, %c0_109] : memref<64x128xf32, #tpu.memory_space<vmem>>, vector<8x128xf32>
    tpu.vector_store %arg17[%c24_108, %c0_109], %341 {strides = array<i32>} : memref<64x128xf32, #tpu.memory_space<vmem>>, vector<8x128xf32>,
    %c32_110 = arith.constant 32 : index
    %c0_111 = arith.constant 0 : index
    %343 = vector.load %arg16[%c32_110, %c0_111] : memref<64x384xf32, #tpu.memory_space<vmem>>, vector<8x384xf32>
    %344 = arith.truncf %341 : vector<8x128xf32> to vector<8x128xbf16>
    %cst_112 = arith.constant dense<0.000000e+00> : vector<8x384xf32>
    %345 = tpu.matmul %344, %245, %cst_112 {dimension_numbers = #tpu.dot_dimension_numbers<[1], [0], [0], [1], [0, 0, 1, 1], [], []>} : vector<8x128xbf16>, vector<128x384xbf16>, vector<8x384xf32> -> vector<8x384xf32>
    %346 = vector.extract_strided_slice %343 {offsets = [0, 0], sizes = [8, 256], strides = [1, 1]} : vector<8x384xf32> to vector<8x256xf32>
    %347 = vector.extract_strided_slice %345 {offsets = [0, 0], sizes = [8, 256], strides = [1, 1]} : vector<8x384xf32> to vector<8x256xf32>
    %348 = arith.addf %346, %347 : vector<8x256xf32>
    %349 = arith.negf %348 : vector<8x256xf32>
    %350 = math.exp %349 : vector<8x256xf32>
    %cst_113 = arith.constant 1.000000e+00 : f32
    %351 = vector.broadcast %cst_113 : f32 to vector<8x256xf32>
    %352 = arith.addf %351, %350 : vector<8x256xf32>
    %353 = arith.divf %351, %352 : vector<8x256xf32>
    %354 = vector.extract_strided_slice %353 {offsets = [0, 0], sizes = [8, 128], strides = [1, 1]} : vector<8x256xf32> to vector<8x128xf32>
    %355 = vector.extract_strided_slice %353 {offsets = [0, 128], sizes = [8, 128], strides = [1, 1]} : vector<8x256xf32> to vector<8x128xf32>
    %356 = vector.extract_strided_slice %343 {offsets = [0, 256], sizes = [8, 128], strides = [1, 1]} : vector<8x384xf32> to vector<8x128xf32>
    %357 = vector.extract_strided_slice %345 {offsets = [0, 256], sizes = [8, 128], strides = [1, 1]} : vector<8x384xf32> to vector<8x128xf32>
    %358 = vector.broadcast %246 : vector<1x128xf32> to vector<8x128xf32>
    %359 = arith.addf %357, %358 : vector<8x128xf32>
    %360 = arith.mulf %354, %359 : vector<8x128xf32>
    %361 = arith.addf %356, %360 : vector<8x128xf32>
    %362 = math.tanh %361 : vector<8x128xf32>
    %cst_114 = arith.constant 1.000000e+00 : f32
    %363 = vector.broadcast %cst_114 : f32 to vector<8x128xf32>
    %364 = arith.subf %363, %355 : vector<8x128xf32>
    %365 = arith.mulf %364, %362 : vector<8x128xf32>
    %366 = arith.mulf %355, %341 : vector<8x128xf32>
    %367 = arith.addf %365, %366 : vector<8x128xf32>
    %c32_115 = arith.constant 32 : index
    %c0_116 = arith.constant 0 : index
    %368 = vector.load %arg17[%c32_115, %c0_116] : memref<64x128xf32, #tpu.memory_space<vmem>>, vector<8x128xf32>
    tpu.vector_store %arg17[%c32_115, %c0_116], %367 {strides = array<i32>} : memref<64x128xf32, #tpu.memory_space<vmem>>, vector<8x128xf32>,
    %c40_117 = arith.constant 40 : index
    %c0_118 = arith.constant 0 : index
    %369 = vector.load %arg16[%c40_117, %c0_118] : memref<64x384xf32, #tpu.memory_space<vmem>>, vector<8x384xf32>
    %370 = arith.truncf %367 : vector<8x128xf32> to vector<8x128xbf16>
    %cst_119 = arith.constant dense<0.000000e+00> : vector<8x384xf32>
    %371 = tpu.matmul %370, %245, %cst_119 {dimension_numbers = #tpu.dot_dimension_numbers<[1], [0], [0], [1], [0, 0, 1, 1], [], []>} : vector<8x128xbf16>, vector<128x384xbf16>, vector<8x384xf32> -> vector<8x384xf32>
    %372 = vector.extract_strided_slice %369 {offsets = [0, 0], sizes = [8, 256], strides = [1, 1]} : vector<8x384xf32> to vector<8x256xf32>
    %373 = vector.extract_strided_slice %371 {offsets = [0, 0], sizes = [8, 256], strides = [1, 1]} : vector<8x384xf32> to vector<8x256xf32>
    %374 = arith.addf %372, %373 : vector<8x256xf32>
    %375 = arith.negf %374 : vector<8x256xf32>
    %376 = math.exp %375 : vector<8x256xf32>
    %cst_120 = arith.constant 1.000000e+00 : f32
    %377 = vector.broadcast %cst_120 : f32 to vector<8x256xf32>
    %378 = arith.addf %377, %376 : vector<8x256xf32>
    %379 = arith.divf %377, %378 : vector<8x256xf32>
    %380 = vector.extract_strided_slice %379 {offsets = [0, 0], sizes = [8, 128], strides = [1, 1]} : vector<8x256xf32> to vector<8x128xf32>
    %381 = vector.extract_strided_slice %379 {offsets = [0, 128], sizes = [8, 128], strides = [1, 1]} : vector<8x256xf32> to vector<8x128xf32>
    %382 = vector.extract_strided_slice %369 {offsets = [0, 256], sizes = [8, 128], strides = [1, 1]} : vector<8x384xf32> to vector<8x128xf32>
    %383 = vector.extract_strided_slice %371 {offsets = [0, 256], sizes = [8, 128], strides = [1, 1]} : vector<8x384xf32> to vector<8x128xf32>
    %384 = vector.broadcast %246 : vector<1x128xf32> to vector<8x128xf32>
    %385 = arith.addf %383, %384 : vector<8x128xf32>
    %386 = arith.mulf %380, %385 : vector<8x128xf32>
    %387 = arith.addf %382, %386 : vector<8x128xf32>
    %388 = math.tanh %387 : vector<8x128xf32>
    %cst_121 = arith.constant 1.000000e+00 : f32
    %389 = vector.broadcast %cst_121 : f32 to vector<8x128xf32>
    %390 = arith.subf %389, %381 : vector<8x128xf32>
    %391 = arith.mulf %390, %388 : vector<8x128xf32>
    %392 = arith.mulf %381, %367 : vector<8x128xf32>
    %393 = arith.addf %391, %392 : vector<8x128xf32>
    %c40_122 = arith.constant 40 : index
    %c0_123 = arith.constant 0 : index
    %394 = vector.load %arg17[%c40_122, %c0_123] : memref<64x128xf32, #tpu.memory_space<vmem>>, vector<8x128xf32>
    tpu.vector_store %arg17[%c40_122, %c0_123], %393 {strides = array<i32>} : memref<64x128xf32, #tpu.memory_space<vmem>>, vector<8x128xf32>,
    %c48_124 = arith.constant 48 : index
    %c0_125 = arith.constant 0 : index
    %395 = vector.load %arg16[%c48_124, %c0_125] : memref<64x384xf32, #tpu.memory_space<vmem>>, vector<8x384xf32>
    %396 = arith.truncf %393 : vector<8x128xf32> to vector<8x128xbf16>
    %cst_126 = arith.constant dense<0.000000e+00> : vector<8x384xf32>
    %397 = tpu.matmul %396, %245, %cst_126 {dimension_numbers = #tpu.dot_dimension_numbers<[1], [0], [0], [1], [0, 0, 1, 1], [], []>} : vector<8x128xbf16>, vector<128x384xbf16>, vector<8x384xf32> -> vector<8x384xf32>
    %398 = vector.extract_strided_slice %395 {offsets = [0, 0], sizes = [8, 256], strides = [1, 1]} : vector<8x384xf32> to vector<8x256xf32>
    %399 = vector.extract_strided_slice %397 {offsets = [0, 0], sizes = [8, 256], strides = [1, 1]} : vector<8x384xf32> to vector<8x256xf32>
    %400 = arith.addf %398, %399 : vector<8x256xf32>
    %401 = arith.negf %400 : vector<8x256xf32>
    %402 = math.exp %401 : vector<8x256xf32>
    %cst_127 = arith.constant 1.000000e+00 : f32
    %403 = vector.broadcast %cst_127 : f32 to vector<8x256xf32>
    %404 = arith.addf %403, %402 : vector<8x256xf32>
    %405 = arith.divf %403, %404 : vector<8x256xf32>
    %406 = vector.extract_strided_slice %405 {offsets = [0, 0], sizes = [8, 128], strides = [1, 1]} : vector<8x256xf32> to vector<8x128xf32>
    %407 = vector.extract_strided_slice %405 {offsets = [0, 128], sizes = [8, 128], strides = [1, 1]} : vector<8x256xf32> to vector<8x128xf32>
    %408 = vector.extract_strided_slice %395 {offsets = [0, 256], sizes = [8, 128], strides = [1, 1]} : vector<8x384xf32> to vector<8x128xf32>
    %409 = vector.extract_strided_slice %397 {offsets = [0, 256], sizes = [8, 128], strides = [1, 1]} : vector<8x384xf32> to vector<8x128xf32>
    %410 = vector.broadcast %246 : vector<1x128xf32> to vector<8x128xf32>
    %411 = arith.addf %409, %410 : vector<8x128xf32>
    %412 = arith.mulf %406, %411 : vector<8x128xf32>
    %413 = arith.addf %408, %412 : vector<8x128xf32>
    %414 = math.tanh %413 : vector<8x128xf32>
    %cst_128 = arith.constant 1.000000e+00 : f32
    %415 = vector.broadcast %cst_128 : f32 to vector<8x128xf32>
    %416 = arith.subf %415, %407 : vector<8x128xf32>
    %417 = arith.mulf %416, %414 : vector<8x128xf32>
    %418 = arith.mulf %407, %393 : vector<8x128xf32>
    %419 = arith.addf %417, %418 : vector<8x128xf32>
    %c48_129 = arith.constant 48 : index
    %c0_130 = arith.constant 0 : index
    %420 = vector.load %arg17[%c48_129, %c0_130] : memref<64x128xf32, #tpu.memory_space<vmem>>, vector<8x128xf32>
    tpu.vector_store %arg17[%c48_129, %c0_130], %419 {strides = array<i32>} : memref<64x128xf32, #tpu.memory_space<vmem>>, vector<8x128xf32>,
    %c56_131 = arith.constant 56 : index
    %c0_132 = arith.constant 0 : index
    %421 = vector.load %arg16[%c56_131, %c0_132] : memref<64x384xf32, #tpu.memory_space<vmem>>, vector<8x384xf32>
    %422 = arith.truncf %419 : vector<8x128xf32> to vector<8x128xbf16>
    %cst_133 = arith.constant dense<0.000000e+00> : vector<8x384xf32>
    %423 = tpu.matmul %422, %245, %cst_133 {dimension_numbers = #tpu.dot_dimension_numbers<[1], [0], [0], [1], [0, 0, 1, 1], [], []>} : vector<8x128xbf16>, vector<128x384xbf16>, vector<8x384xf32> -> vector<8x384xf32>
    %424 = vector.extract_strided_slice %421 {offsets = [0, 0], sizes = [8, 256], strides = [1, 1]} : vector<8x384xf32> to vector<8x256xf32>
    %425 = vector.extract_strided_slice %423 {offsets = [0, 0], sizes = [8, 256], strides = [1, 1]} : vector<8x384xf32> to vector<8x256xf32>
    %426 = arith.addf %424, %425 : vector<8x256xf32>
    %427 = arith.negf %426 : vector<8x256xf32>
    %428 = math.exp %427 : vector<8x256xf32>
    %cst_134 = arith.constant 1.000000e+00 : f32
    %429 = vector.broadcast %cst_134 : f32 to vector<8x256xf32>
    %430 = arith.addf %429, %428 : vector<8x256xf32>
    %431 = arith.divf %429, %430 : vector<8x256xf32>
    %432 = vector.extract_strided_slice %431 {offsets = [0, 0], sizes = [8, 128], strides = [1, 1]} : vector<8x256xf32> to vector<8x128xf32>
    %433 = vector.extract_strided_slice %431 {offsets = [0, 128], sizes = [8, 128], strides = [1, 1]} : vector<8x256xf32> to vector<8x128xf32>
    %434 = vector.extract_strided_slice %421 {offsets = [0, 256], sizes = [8, 128], strides = [1, 1]} : vector<8x384xf32> to vector<8x128xf32>
    %435 = vector.extract_strided_slice %423 {offsets = [0, 256], sizes = [8, 128], strides = [1, 1]} : vector<8x384xf32> to vector<8x128xf32>
    %436 = vector.broadcast %246 : vector<1x128xf32> to vector<8x128xf32>
    %437 = arith.addf %435, %436 : vector<8x128xf32>
    %438 = arith.mulf %432, %437 : vector<8x128xf32>
    %439 = arith.addf %434, %438 : vector<8x128xf32>
    %440 = math.tanh %439 : vector<8x128xf32>
    %cst_135 = arith.constant 1.000000e+00 : f32
    %441 = vector.broadcast %cst_135 : f32 to vector<8x128xf32>
    %442 = arith.subf %441, %433 : vector<8x128xf32>
    %443 = arith.mulf %442, %440 : vector<8x128xf32>
    %444 = arith.mulf %433, %419 : vector<8x128xf32>
    %445 = arith.addf %443, %444 : vector<8x128xf32>
    %c56_136 = arith.constant 56 : index
    %c0_137 = arith.constant 0 : index
    %446 = vector.load %arg17[%c56_136, %c0_137] : memref<64x128xf32, #tpu.memory_space<vmem>>, vector<8x128xf32>
    tpu.vector_store %arg17[%c56_136, %c0_137], %445 {strides = array<i32>} : memref<64x128xf32, #tpu.memory_space<vmem>>, vector<8x128xf32>,
    %c0_138 = arith.constant 0 : index
    %c0_139 = arith.constant 0 : index
    %447 = vector.load %arg17[%c0_138, %c0_139] : memref<64x128xf32, #tpu.memory_space<vmem>>, vector<64x128xf32>
    %448 = arith.truncf %447 : vector<64x128xf32> to vector<64x128xbf16>
    %c0_140 = arith.constant 0 : index
    %c0_141 = arith.constant 0 : index
    %449 = vector.load %arg11[%c0_140, %c0_141] : memref<128x384xbf16, #tpu.memory_space<vmem>>, vector<128x384xbf16>
    %cst_142 = arith.constant dense<0.000000e+00> : vector<64x384xf32>
    %450 = tpu.matmul %448, %449, %cst_142 {dimension_numbers = #tpu.dot_dimension_numbers<[1], [0], [0], [1], [0, 0, 1, 1], [], []>} : vector<64x128xbf16>, vector<128x384xbf16>, vector<64x384xf32> -> vector<64x384xf32>
    %c0_143 = arith.constant 0 : index
    %c0_144 = arith.constant 0 : index
    %451 = vector.load %arg13[%c0_143, %c0_144] : memref<1x384xf32, #tpu.memory_space<vmem>>, vector<1x384xf32>
    %452 = vector.broadcast %451 : vector<1x384xf32> to vector<64x384xf32>
    %453 = arith.addf %450, %452 : vector<64x384xf32>
    %c0_145 = arith.constant 0 : index
    %c0_146 = arith.constant 0 : index
    %454 = vector.load %arg16[%c0_145, %c0_146] : memref<64x384xf32, #tpu.memory_space<vmem>>, vector<64x384xf32>
    tpu.vector_store %arg16[%c0_145, %c0_146], %453 {strides = array<i32>} : memref<64x384xf32, #tpu.memory_space<vmem>>, vector<64x384xf32>,
    %c0_147 = arith.constant 0 : index
    %c0_148 = arith.constant 0 : index
    %455 = vector.load %arg12[%c0_147, %c0_148] : memref<128x384xbf16, #tpu.memory_space<vmem>>, vector<128x384xbf16>
    %c0_149 = arith.constant 0 : index
    %c0_150 = arith.constant 0 : index
    %456 = vector.load %arg14[%c0_149, %c0_150] : memref<1x128xf32, #tpu.memory_space<vmem>>, vector<1x128xf32>
    %c0_151 = arith.constant 0 : index
    %c0_152 = arith.constant 0 : index
    %457 = vector.load %arg16[%c0_151, %c0_152] : memref<64x384xf32, #tpu.memory_space<vmem>>, vector<8x384xf32>
    %458 = vector.extract_strided_slice %457 {offsets = [0, 0], sizes = [8, 256], strides = [1, 1]} : vector<8x384xf32> to vector<8x256xf32>
    %459 = arith.negf %458 : vector<8x256xf32>
    %460 = math.exp %459 : vector<8x256xf32>
    %cst_153 = arith.constant 1.000000e+00 : f32
    %461 = vector.broadcast %cst_153 : f32 to vector<8x256xf32>
    %462 = arith.addf %461, %460 : vector<8x256xf32>
    %463 = arith.divf %461, %462 : vector<8x256xf32>
    %464 = vector.extract_strided_slice %463 {offsets = [0, 128], sizes = [8, 128], strides = [1, 1]} : vector<8x256xf32> to vector<8x128xf32>
    %465 = vector.extract_strided_slice %457 {offsets = [0, 256], sizes = [8, 128], strides = [1, 1]} : vector<8x384xf32> to vector<8x128xf32>
    %466 = vector.extract_strided_slice %463 {offsets = [0, 0], sizes = [8, 128], strides = [1, 1]} : vector<8x256xf32> to vector<8x128xf32>
    %467 = vector.broadcast %456 : vector<1x128xf32> to vector<8x128xf32>
    %468 = arith.mulf %466, %467 : vector<8x128xf32>
    %469 = arith.addf %465, %468 : vector<8x128xf32>
    %470 = math.tanh %469 : vector<8x128xf32>
    %cst_154 = arith.constant 1.000000e+00 : f32
    %471 = vector.broadcast %cst_154 : f32 to vector<8x128xf32>
    %472 = arith.subf %471, %464 : vector<8x128xf32>
    %473 = arith.mulf %472, %470 : vector<8x128xf32>
    %c8_155 = arith.constant 8 : index
    %c0_156 = arith.constant 0 : index
    %474 = vector.load %arg16[%c8_155, %c0_156] : memref<64x384xf32, #tpu.memory_space<vmem>>, vector<8x384xf32>
    %475 = arith.truncf %473 : vector<8x128xf32> to vector<8x128xbf16>
    %cst_157 = arith.constant dense<0.000000e+00> : vector<8x384xf32>
    %476 = tpu.matmul %475, %455, %cst_157 {dimension_numbers = #tpu.dot_dimension_numbers<[1], [0], [0], [1], [0, 0, 1, 1], [], []>} : vector<8x128xbf16>, vector<128x384xbf16>, vector<8x384xf32> -> vector<8x384xf32>
    %477 = vector.extract_strided_slice %474 {offsets = [0, 0], sizes = [8, 256], strides = [1, 1]} : vector<8x384xf32> to vector<8x256xf32>
    %478 = vector.extract_strided_slice %476 {offsets = [0, 0], sizes = [8, 256], strides = [1, 1]} : vector<8x384xf32> to vector<8x256xf32>
    %479 = arith.addf %477, %478 : vector<8x256xf32>
    %480 = arith.negf %479 : vector<8x256xf32>
    %481 = math.exp %480 : vector<8x256xf32>
    %cst_158 = arith.constant 1.000000e+00 : f32
    %482 = vector.broadcast %cst_158 : f32 to vector<8x256xf32>
    %483 = arith.addf %482, %481 : vector<8x256xf32>
    %484 = arith.divf %482, %483 : vector<8x256xf32>
    %485 = vector.extract_strided_slice %484 {offsets = [0, 0], sizes = [8, 128], strides = [1, 1]} : vector<8x256xf32> to vector<8x128xf32>
    %486 = vector.extract_strided_slice %484 {offsets = [0, 128], sizes = [8, 128], strides = [1, 1]} : vector<8x256xf32> to vector<8x128xf32>
    %487 = vector.extract_strided_slice %474 {offsets = [0, 256], sizes = [8, 128], strides = [1, 1]} : vector<8x384xf32> to vector<8x128xf32>
    %488 = vector.extract_strided_slice %476 {offsets = [0, 256], sizes = [8, 128], strides = [1, 1]} : vector<8x384xf32> to vector<8x128xf32>
    %489 = vector.broadcast %456 : vector<1x128xf32> to vector<8x128xf32>
    %490 = arith.addf %488, %489 : vector<8x128xf32>
    %491 = arith.mulf %485, %490 : vector<8x128xf32>
    %492 = arith.addf %487, %491 : vector<8x128xf32>
    %493 = math.tanh %492 : vector<8x128xf32>
    %cst_159 = arith.constant 1.000000e+00 : f32
    %494 = vector.broadcast %cst_159 : f32 to vector<8x128xf32>
    %495 = arith.subf %494, %486 : vector<8x128xf32>
    %496 = arith.mulf %495, %493 : vector<8x128xf32>
    %497 = arith.mulf %486, %473 : vector<8x128xf32>
    %498 = arith.addf %496, %497 : vector<8x128xf32>
    %c16_160 = arith.constant 16 : index
    %c0_161 = arith.constant 0 : index
    %499 = vector.load %arg16[%c16_160, %c0_161] : memref<64x384xf32, #tpu.memory_space<vmem>>, vector<8x384xf32>
    %500 = arith.truncf %498 : vector<8x128xf32> to vector<8x128xbf16>
    %cst_162 = arith.constant dense<0.000000e+00> : vector<8x384xf32>
    %501 = tpu.matmul %500, %455, %cst_162 {dimension_numbers = #tpu.dot_dimension_numbers<[1], [0], [0], [1], [0, 0, 1, 1], [], []>} : vector<8x128xbf16>, vector<128x384xbf16>, vector<8x384xf32> -> vector<8x384xf32>
    %502 = vector.extract_strided_slice %499 {offsets = [0, 0], sizes = [8, 256], strides = [1, 1]} : vector<8x384xf32> to vector<8x256xf32>
    %503 = vector.extract_strided_slice %501 {offsets = [0, 0], sizes = [8, 256], strides = [1, 1]} : vector<8x384xf32> to vector<8x256xf32>
    %504 = arith.addf %502, %503 : vector<8x256xf32>
    %505 = arith.negf %504 : vector<8x256xf32>
    %506 = math.exp %505 : vector<8x256xf32>
    %cst_163 = arith.constant 1.000000e+00 : f32
    %507 = vector.broadcast %cst_163 : f32 to vector<8x256xf32>
    %508 = arith.addf %507, %506 : vector<8x256xf32>
    %509 = arith.divf %507, %508 : vector<8x256xf32>
    %510 = vector.extract_strided_slice %509 {offsets = [0, 0], sizes = [8, 128], strides = [1, 1]} : vector<8x256xf32> to vector<8x128xf32>
    %511 = vector.extract_strided_slice %509 {offsets = [0, 128], sizes = [8, 128], strides = [1, 1]} : vector<8x256xf32> to vector<8x128xf32>
    %512 = vector.extract_strided_slice %499 {offsets = [0, 256], sizes = [8, 128], strides = [1, 1]} : vector<8x384xf32> to vector<8x128xf32>
    %513 = vector.extract_strided_slice %501 {offsets = [0, 256], sizes = [8, 128], strides = [1, 1]} : vector<8x384xf32> to vector<8x128xf32>
    %514 = vector.broadcast %456 : vector<1x128xf32> to vector<8x128xf32>
    %515 = arith.addf %513, %514 : vector<8x128xf32>
    %516 = arith.mulf %510, %515 : vector<8x128xf32>
    %517 = arith.addf %512, %516 : vector<8x128xf32>
    %518 = math.tanh %517 : vector<8x128xf32>
    %cst_164 = arith.constant 1.000000e+00 : f32
    %519 = vector.broadcast %cst_164 : f32 to vector<8x128xf32>
    %520 = arith.subf %519, %511 : vector<8x128xf32>
    %521 = arith.mulf %520, %518 : vector<8x128xf32>
    %522 = arith.mulf %511, %498 : vector<8x128xf32>
    %523 = arith.addf %521, %522 : vector<8x128xf32>
    %c24_165 = arith.constant 24 : index
    %c0_166 = arith.constant 0 : index
    %524 = vector.load %arg16[%c24_165, %c0_166] : memref<64x384xf32, #tpu.memory_space<vmem>>, vector<8x384xf32>
    %525 = arith.truncf %523 : vector<8x128xf32> to vector<8x128xbf16>
    %cst_167 = arith.constant dense<0.000000e+00> : vector<8x384xf32>
    %526 = tpu.matmul %525, %455, %cst_167 {dimension_numbers = #tpu.dot_dimension_numbers<[1], [0], [0], [1], [0, 0, 1, 1], [], []>} : vector<8x128xbf16>, vector<128x384xbf16>, vector<8x384xf32> -> vector<8x384xf32>
    %527 = vector.extract_strided_slice %524 {offsets = [0, 0], sizes = [8, 256], strides = [1, 1]} : vector<8x384xf32> to vector<8x256xf32>
    %528 = vector.extract_strided_slice %526 {offsets = [0, 0], sizes = [8, 256], strides = [1, 1]} : vector<8x384xf32> to vector<8x256xf32>
    %529 = arith.addf %527, %528 : vector<8x256xf32>
    %530 = arith.negf %529 : vector<8x256xf32>
    %531 = math.exp %530 : vector<8x256xf32>
    %cst_168 = arith.constant 1.000000e+00 : f32
    %532 = vector.broadcast %cst_168 : f32 to vector<8x256xf32>
    %533 = arith.addf %532, %531 : vector<8x256xf32>
    %534 = arith.divf %532, %533 : vector<8x256xf32>
    %535 = vector.extract_strided_slice %534 {offsets = [0, 0], sizes = [8, 128], strides = [1, 1]} : vector<8x256xf32> to vector<8x128xf32>
    %536 = vector.extract_strided_slice %534 {offsets = [0, 128], sizes = [8, 128], strides = [1, 1]} : vector<8x256xf32> to vector<8x128xf32>
    %537 = vector.extract_strided_slice %524 {offsets = [0, 256], sizes = [8, 128], strides = [1, 1]} : vector<8x384xf32> to vector<8x128xf32>
    %538 = vector.extract_strided_slice %526 {offsets = [0, 256], sizes = [8, 128], strides = [1, 1]} : vector<8x384xf32> to vector<8x128xf32>
    %539 = vector.broadcast %456 : vector<1x128xf32> to vector<8x128xf32>
    %540 = arith.addf %538, %539 : vector<8x128xf32>
    %541 = arith.mulf %535, %540 : vector<8x128xf32>
    %542 = arith.addf %537, %541 : vector<8x128xf32>
    %543 = math.tanh %542 : vector<8x128xf32>
    %cst_169 = arith.constant 1.000000e+00 : f32
    %544 = vector.broadcast %cst_169 : f32 to vector<8x128xf32>
    %545 = arith.subf %544, %536 : vector<8x128xf32>
    %546 = arith.mulf %545, %543 : vector<8x128xf32>
    %547 = arith.mulf %536, %523 : vector<8x128xf32>
    %548 = arith.addf %546, %547 : vector<8x128xf32>
    %c32_170 = arith.constant 32 : index
    %c0_171 = arith.constant 0 : index
    %549 = vector.load %arg16[%c32_170, %c0_171] : memref<64x384xf32, #tpu.memory_space<vmem>>, vector<8x384xf32>
    %550 = arith.truncf %548 : vector<8x128xf32> to vector<8x128xbf16>
    %cst_172 = arith.constant dense<0.000000e+00> : vector<8x384xf32>
    %551 = tpu.matmul %550, %455, %cst_172 {dimension_numbers = #tpu.dot_dimension_numbers<[1], [0], [0], [1], [0, 0, 1, 1], [], []>} : vector<8x128xbf16>, vector<128x384xbf16>, vector<8x384xf32> -> vector<8x384xf32>
    %552 = vector.extract_strided_slice %549 {offsets = [0, 0], sizes = [8, 256], strides = [1, 1]} : vector<8x384xf32> to vector<8x256xf32>
    %553 = vector.extract_strided_slice %551 {offsets = [0, 0], sizes = [8, 256], strides = [1, 1]} : vector<8x384xf32> to vector<8x256xf32>
    %554 = arith.addf %552, %553 : vector<8x256xf32>
    %555 = arith.negf %554 : vector<8x256xf32>
    %556 = math.exp %555 : vector<8x256xf32>
    %cst_173 = arith.constant 1.000000e+00 : f32
    %557 = vector.broadcast %cst_173 : f32 to vector<8x256xf32>
    %558 = arith.addf %557, %556 : vector<8x256xf32>
    %559 = arith.divf %557, %558 : vector<8x256xf32>
    %560 = vector.extract_strided_slice %559 {offsets = [0, 0], sizes = [8, 128], strides = [1, 1]} : vector<8x256xf32> to vector<8x128xf32>
    %561 = vector.extract_strided_slice %559 {offsets = [0, 128], sizes = [8, 128], strides = [1, 1]} : vector<8x256xf32> to vector<8x128xf32>
    %562 = vector.extract_strided_slice %549 {offsets = [0, 256], sizes = [8, 128], strides = [1, 1]} : vector<8x384xf32> to vector<8x128xf32>
    %563 = vector.extract_strided_slice %551 {offsets = [0, 256], sizes = [8, 128], strides = [1, 1]} : vector<8x384xf32> to vector<8x128xf32>
    %564 = vector.broadcast %456 : vector<1x128xf32> to vector<8x128xf32>
    %565 = arith.addf %563, %564 : vector<8x128xf32>
    %566 = arith.mulf %560, %565 : vector<8x128xf32>
    %567 = arith.addf %562, %566 : vector<8x128xf32>
    %568 = math.tanh %567 : vector<8x128xf32>
    %cst_174 = arith.constant 1.000000e+00 : f32
    %569 = vector.broadcast %cst_174 : f32 to vector<8x128xf32>
    %570 = arith.subf %569, %561 : vector<8x128xf32>
    %571 = arith.mulf %570, %568 : vector<8x128xf32>
    %572 = arith.mulf %561, %548 : vector<8x128xf32>
    %573 = arith.addf %571, %572 : vector<8x128xf32>
    %c40_175 = arith.constant 40 : index
    %c0_176 = arith.constant 0 : index
    %574 = vector.load %arg16[%c40_175, %c0_176] : memref<64x384xf32, #tpu.memory_space<vmem>>, vector<8x384xf32>
    %575 = arith.truncf %573 : vector<8x128xf32> to vector<8x128xbf16>
    %cst_177 = arith.constant dense<0.000000e+00> : vector<8x384xf32>
    %576 = tpu.matmul %575, %455, %cst_177 {dimension_numbers = #tpu.dot_dimension_numbers<[1], [0], [0], [1], [0, 0, 1, 1], [], []>} : vector<8x128xbf16>, vector<128x384xbf16>, vector<8x384xf32> -> vector<8x384xf32>
    %577 = vector.extract_strided_slice %574 {offsets = [0, 0], sizes = [8, 256], strides = [1, 1]} : vector<8x384xf32> to vector<8x256xf32>
    %578 = vector.extract_strided_slice %576 {offsets = [0, 0], sizes = [8, 256], strides = [1, 1]} : vector<8x384xf32> to vector<8x256xf32>
    %579 = arith.addf %577, %578 : vector<8x256xf32>
    %580 = arith.negf %579 : vector<8x256xf32>
    %581 = math.exp %580 : vector<8x256xf32>
    %cst_178 = arith.constant 1.000000e+00 : f32
    %582 = vector.broadcast %cst_178 : f32 to vector<8x256xf32>
    %583 = arith.addf %582, %581 : vector<8x256xf32>
    %584 = arith.divf %582, %583 : vector<8x256xf32>
    %585 = vector.extract_strided_slice %584 {offsets = [0, 0], sizes = [8, 128], strides = [1, 1]} : vector<8x256xf32> to vector<8x128xf32>
    %586 = vector.extract_strided_slice %584 {offsets = [0, 128], sizes = [8, 128], strides = [1, 1]} : vector<8x256xf32> to vector<8x128xf32>
    %587 = vector.extract_strided_slice %574 {offsets = [0, 256], sizes = [8, 128], strides = [1, 1]} : vector<8x384xf32> to vector<8x128xf32>
    %588 = vector.extract_strided_slice %576 {offsets = [0, 256], sizes = [8, 128], strides = [1, 1]} : vector<8x384xf32> to vector<8x128xf32>
    %589 = vector.broadcast %456 : vector<1x128xf32> to vector<8x128xf32>
    %590 = arith.addf %588, %589 : vector<8x128xf32>
    %591 = arith.mulf %585, %590 : vector<8x128xf32>
    %592 = arith.addf %587, %591 : vector<8x128xf32>
    %593 = math.tanh %592 : vector<8x128xf32>
    %cst_179 = arith.constant 1.000000e+00 : f32
    %594 = vector.broadcast %cst_179 : f32 to vector<8x128xf32>
    %595 = arith.subf %594, %586 : vector<8x128xf32>
    %596 = arith.mulf %595, %593 : vector<8x128xf32>
    %597 = arith.mulf %586, %573 : vector<8x128xf32>
    %598 = arith.addf %596, %597 : vector<8x128xf32>
    %c48_180 = arith.constant 48 : index
    %c0_181 = arith.constant 0 : index
    %599 = vector.load %arg16[%c48_180, %c0_181] : memref<64x384xf32, #tpu.memory_space<vmem>>, vector<8x384xf32>
    %600 = arith.truncf %598 : vector<8x128xf32> to vector<8x128xbf16>
    %cst_182 = arith.constant dense<0.000000e+00> : vector<8x384xf32>
    %601 = tpu.matmul %600, %455, %cst_182 {dimension_numbers = #tpu.dot_dimension_numbers<[1], [0], [0], [1], [0, 0, 1, 1], [], []>} : vector<8x128xbf16>, vector<128x384xbf16>, vector<8x384xf32> -> vector<8x384xf32>
    %602 = vector.extract_strided_slice %599 {offsets = [0, 0], sizes = [8, 256], strides = [1, 1]} : vector<8x384xf32> to vector<8x256xf32>
    %603 = vector.extract_strided_slice %601 {offsets = [0, 0], sizes = [8, 256], strides = [1, 1]} : vector<8x384xf32> to vector<8x256xf32>
    %604 = arith.addf %602, %603 : vector<8x256xf32>
    %605 = arith.negf %604 : vector<8x256xf32>
    %606 = math.exp %605 : vector<8x256xf32>
    %cst_183 = arith.constant 1.000000e+00 : f32
    %607 = vector.broadcast %cst_183 : f32 to vector<8x256xf32>
    %608 = arith.addf %607, %606 : vector<8x256xf32>
    %609 = arith.divf %607, %608 : vector<8x256xf32>
    %610 = vector.extract_strided_slice %609 {offsets = [0, 0], sizes = [8, 128], strides = [1, 1]} : vector<8x256xf32> to vector<8x128xf32>
    %611 = vector.extract_strided_slice %609 {offsets = [0, 128], sizes = [8, 128], strides = [1, 1]} : vector<8x256xf32> to vector<8x128xf32>
    %612 = vector.extract_strided_slice %599 {offsets = [0, 256], sizes = [8, 128], strides = [1, 1]} : vector<8x384xf32> to vector<8x128xf32>
    %613 = vector.extract_strided_slice %601 {offsets = [0, 256], sizes = [8, 128], strides = [1, 1]} : vector<8x384xf32> to vector<8x128xf32>
    %614 = vector.broadcast %456 : vector<1x128xf32> to vector<8x128xf32>
    %615 = arith.addf %613, %614 : vector<8x128xf32>
    %616 = arith.mulf %610, %615 : vector<8x128xf32>
    %617 = arith.addf %612, %616 : vector<8x128xf32>
    %618 = math.tanh %617 : vector<8x128xf32>
    %cst_184 = arith.constant 1.000000e+00 : f32
    %619 = vector.broadcast %cst_184 : f32 to vector<8x128xf32>
    %620 = arith.subf %619, %611 : vector<8x128xf32>
    %621 = arith.mulf %620, %618 : vector<8x128xf32>
    %622 = arith.mulf %611, %598 : vector<8x128xf32>
    %623 = arith.addf %621, %622 : vector<8x128xf32>
    %c56_185 = arith.constant 56 : index
    %c0_186 = arith.constant 0 : index
    %624 = vector.load %arg16[%c56_185, %c0_186] : memref<64x384xf32, #tpu.memory_space<vmem>>, vector<8x384xf32>
    %625 = arith.truncf %623 : vector<8x128xf32> to vector<8x128xbf16>
    %cst_187 = arith.constant dense<0.000000e+00> : vector<8x384xf32>
    %626 = tpu.matmul %625, %455, %cst_187 {dimension_numbers = #tpu.dot_dimension_numbers<[1], [0], [0], [1], [0, 0, 1, 1], [], []>} : vector<8x128xbf16>, vector<128x384xbf16>, vector<8x384xf32> -> vector<8x384xf32>
    %627 = vector.extract_strided_slice %624 {offsets = [0, 0], sizes = [8, 256], strides = [1, 1]} : vector<8x384xf32> to vector<8x256xf32>
    %628 = vector.extract_strided_slice %626 {offsets = [0, 0], sizes = [8, 256], strides = [1, 1]} : vector<8x384xf32> to vector<8x256xf32>
    %629 = arith.addf %627, %628 : vector<8x256xf32>
    %630 = arith.negf %629 : vector<8x256xf32>
    %631 = math.exp %630 : vector<8x256xf32>
    %cst_188 = arith.constant 1.000000e+00 : f32
    %632 = vector.broadcast %cst_188 : f32 to vector<8x256xf32>
    %633 = arith.addf %632, %631 : vector<8x256xf32>
    %634 = arith.divf %632, %633 : vector<8x256xf32>
    %635 = vector.extract_strided_slice %634 {offsets = [0, 0], sizes = [8, 128], strides = [1, 1]} : vector<8x256xf32> to vector<8x128xf32>
    %636 = vector.extract_strided_slice %634 {offsets = [0, 128], sizes = [8, 128], strides = [1, 1]} : vector<8x256xf32> to vector<8x128xf32>
    %637 = vector.extract_strided_slice %624 {offsets = [0, 256], sizes = [8, 128], strides = [1, 1]} : vector<8x384xf32> to vector<8x128xf32>
    %638 = vector.extract_strided_slice %626 {offsets = [0, 256], sizes = [8, 128], strides = [1, 1]} : vector<8x384xf32> to vector<8x128xf32>
    %639 = vector.broadcast %456 : vector<1x128xf32> to vector<8x128xf32>
    %640 = arith.addf %638, %639 : vector<8x128xf32>
    %641 = arith.mulf %635, %640 : vector<8x128xf32>
    %642 = arith.addf %637, %641 : vector<8x128xf32>
    %643 = math.tanh %642 : vector<8x128xf32>
    %cst_189 = arith.constant 1.000000e+00 : f32
    %644 = vector.broadcast %cst_189 : f32 to vector<8x128xf32>
    %645 = arith.subf %644, %636 : vector<8x128xf32>
    %646 = arith.mulf %645, %643 : vector<8x128xf32>
    %647 = arith.mulf %636, %623 : vector<8x128xf32>
    %648 = arith.addf %646, %647 : vector<8x128xf32>
    %c0_190 = arith.constant 0 : index
    %c0_191 = arith.constant 0 : index
    %649 = vector.load %arg15[%c0_190, %c0_191] : memref<8x128xf32, #tpu.memory_space<vmem>>, vector<8x128xf32>
    tpu.vector_store %arg15[%c0_190, %c0_191], %648 {strides = array<i32>} : memref<8x128xf32, #tpu.memory_space<vmem>>, vector<8x128xf32>,
    return
  }
}

</mosaic_0001>

<llo_original>
// kernel: gru_block_forward.1
$region0: #{gru_block_forward.1}
  #allocation0 [shape = 'u32[]', space=smem, size = 0x4, offset = 0x4, fixed_abs, tag = 'smem constant byte address 0x4 - core index']
  #allocation1 [shape = 'u32[144,128]{1,0:T(1,128)}', space=vmem, size = 0x12000, scoped, tag = 'internal scratch']
  #allocation2 [shape = 'f32[64,384]{1,0:T(8,128)}', space=vmem, size = 0x18000, scoped, tag = 'scratch operand']
  #allocation3 [shape = 'f32[64,128]{1,0:T(8,128)}', space=vmem, size = 0x8000, scoped, tag = 'scratch operand']
  %s0 = inlined_call_operand.vmem [shape: f32[64,8], index: 0, kind: input, shape index: {}]
  %s1 = inlined_call_operand.vmem [shape: f32[1,8], index: 1, kind: input, shape index: {}]
  %s2 = inlined_call_operand.hbm [shape: f32[1,8], index: 2, kind: input, shape index: {}]
  %s3 = inlined_call_operand.hbm [shape: bf16[8,384], index: 3, kind: input, shape index: {}]
  %s4 = inlined_call_operand.hbm [shape: bf16[128,384], index: 4, kind: input, shape index: {}]
  %s5 = inlined_call_operand.vmem [shape: f32[1,384], index: 5, kind: input, shape index: {}]
  %s6 = inlined_call_operand.hbm [shape: f32[1,128], index: 6, kind: input, shape index: {}]
  %s7 = inlined_call_operand.hbm [shape: bf16[128,384], index: 7, kind: input, shape index: {}]
  %s8 = inlined_call_operand.hbm [shape: bf16[128,384], index: 8, kind: input, shape index: {}]
  %s9 = inlined_call_operand.hbm [shape: f32[1,384], index: 9, kind: input, shape index: {}]
  %s10 = inlined_call_operand.hbm [shape: f32[1,128], index: 10, kind: input, shape index: {}]
  %s11 = inlined_call_operand.vmem [shape: bf16[128,384], index: 11, kind: input, shape index: {}]
  %s12 = inlined_call_operand.hbm [shape: bf16[128,384], index: 12, kind: input, shape index: {}]
  %s13 = inlined_call_operand.hbm [shape: f32[1,384], index: 13, kind: input, shape index: {}]
  %s14 = inlined_call_operand.hbm [shape: f32[1,128], index: 14, kind: input, shape index: {}]
  %s15 = inlined_call_operand.hbm [shape: f32[8,128], index: 15, kind: output, shape index: {}]
  %s16 = sld [smem:[#allocation0]]
  $region114: #{gru_block_forward.1} parent=0
    _
  %s18 = ssub.s32 1, %s16
  %s19 = scalar_select 0, %s18, %s16
  $region1: #{gru_block_forward.1} parent=0
    #allocation4 [shape = 'u8[512]{0}', space=vmem, size = 0x400, scoped, tag = 'input window, operand 2, single buffered']
    #allocation5 [shape = 's32[1]{0}', space=sflag, size = 0x4, scoped, tag = 'scoped memory for gru_block_forward.1']
    #allocation6 [shape = 's32[1]{0}', space=sflag, size = 0x4, scoped, tag = 'scoped memory for gru_block_forward.1']
    #allocation7 [shape = 'u8[6144]{0}', space=vmem, size = 0x1800, scoped, tag = 'input window, operand 3, single buffered']
    #allocation8 [shape = 's32[1]{0}', space=sflag, size = 0x4, scoped, tag = 'scoped memory for gru_block_forward.1']
    #allocation9 [shape = 'u8[98304]{0}', space=vmem, size = 0x18000, scoped, tag = 'input window, operand 4, single buffered']
    #allocation10 [shape = 'u8[512]{0}', space=vmem, size = 0x400, scoped, tag = 'input window, operand 6, single buffered']
    #allocation11 [shape = 's32[1]{0}', space=sflag, size = 0x4, scoped, tag = 'scoped memory for gru_block_forward.1']
    #allocation12 [shape = 'u8[98304]{0}', space=vmem, size = 0x18000, scoped, tag = 'input window, operand 7, single buffered']
    #allocation13 [shape = 'u8[98304]{0}', space=vmem, size = 0x18000, scoped, tag = 'input window, operand 8, single buffered']
    #allocation14 [shape = 's32[1]{0}', space=sflag, size = 0x4, scoped, tag = 'scoped memory for gru_block_forward.1']
    #allocation15 [shape = 'u8[1536]{0}', space=vmem, size = 0x800, scoped, tag = 'input window, operand 9, single buffered']
    #allocation16 [shape = 'u8[512]{0}', space=vmem, size = 0x400, scoped, tag = 'input window, operand 10, single buffered']
    #allocation17 [shape = 's32[1]{0}', space=sflag, size = 0x4, scoped, tag = 'scoped memory for gru_block_forward.1']
    #allocation18 [shape = 'u8[98304]{0}', space=vmem, size = 0x18000, scoped, tag = 'input window, operand 12, single buffered']
    #allocation19 [shape = 'u8[1536]{0}', space=vmem, size = 0x800, scoped, tag = 'input window, operand 13, single buffered']
    #allocation20 [shape = 's32[1]{0}', space=sflag, size = 0x4, scoped, tag = 'scoped memory for gru_block_forward.1']
    #allocation21 [shape = 'u8[512]{0}', space=vmem, size = 0x400, scoped, tag = 'input window, operand 14, single buffered']
    #allocation22 [shape = 'u8[4096]{0}', space=vmem, size = 0x1000, scoped, tag = 'output window, operand 0, single buffered']
    %20 = vsyncpa [#allocation5], 0
    %21 = vsyncpa [#allocation8], 0
    %22 = vsyncpa [#allocation11], 0
    %23 = vsyncpa [#allocation14], 0
    %24 = vsyncpa [#allocation17], 0
    %25 = vsyncpa [#allocation20], 0
    %26 = vsyncpa [#allocation6], 0
    // Predicated region
    $region2: #{gru_block_forward.1} parent=1 // pred_check
      _
    $region3: #{gru_block_forward.1} parent=1 // pred_check_branch
      %28 = sbr.rel (0) target = $region5
    $region4: #{gru_block_forward.1} parent=1 // pred_region
      _
    $region5: #{gru_block_forward.1} parent=1 // pred_fallthru
      _
    // Predicated region
    $region6: #{gru_block_forward.1} parent=1 // pred_check
      _
    $region7: #{gru_block_forward.1} parent=1 // pred_check_branch
      %30 = sbr.rel (0) target = $region9
    $region8: #{gru_block_forward.1} parent=1 // pred_region
      _
    $region9: #{gru_block_forward.1} parent=1 // pred_fallthru
      _
    // Predicated region
    $region10: #{gru_block_forward.1} parent=1 // pred_check
      _
    $region11: #{gru_block_forward.1} parent=1 // pred_check_branch
      %32 = sbr.rel (0) target = $region13
    $region12: #{gru_block_forward.1} parent=1 // pred_region
      %s34 = ssub.s32 16, 16
      %35 = vsyncadd [#allocation5], %s34
      %s37 = sshll.u32 [#allocation4], 4
      %s38 = int_to_ptr.vmem [resolvable:$true] %s37
      %40 = dma.hbm_to_vmem [thread:$0]  %s2, 16, %s38, [#allocation5]
    $region13: #{gru_block_forward.1} parent=1 // pred_fallthru
      _
    // Predicated region
    $region14: #{gru_block_forward.1} parent=1 // pred_check
      _
    $region15: #{gru_block_forward.1} parent=1 // pred_check_branch
      %42 = sbr.rel (0) target = $region17
    $region16: #{gru_block_forward.1} parent=1 // pred_region
      %s44 = ssub.s32 192, 192
      %45 = vsyncadd [#allocation8], %s44
      %s47 = sshll.u32 [#allocation7], 4
      %s48 = int_to_ptr.vmem [resolvable:$true] %s47
      %50 = dma.hbm_to_vmem [thread:$0]  %s3, 192, %s48, [#allocation8]
    $region17: #{gru_block_forward.1} parent=1 // pred_fallthru
      _
    // Predicated region
    $region18: #{gru_block_forward.1} parent=1 // pred_check
      _
    $region19: #{gru_block_forward.1} parent=1 // pred_check_branch
      %52 = sbr.rel (0) target = $region21
    $region20: #{gru_block_forward.1} parent=1 // pred_region
      %s54 = ssub.s32 3072, 3072
      %55 = vsyncadd [#allocation8], %s54
      %s56 = sshll.u32 [#allocation9], 4
      %s57 = int_to_ptr.vmem [resolvable:$true] %s56
      %62 = dma.hbm_to_vmem [thread:$0]  %s4, 3072, %s57, [#allocation8], 192, 192, 12
    $region21: #{gru_block_forward.1} parent=1 // pred_fallthru
      _
    // Predicated region
    $region22: #{gru_block_forward.1} parent=1 // pred_check
      _
    $region23: #{gru_block_forward.1} parent=1 // pred_check_branch
      %64 = sbr.rel (0) target = $region25
    $region24: #{gru_block_forward.1} parent=1 // pred_region
      _
    $region25: #{gru_block_forward.1} parent=1 // pred_fallthru
      _
    // Predicated region
    $region26: #{gru_block_forward.1} parent=1 // pred_check
      _
    $region27: #{gru_block_forward.1} parent=1 // pred_check_branch
      %66 = sbr.rel (0) target = $region29
    $region28: #{gru_block_forward.1} parent=1 // pred_region
      %s68 = ssub.s32 16, 16
      %69 = vsyncadd [#allocation11], %s68
      %s71 = sshll.u32 [#allocation10], 4
      %s72 = int_to_ptr.vmem [resolvable:$true] %s71
      %74 = dma.hbm_to_vmem [thread:$0]  %s6, 16, %s72, [#allocation11]
    $region29: #{gru_block_forward.1} parent=1 // pred_fallthru
      _
    // Predicated region
    $region30: #{gru_block_forward.1} parent=1 // pred_check
      _
    $region31: #{gru_block_forward.1} parent=1 // pred_check_branch
      %76 = sbr.rel (0) target = $region33
    $region32: #{gru_block_forward.1} parent=1 // pred_region
      %s78 = ssub.s32 3072, 3072
      %79 = vsyncadd [#allocation11], %s78
      %s80 = sshll.u32 [#allocation12], 4
      %s81 = int_to_ptr.vmem [resolvable:$true] %s80
      %86 = dma.hbm_to_vmem [thread:$0]  %s7, 3072, %s81, [#allocation11], 192, 192, 12
    $region33: #{gru_block_forward.1} parent=1 // pred_fallthru
      _
    // Predicated region
    $region34: #{gru_block_forward.1} parent=1 // pred_check
      _
    $region35: #{gru_block_forward.1} parent=1 // pred_check_branch
      %88 = sbr.rel (0) target = $region37
    $region36: #{gru_block_forward.1} parent=1 // pred_region
      %s90 = ssub.s32 3072, 3072
      %91 = vsyncadd [#allocation14], %s90
      %s92 = sshll.u32 [#allocation13], 4
      %s93 = int_to_ptr.vmem [resolvable:$true] %s92
      %98 = dma.hbm_to_vmem [thread:$0]  %s8, 3072, %s93, [#allocation14], 192, 192, 12
    $region37: #{gru_block_forward.1} parent=1 // pred_fallthru
      _
    // Predicated region
    $region38: #{gru_block_forward.1} parent=1 // pred_check
      _
    $region39: #{gru_block_forward.1} parent=1 // pred_check_branch
      %100 = sbr.rel (0) target = $region41
    $region40: #{gru_block_forward.1} parent=1 // pred_region
      %s102 = ssub.s32 48, 48
      %103 = vsyncadd [#allocation14], %s102
      %s105 = sshll.u32 [#allocation15], 4
      %s106 = int_to_ptr.vmem [resolvable:$true] %s105
      %108 = dma.hbm_to_vmem [thread:$0]  %s9, 48, %s106, [#allocation14]
    $region41: #{gru_block_forward.1} parent=1 // pred_fallthru
      _
    // Predicated region
    $region42: #{gru_block_forward.1} parent=1 // pred_check
      _
    $region43: #{gru_block_forward.1} parent=1 // pred_check_branch
      %110 = sbr.rel (0) target = $region45
    $region44: #{gru_block_forward.1} parent=1 // pred_region
      %s112 = ssub.s32 16, 16
      %113 = vsyncadd [#allocation17], %s112
      %s115 = sshll.u32 [#allocation16], 4
      %s116 = int_to_ptr.vmem [resolvable:$true] %s115
      %118 = dma.hbm_to_vmem [thread:$0]  %s10, 16, %s116, [#allocation17]
    $region45: #{gru_block_forward.1} parent=1 // pred_fallthru
      _
    // Predicated region
    $region46: #{gru_block_forward.1} parent=1 // pred_check
      _
    $region47: #{gru_block_forward.1} parent=1 // pred_check_branch
      %120 = sbr.rel (0) target = $region49
    $region48: #{gru_block_forward.1} parent=1 // pred_region
      _
    $region49: #{gru_block_forward.1} parent=1 // pred_fallthru
      _
    // Predicated region
    $region50: #{gru_block_forward.1} parent=1 // pred_check
      _
    $region51: #{gru_block_forward.1} parent=1 // pred_check_branch
      %122 = sbr.rel (0) target = $region53
    $region52: #{gru_block_forward.1} parent=1 // pred_region
      %s124 = ssub.s32 3072, 3072
      %125 = vsyncadd [#allocation17], %s124
      %s126 = sshll.u32 [#allocation18], 4
      %s127 = int_to_ptr.vmem [resolvable:$true] %s126
      %132 = dma.hbm_to_vmem [thread:$0]  %s12, 3072, %s127, [#allocation17], 192, 192, 12
    $region53: #{gru_block_forward.1} parent=1 // pred_fallthru
      _
    // Predicated region
    $region54: #{gru_block_forward.1} parent=1 // pred_check
      _
    $region55: #{gru_block_forward.1} parent=1 // pred_check_branch
      %134 = sbr.rel (0) target = $region57
    $region56: #{gru_block_forward.1} parent=1 // pred_region
      %s136 = ssub.s32 48, 48
      %137 = vsyncadd [#allocation20], %s136
      %s139 = sshll.u32 [#allocation19], 4
      %s140 = int_to_ptr.vmem [resolvable:$true] %s139
      %142 = dma.hbm_to_vmem [thread:$0]  %s13, 48, %s140, [#allocation20]
    $region57: #{gru_block_forward.1} parent=1 // pred_fallthru
      _
    // Predicated region
    $region58: #{gru_block_forward.1} parent=1 // pred_check
      _
    $region59: #{gru_block_forward.1} parent=1 // pred_check_branch
      %144 = sbr.rel (0) target = $region61
    $region60: #{gru_block_forward.1} parent=1 // pred_region
      %s146 = ssub.s32 16, 16
      %147 = vsyncadd [#allocation20], %s146
      %s149 = sshll.u32 [#allocation21], 4
      %s150 = int_to_ptr.vmem [resolvable:$true] %s149
      %152 = dma.hbm_to_vmem [thread:$0]  %s14, 16, %s150, [#allocation20]
    $region61: #{gru_block_forward.1} parent=1 // pred_fallthru
      _
    // Predicated region
    $region62: #{gru_block_forward.1} parent=1 // pred_check
      _
    $region63: #{gru_block_forward.1} parent=1 // pred_check_branch
      %154 = sbr.rel (0) target = $region65
    $region64: #{gru_block_forward.1} parent=1 // pred_region
      %155 = dma.done [#allocation5], 16
    $region65: #{gru_block_forward.1} parent=1 // pred_fallthru
      _
    // Predicated region
    $region66: #{gru_block_forward.1} parent=1 // pred_check
      _
    $region67: #{gru_block_forward.1} parent=1 // pred_check_branch
      %157 = sbr.rel (0) target = $region69
    $region68: #{gru_block_forward.1} parent=1 // pred_region
      %158 = dma.done [#allocation8], 192
    $region69: #{gru_block_forward.1} parent=1 // pred_fallthru
      _
    // Predicated region
    $region70: #{gru_block_forward.1} parent=1 // pred_check
      _
    $region71: #{gru_block_forward.1} parent=1 // pred_check_branch
      %160 = sbr.rel (0) target = $region73
    $region72: #{gru_block_forward.1} parent=1 // pred_region
      %161 = dma.done [#allocation8], 3072
    $region73: #{gru_block_forward.1} parent=1 // pred_fallthru
      _
    // Predicated region
    $region74: #{gru_block_forward.1} parent=1 // pred_check
      _
    $region75: #{gru_block_forward.1} parent=1 // pred_check_branch
      %163 = sbr.rel (0) target = $region77
    $region76: #{gru_block_forward.1} parent=1 // pred_region
      %164 = dma.done [#allocation11], 16
    $region77: #{gru_block_forward.1} parent=1 // pred_fallthru
      _
    // Predicated region
    $region78: #{gru_block_forward.1} parent=1 // pred_check
      _
    $region79: #{gru_block_forward.1} parent=1 // pred_check_branch
      %166 = sbr.rel (0) target = $region81
    $region80: #{gru_block_forward.1} parent=1 // pred_region
      %167 = dma.done [#allocation11], 3072
    $region81: #{gru_block_forward.1} parent=1 // pred_fallthru
      _
    // Predicated region
    $region82: #{gru_block_forward.1} parent=1 // pred_check
      _
    $region83: #{gru_block_forward.1} parent=1 // pred_check_branch
      %169 = sbr.rel (0) target = $region85
    $region84: #{gru_block_forward.1} parent=1 // pred_region
      %170 = dma.done [#allocation14], 3072
    $region85: #{gru_block_forward.1} parent=1 // pred_fallthru
      _
    // Predicated region
    $region86: #{gru_block_forward.1} parent=1 // pred_check
      _
    $region87: #{gru_block_forward.1} parent=1 // pred_check_branch
      %172 = sbr.rel (0) target = $region89
    $region88: #{gru_block_forward.1} parent=1 // pred_region
      %173 = dma.done [#allocation14], 48
    $region89: #{gru_block_forward.1} parent=1 // pred_fallthru
      _
    // Predicated region
    $region90: #{gru_block_forward.1} parent=1 // pred_check
      _
    $region91: #{gru_block_forward.1} parent=1 // pred_check_branch
      %175 = sbr.rel (0) target = $region93
    $region92: #{gru_block_forward.1} parent=1 // pred_region
      %176 = dma.done [#allocation17], 16
    $region93: #{gru_block_forward.1} parent=1 // pred_fallthru
      _
    // Predicated region
    $region94: #{gru_block_forward.1} parent=1 // pred_check
      _
    $region95: #{gru_block_forward.1} parent=1 // pred_check_branch
      %178 = sbr.rel (0) target = $region97
    $region96: #{gru_block_forward.1} parent=1 // pred_region
      %179 = dma.done [#allocation17], 3072
    $region97: #{gru_block_forward.1} parent=1 // pred_fallthru
      _
    // Predicated region
    $region98: #{gru_block_forward.1} parent=1 // pred_check
      _
    $region99: #{gru_block_forward.1} parent=1 // pred_check_branch
      %181 = sbr.rel (0) target = $region101
    $region100: #{gru_block_forward.1} parent=1 // pred_region
      %182 = dma.done [#allocation20], 48
    $region101: #{gru_block_forward.1} parent=1 // pred_fallthru
      _
    // Predicated region
    $region102: #{gru_block_forward.1} parent=1 // pred_check
      _
    $region103: #{gru_block_forward.1} parent=1 // pred_check_branch
      %184 = sbr.rel (0) target = $region105
    $region104: #{gru_block_forward.1} parent=1 // pred_region
      %185 = dma.done [#allocation20], 16
    $region105: #{gru_block_forward.1} parent=1 // pred_fallthru
      _
    %v187 = vld [vmem:[%s0] sm:$0xff]
    %v188 = vld [vmem:[%s0 + $0x8] sm:$0xff]
    %v189 = vld [vmem:[%s0 + $0x10] sm:$0xff]
    %v190 = vld [vmem:[%s0 + $0x18] sm:$0xff]
    %v191 = vld [vmem:[%s0 + $0x20] sm:$0xff]
    %v192 = vld [vmem:[%s0 + $0x28] sm:$0xff]
    %v193 = vld [vmem:[%s0 + $0x30] sm:$0xff]
    %v194 = vld [vmem:[%s0 + $0x38] sm:$0xff]
    %vm195 = vcmask 64512
    %v196 = vsel %vm195, %v187, 0.0
    %v197 = vsel %vm195, %v188, 0.0
    %v198 = vadd.f32 %v196, %v197
    %v199 = vsel %vm195, %v189, 0.0
    %v200 = vadd.f32 %v198, %v199
    %v201 = vsel %vm195, %v190, 0.0
    %v202 = vadd.f32 %v200, %v201
    %v203 = vsel %vm195, %v191, 0.0
    %v204 = vadd.f32 %v202, %v203
    %v205 = vsel %vm195, %v192, 0.0
    %v206 = vadd.f32 %v204, %v205
    %v207 = vsel %vm195, %v193, 0.0
    %v208 = vadd.f32 %v206, %v207
    %v209 = vsel %vm195, %v194, 0.0
    %v210 = vadd.f32 %v208, %v209
    %v211 = vrot.slane %v210, 4
    %v212 = vadd.f32 %v210, %v211
    %v213 = vrot.slane %v212, 2
    %v214 = vadd.f32 %v212, %v213
    %v215 = vrot.slane %v214, 1
    %v216 = vadd.f32 %v214, %v215
    %v217 = vrcp.pop 64.0
    %v218 = vmul.f32 %v216, %v217
    %v219 = vsub.f32 %v187, %v218
    %v220 = vsub.f32 %v188, %v218
    %v221 = vsub.f32 %v189, %v218
    %v222 = vsub.f32 %v190, %v218
    %v223 = vsub.f32 %v191, %v218
    %v224 = vsub.f32 %v192, %v218
    %v225 = vsub.f32 %v193, %v218
    %v226 = vsub.f32 %v194, %v218
    %v227 = vmul.f32 %v219, %v219
    %v228 = vmul.f32 %v220, %v220
    %v229 = vmul.f32 %v221, %v221
    %v230 = vmul.f32 %v222, %v222
    %v231 = vmul.f32 %v223, %v223
    %v232 = vmul.f32 %v224, %v224
    %v233 = vmul.f32 %v225, %v225
    %v234 = vmul.f32 %v226, %v226
    %v235 = vsel %vm195, %v227, 0.0
    %v236 = vsel %vm195, %v228, 0.0
    %v237 = vadd.f32 %v235, %v236
    %v238 = vsel %vm195, %v229, 0.0
    %v239 = vadd.f32 %v237, %v238
    %v240 = vsel %vm195, %v230, 0.0
    %v241 = vadd.f32 %v239, %v240
    %v242 = vsel %vm195, %v231, 0.0
    %v243 = vadd.f32 %v241, %v242
    %v244 = vsel %vm195, %v232, 0.0
    %v245 = vadd.f32 %v243, %v244
    %v246 = vsel %vm195, %v233, 0.0
    %v247 = vadd.f32 %v245, %v246
    %v248 = vsel %vm195, %v234, 0.0
    %v249 = vadd.f32 %v247, %v248
    %v250 = vrot.slane %v249, 4
    %v251 = vadd.f32 %v249, %v250
    %v252 = vrot.slane %v251, 2
    %v253 = vadd.f32 %v251, %v252
    %v254 = vrot.slane %v253, 1
    %v255 = vadd.f32 %v253, %v254
    %v256 = vmul.f32 %v255, %v217
    %v257 = vadd.f32 %v256, 1e-05
    %v258 = vrsqrt.pop %v257
    %v259 = vmul.f32 %v219, %v258
    %v260 = vmul.f32 %v220, %v258
    %v261 = vmul.f32 %v221, %v258
    %v262 = vmul.f32 %v222, %v258
    %v263 = vmul.f32 %v223, %v258
    %v264 = vmul.f32 %v224, %v258
    %v265 = vmul.f32 %v225, %v258
    %v266 = vmul.f32 %v226, %v258
    %v267 = vld [vmem:[%s1] sm:$0x1]
    %v269 = vlaneseq
    %v270 = vshrl.u32 %v269, 7
    %v271 = vsub.s32 0, %v270
    %v272 = vrot.slane %v267, %v271
    %v274 = vmul.f32 %v259, %v272
    %v275 = vmul.f32 %v260, %v272
    %v276 = vmul.f32 %v261, %v272
    %v277 = vmul.f32 %v262, %v272
    %v278 = vmul.f32 %v263, %v272
    %v279 = vmul.f32 %v264, %v272
    %v280 = vmul.f32 %v265, %v272
    %v281 = vmul.f32 %v266, %v272
    %v282 = vld [vmem:[#allocation4] sm:$0x1]
    %v284 = vlaneseq
    %v285 = vshrl.u32 %v284, 7
    %v286 = vsub.s32 0, %v285
    %v287 = vrot.slane %v282, %v286
    %v289 = vadd.f32 %v274, %v287
    %v290 = vadd.f32 %v275, %v287
    %v291 = vadd.f32 %v276, %v287
    %v292 = vadd.f32 %v277, %v287
    %v293 = vadd.f32 %v278, %v287
    %v294 = vadd.f32 %v279, %v287
    %v295 = vadd.f32 %v280, %v287
    %v296 = vadd.f32 %v281, %v287
    %vm297 = vcmp.ge.f32.partialorder %v289, 0.0
    %vm298 = vcmp.ge.f32.partialorder %v290, 0.0
    %vm299 = vcmp.ge.f32.partialorder %v291, 0.0
    %vm300 = vcmp.ge.f32.partialorder %v292, 0.0
    %vm301 = vcmp.ge.f32.partialorder %v293, 0.0
    %vm302 = vcmp.ge.f32.partialorder %v294, 0.0
    %vm303 = vcmp.ge.f32.partialorder %v295, 0.0
    %vm304 = vcmp.ge.f32.partialorder %v296, 0.0
    %v305 = vmul.f32 %v289, 0.01
    %v306 = vmul.f32 %v290, 0.01
    %v307 = vmul.f32 %v291, 0.01
    %v308 = vmul.f32 %v292, 0.01
    %v309 = vmul.f32 %v293, 0.01
    %v310 = vmul.f32 %v294, 0.01
    %v311 = vmul.f32 %v295, 0.01
    %v312 = vmul.f32 %v296, 0.01
    %v313 = vsel %vm297, %v289, %v305
    %v314 = vsel %vm298, %v290, %v306
    %v315 = vsel %vm299, %v291, %v307
    %v316 = vsel %vm300, %v292, %v308
    %v317 = vsel %vm301, %v293, %v309
    %v318 = vsel %vm302, %v294, %v310
    %v319 = vsel %vm303, %v295, %v311
    %v320 = vsel %vm304, %v296, %v312
    %v321 = vpack.c.bf16 %v314, %v313
    %v322 = vpack.c.bf16 %v316, %v315
    %v323 = vpack.c.bf16 %v318, %v317
    %v324 = vpack.c.bf16 %v320, %v319
    %v325 = vld [vmem:[#allocation7] sm:$0xff]
    %v326 = vld [vmem:[#allocation7 + $0x8] sm:$0xf]
    %v327 = vld [vmem:[%s5] sm:$0x7]
    %v329 = vlaneseq
    %v330 = vshrl.u32 %v329, 7
    %v331 = vsub.s32 0, %v330
    %v332 = vrot.slane %v327, %v331
    %v333 = vlaneseq
    %v334 = vshrl.u32 %v333, 7
    %v335 = vsub.s32 1, %v334
    %v336 = vrot.slane %v327, %v335
    %v337 = vlaneseq
    %v338 = vshrl.u32 %v337, 7
    %v339 = vsub.s32 2, %v338
    %v340 = vrot.slane %v327, %v339
    %v346 = vunpack.c.l.b16 %v325
    %v347 = vunpack.c.h.b16 %v325
    %v348 = vunpack.c.l.b16 %v326
    %v349 = vpack.c.b16 %v346, %v346
    %v350 = vpack.c.b16 %v347, %v347
    %v351 = vpack.c.b16 %v348, %v348
    %v353 = vsel %vm195, %v321, 0
    %v356 = vsel %vm195, %v322, 0
    %v359 = vsel %vm195, %v323, 0
    %v362 = vsel %vm195, %v324, 0
    %vm364 = vcmask 1043456
    %v366 = vsel %vm364, %v349, 0
    %v369 = vsel %vm364, %v350, 0
    %v372 = vsel %vm364, %v351, 0
    %374 = vmatprep.subr.bf16.mxu0 %v369
    %375 = vmatpush1.bf16.msra.mxu0 %v366
    %376 = vmatprep.subr.bf16.mxu0 0
    %377 = vmatpush1.bf16.msra.mxu0 0
    %378 = vmatprep.subr.bf16.mxu0 0
    %379 = vmatpush1.bf16.msra.mxu0 0
    %380 = vmatprep.subr.bf16.mxu0 0
    %381 = vmatpush1.bf16.msra.mxu0 0
    %382 = vmatprep.subr.bf16.mxu0 0
    %383 = vmatpush1.bf16.msra.mxu0 0
    %384 = vmatprep.subr.bf16.mxu0 0
    %385 = vmatpush1.bf16.msra.mxu0 0
    %386 = vmatprep.subr.bf16.mxu0 0
    %387 = vmatpush1.bf16.msra.mxu0 0
    %388 = vmatprep.subr.bf16.mxu0 0
    %389 = vmatpush1.bf16.msra.mxu0 0
    %390 = vmatprep.subr.bf16.mxu0 0
    %391 = vmatpush1.bf16.msra.mxu0 0
    %392 = vmatprep.subr.bf16.mxu0 0
    %393 = vmatpush1.bf16.msra.mxu0 0
    %394 = vmatprep.subr.bf16.mxu0 0
    %395 = vmatpush1.bf16.msra.mxu0 0
    %396 = vmatprep.subr.bf16.mxu0 0
    %397 = vmatpush1.bf16.msra.mxu0 0
    %398 = vmatprep.subr.bf16.mxu0 0
    %399 = vmatpush1.bf16.msra.mxu0 0
    %400 = vmatprep.subr.bf16.mxu0 0
    %401 = vmatpush1.bf16.msra.mxu0 0
    %402 = vmatprep.subr.bf16.mxu0 0
    %403 = vmatpush1.bf16.msra.mxu0 0
    %404 = vmatprep.subr.bf16.mxu0 0
    %405 = vmatpush1.bf16.msra.mxu0 0
    %406 = vmatprep.mubr.bf16.mxu0 0
    %407 = vmatmul.mubr.bf16.gmra.mrb[0].mxu0 %v353
    %v408 = vpop.f32.mrb[0].mxu0
    %v409 = vadd.f32 %v332, %v408
    %v410 = vpop.f32.mrb[0].mxu0
    %v411 = vadd.f32 %v336, %v410
    %v412 = vpop.f32.mrb[0].mxu0
    %v413 = vadd.f32 %v332, %v412
    %v414 = vpop.f32.mrb[0].mxu0
    %v415 = vadd.f32 %v336, %v414
    %416 = vmatprep.mubr.bf16.mxu0 0
    %417 = vmatmul.mubr.bf16.gmra.mrb[0].mxu0 %v356
    %v418 = vpop.f32.mrb[0].mxu0
    %v419 = vadd.f32 %v332, %v418
    %v420 = vpop.f32.mrb[0].mxu0
    %v421 = vadd.f32 %v336, %v420
    %v422 = vpop.f32.mrb[0].mxu0
    %v423 = vadd.f32 %v332, %v422
    %v424 = vpop.f32.mrb[0].mxu0
    %v425 = vadd.f32 %v336, %v424
    %426 = vmatprep.mubr.bf16.mxu0 0
    %427 = vmatmul.mubr.bf16.gmra.mrb[0].mxu0 %v359
    %v428 = vpop.f32.mrb[0].mxu0
    %v429 = vadd.f32 %v332, %v428
    %v430 = vpop.f32.mrb[0].mxu0
    %v431 = vadd.f32 %v336, %v430
    %v432 = vpop.f32.mrb[0].mxu0
    %v433 = vadd.f32 %v332, %v432
    %v434 = vpop.f32.mrb[0].mxu0
    %v435 = vadd.f32 %v336, %v434
    %436 = vmatprep.mubr.bf16.mxu0 0
    %437 = vmatmul.mubr.bf16.gmra.mrb[0].mxu0 %v362
    %v438 = vpop.f32.mrb[0].mxu0
    %v439 = vadd.f32 %v332, %v438
    %v440 = vpop.f32.mrb[0].mxu0
    %v441 = vadd.f32 %v336, %v440
    %v442 = vpop.f32.mrb[0].mxu0
    %v443 = vadd.f32 %v332, %v442
    %v444 = vpop.f32.mrb[0].mxu0
    %v445 = vadd.f32 %v336, %v444
    %446 = vdwg.mxu0
    %447 = vmatprep.subr.bf16.mxu0 0
    %448 = vmatpush1.bf16.msra.mxu0 %v372
    %449 = vmatprep.subr.bf16.mxu0 0
    %450 = vmatpush1.bf16.msra.mxu0 0
    %451 = vmatprep.subr.bf16.mxu0 0
    %452 = vmatpush1.bf16.msra.mxu0 0
    %453 = vmatprep.subr.bf16.mxu0 0
    %454 = vmatpush1.bf16.msra.mxu0 0
    %455 = vmatprep.subr.bf16.mxu0 0
    %456 = vmatpush1.bf16.msra.mxu0 0
    %457 = vmatprep.subr.bf16.mxu0 0
    %458 = vmatpush1.bf16.msra.mxu0 0
    %459 = vmatprep.subr.bf16.mxu0 0
    %460 = vmatpush1.bf16.msra.mxu0 0
    %461 = vmatprep.subr.bf16.mxu0 0
    %462 = vmatpush1.bf16.msra.mxu0 0
    %463 = vmatprep.subr.bf16.mxu0 0
    %464 = vmatpush1.bf16.msra.mxu0 0
    %465 = vmatprep.subr.bf16.mxu0 0
    %466 = vmatpush1.bf16.msra.mxu0 0
    %467 = vmatprep.subr.bf16.mxu0 0
    %468 = vmatpush1.bf16.msra.mxu0 0
    %469 = vmatprep.subr.bf16.mxu0 0
    %470 = vmatpush1.bf16.msra.mxu0 0
    %471 = vmatprep.subr.bf16.mxu0 0
    %472 = vmatpush1.bf16.msra.mxu0 0
    %473 = vmatprep.subr.bf16.mxu0 0
    %474 = vmatpush1.bf16.msra.mxu0 0
    %475 = vmatprep.subr.bf16.mxu0 0
    %476 = vmatpush1.bf16.msra.mxu0 0
    %477 = vmatprep.subr.bf16.mxu0 0
    %478 = vmatpush1.bf16.msra.mxu0 0
    %479 = vmatprep.mubr.bf16.mxu0 0
    %480 = vmatmul.mubr.bf16.gmra.mrb[0].mxu0 %v353
    %v481 = vpop.f32.mrb[0].mxu0
    %v482 = vadd.f32 %v340, %v481
    %v483 = vpop.f32.mrb[0].mxu0
    %v484 = vpop.f32.mrb[0].mxu0
    %v485 = vadd.f32 %v340, %v484
    %v486 = vpop.f32.mrb[0].mxu0
    %487 = vmatprep.mubr.bf16.mxu0 0
    %488 = vmatmul.mubr.bf16.gmra.mrb[0].mxu0 %v356
    %v489 = vpop.f32.mrb[0].mxu0
    %v490 = vadd.f32 %v340, %v489
    %v491 = vpop.f32.mrb[0].mxu0
    %v492 = vpop.f32.mrb[0].mxu0
    %v493 = vadd.f32 %v340, %v492
    %v494 = vpop.f32.mrb[0].mxu0
    %495 = vmatprep.mubr.bf16.mxu0 0
    %496 = vmatmul.mubr.bf16.gmra.mrb[0].mxu0 %v359
    %v497 = vpop.f32.mrb[0].mxu0
    %v498 = vadd.f32 %v340, %v497
    %v499 = vpop.f32.mrb[0].mxu0
    %v500 = vpop.f32.mrb[0].mxu0
    %v501 = vadd.f32 %v340, %v500
    %v502 = vpop.f32.mrb[0].mxu0
    %503 = vmatprep.mubr.bf16.mxu0 0
    %504 = vmatmul.mubr.bf16.gmra.mrb[0].mxu0 %v362
    %v505 = vpop.f32.mrb[0].mxu0
    %v506 = vadd.f32 %v340, %v505
    %v507 = vpop.f32.mrb[0].mxu0
    %v508 = vpop.f32.mrb[0].mxu0
    %v509 = vadd.f32 %v340, %v508
    %v510 = vpop.f32.mrb[0].mxu0
    %511 = vdwg.mxu0
    %512 = vst [vmem:[#allocation2] sm:$0xff] %v409
    %513 = vst [vmem:[#allocation2 + $0x8] sm:$0xff] %v411
    %514 = vst [vmem:[#allocation2 + $0x10] sm:$0xff] %v482
    %515 = vst [vmem:[#allocation2 + $0x18] sm:$0xff] %v413
    %516 = vst [vmem:[#allocation2 + $0x20] sm:$0xff] %v415
    %517 = vst [vmem:[#allocation2 + $0x28] sm:$0xff] %v485
    %518 = vst [vmem:[#allocation2 + $0x30] sm:$0xff] %v419
    %519 = vst [vmem:[#allocation2 + $0x38] sm:$0xff] %v421
    %520 = vst [vmem:[#allocation2 + $0x40] sm:$0xff] %v490
    %521 = vst [vmem:[#allocation2 + $0x48] sm:$0xff] %v423
    %522 = vst [vmem:[#allocation2 + $0x50] sm:$0xff] %v425
    %523 = vst [vmem:[#allocation2 + $0x58] sm:$0xff] %v493
    %524 = vst [vmem:[#allocation2 + $0x60] sm:$0xff] %v429
    %525 = vst [vmem:[#allocation2 + $0x68] sm:$0xff] %v431
    %526 = vst [vmem:[#allocation2 + $0x70] sm:$0xff] %v498
    %527 = vst [vmem:[#allocation2 + $0x78] sm:$0xff] %v433
    %528 = vst [vmem:[#allocation2 + $0x80] sm:$0xff] %v435
    %529 = vst [vmem:[#allocation2 + $0x88] sm:$0xff] %v501
    %530 = vst [vmem:[#allocation2 + $0x90] sm:$0xff] %v439
    %531 = vst [vmem:[#allocation2 + $0x98] sm:$0xff] %v441
    %532 = vst [vmem:[#allocation2 + $0xa0] sm:$0xff] %v506
    %533 = vst [vmem:[#allocation2 + $0xa8] sm:$0xff] %v443
    %534 = vst [vmem:[#allocation2 + $0xb0] sm:$0xff] %v445
    %535 = vst [vmem:[#allocation2 + $0xb8] sm:$0xff] %v509
    %v536 = vld [vmem:[#allocation9] sm:$0xff]
    %v537 = vld [vmem:[#allocation9 + $0x8] sm:$0xf]
    %v538 = vld [vmem:[#allocation9 + $0xc] sm:$0xff]
    %v539 = vld [vmem:[#allocation9 + $0x14] sm:$0xf]
    %v540 = vld [vmem:[#allocation9 + $0x18] sm:$0xff]
    %v541 = vld [vmem:[#allocation9 + $0x20] sm:$0xf]
    %v542 = vld [vmem:[#allocation9 + $0x24] sm:$0xff]
    %v543 = vld [vmem:[#allocation9 + $0x2c] sm:$0xf]
    %v544 = vld [vmem:[#allocation9 + $0x30] sm:$0xff]
    %v545 = vld [vmem:[#allocation9 + $0x38] sm:$0xf]
    %v546 = vld [vmem:[#allocation9 + $0x3c] sm:$0xff]
    %v547 = vld [vmem:[#allocation9 + $0x44] sm:$0xf]
    %v548 = vld [vmem:[#allocation9 + $0x48] sm:$0xff]
    %v549 = vld [vmem:[#allocation9 + $0x50] sm:$0xf]
    %v550 = vld [vmem:[#allocation9 + $0x54] sm:$0xff]
    %v551 = vld [vmem:[#allocation9 + $0x5c] sm:$0xf]
    %v552 = vld [vmem:[#allocation9 + $0x60] sm:$0xff]
    %v553 = vld [vmem:[#allocation9 + $0x68] sm:$0xf]
    %v554 = vld [vmem:[#allocation9 + $0x6c] sm:$0xff]
    %v555 = vld [vmem:[#allocation9 + $0x74] sm:$0xf]
    %v556 = vld [vmem:[#allocation9 + $0x78] sm:$0xff]
    %v557 = vld [vmem:[#allocation9 + $0x80] sm:$0xf]
    %v558 = vld [vmem:[#allocation9 + $0x84] sm:$0xff]
    %v559 = vld [vmem:[#allocation9 + $0x8c] sm:$0xf]
    %v560 = vld [vmem:[#allocation9 + $0x90] sm:$0xff]
    %v561 = vld [vmem:[#allocation9 + $0x98] sm:$0xf]
    %v562 = vld [vmem:[#allocation9 + $0x9c] sm:$0xff]
    %v563 = vld [vmem:[#allocation9 + $0xa4] sm:$0xf]
    %v564 = vld [vmem:[#allocation9 + $0xa8] sm:$0xff]
    %v565 = vld [vmem:[#allocation9 + $0xb0] sm:$0xf]
    %v566 = vld [vmem:[#allocation9 + $0xb4] sm:$0xff]
    %v567 = vld [vmem:[#allocation9 + $0xbc] sm:$0xf]
    %v568 = vld [vmem:[#allocation10] sm:$0x1]
    %v569 = vld [vmem:[#allocation2] sm:$0xff]
    %v570 = vld [vmem:[#allocation2 + $0x8] sm:$0xff]
    %v571 = vld [vmem:[#allocation2 + $0x10] sm:$0xff]
    %v572 = vxor.u32 %v569, 2147483648
    %v573 = vxor.u32 %v570, 2147483648
    %v574 = vmul.f32 %v572, 1.442695
    %v575 = vpow.pop %v574
    %v576 = vmul.f32 %v573, 1.442695
    %v577 = vpow.pop %v576
    %v578 = vadd.f32 %v575, 1.0
    %v579 = vadd.f32 %v577, 1.0
    %v580 = vrcp.pop %v578
    %v581 = vmul.f32 1.0, %v580
    %v582 = vrcp.pop %v579
    %v583 = vmul.f32 1.0, %v582
    %v585 = vlaneseq
    %v586 = vshrl.u32 %v585, 7
    %v587 = vsub.s32 0, %v586
    %v588 = vrot.slane %v568, %v587
    %v590 = vmul.f32 %v581, %v588
    %v591 = vadd.f32 %v571, %v590
    %v592 = vtanh.pop %v591
    %v593 = vsub.f32 1.0, %v583
    %v594 = vmul.f32 %v593, %v592
    %595 = vst [vmem:[#allocation3] sm:$0xff] %v594
    %v596 = vld [vmem:[#allocation2 + $0x18] sm:$0xff]
    %v597 = vld [vmem:[#allocation2 + $0x20] sm:$0xff]
    %v598 = vld [vmem:[#allocation2 + $0x28] sm:$0xff]
    %v599 = vpack.c.bf16 %v594, %v594
    %v632 = vunpack.c.l.b16 %v536
    %v633 = vunpack.c.h.b16 %v536
    %v634 = vunpack.c.l.b16 %v537
    %v635 = vunpack.c.l.b16 %v538
    %v636 = vunpack.c.h.b16 %v538
    %v637 = vunpack.c.l.b16 %v539
    %v638 = vunpack.c.l.b16 %v540
    %v639 = vunpack.c.h.b16 %v540
    %v640 = vunpack.c.l.b16 %v541
    %v641 = vunpack.c.l.b16 %v542
    %v642 = vunpack.c.h.b16 %v542
    %v643 = vunpack.c.l.b16 %v543
    %v644 = vunpack.c.l.b16 %v544
    %v645 = vunpack.c.h.b16 %v544
    %v646 = vunpack.c.l.b16 %v545
    %v647 = vunpack.c.l.b16 %v546
    %v648 = vunpack.c.h.b16 %v546
    %v649 = vunpack.c.l.b16 %v547
    %v650 = vunpack.c.l.b16 %v548
    %v651 = vunpack.c.h.b16 %v548
    %v652 = vunpack.c.l.b16 %v549
    %v653 = vunpack.c.l.b16 %v550
    %v654 = vunpack.c.h.b16 %v550
    %v655 = vunpack.c.l.b16 %v551
    %v656 = vunpack.c.l.b16 %v552
    %v657 = vunpack.c.h.b16 %v552
    %v658 = vunpack.c.l.b16 %v553
    %v659 = vunpack.c.l.b16 %v554
    %v660 = vunpack.c.h.b16 %v554
    %v661 = vunpack.c.l.b16 %v555
    %v662 = vunpack.c.l.b16 %v556
    %v663 = vunpack.c.h.b16 %v556
    %v664 = vunpack.c.l.b16 %v557
    %v665 = vunpack.c.l.b16 %v558
    %v666 = vunpack.c.h.b16 %v558
    %v667 = vunpack.c.l.b16 %v559
    %v668 = vunpack.c.l.b16 %v560
    %v669 = vunpack.c.h.b16 %v560
    %v670 = vunpack.c.l.b16 %v561
    %v671 = vunpack.c.l.b16 %v562
    %v672 = vunpack.c.h.b16 %v562
    %v673 = vunpack.c.l.b16 %v563
    %v674 = vunpack.c.l.b16 %v564
    %v675 = vunpack.c.h.b16 %v564
    %v676 = vunpack.c.l.b16 %v565
    %v677 = vunpack.c.l.b16 %v566
    %v678 = vunpack.c.h.b16 %v566
    %v679 = vunpack.c.l.b16 %v567
    %v680 = vpack.c.b16 %v635, %v632
    %v681 = vpack.c.b16 %v636, %v633
    %v682 = vpack.c.b16 %v637, %v634
    %v683 = vpack.c.b16 %v641, %v638
    %v684 = vpack.c.b16 %v642, %v639
    %v685 = vpack.c.b16 %v643, %v640
    %v686 = vpack.c.b16 %v647, %v644
    %v687 = vpack.c.b16 %v648, %v645
    %v688 = vpack.c.b16 %v649, %v646
    %v689 = vpack.c.b16 %v653, %v650
    %v690 = vpack.c.b16 %v654, %v651
    %v691 = vpack.c.b16 %v655, %v652
    %v692 = vpack.c.b16 %v659, %v656
    %v693 = vpack.c.b16 %v660, %v657
    %v694 = vpack.c.b16 %v661, %v658
    %v695 = vpack.c.b16 %v665, %v662
    %v696 = vpack.c.b16 %v666, %v663
    %v697 = vpack.c.b16 %v667, %v664
    %v698 = vpack.c.b16 %v671, %v668
    %v699 = vpack.c.b16 %v672, %v669
    %v700 = vpack.c.b16 %v673, %v670
    %v701 = vpack.c.b16 %v677, %v674
    %v702 = vpack.c.b16 %v678, %v675
    %v703 = vpack.c.b16 %v679, %v676
    %728 = vmatprep.subr.bf16.mxu0 %v681
    %729 = vmatpush1.bf16.msra.mxu0 %v680
    %730 = vmatprep.subr.bf16.mxu0 %v684
    %731 = vmatpush1.bf16.msra.mxu0 %v683
    %732 = vmatprep.subr.bf16.mxu0 %v687
    %733 = vmatpush1.bf16.msra.mxu0 %v686
    %734 = vmatprep.subr.bf16.mxu0 %v690
    %735 = vmatpush1.bf16.msra.mxu0 %v689
    %736 = vmatprep.subr.bf16.mxu0 %v693
    %737 = vmatpush1.bf16.msra.mxu0 %v692
    %738 = vmatprep.subr.bf16.mxu0 %v696
    %739 = vmatpush1.bf16.msra.mxu0 %v695
    %740 = vmatprep.subr.bf16.mxu0 %v699
    %741 = vmatpush1.bf16.msra.mxu0 %v698
    %742 = vmatprep.subr.bf16.mxu0 %v702
    %743 = vmatpush1.bf16.msra.mxu0 %v701
    %744 = vmatprep.subr.bf16.mxu0 0
    %745 = vmatpush1.bf16.msra.mxu0 0
    %746 = vmatprep.subr.bf16.mxu0 0
    %747 = vmatpush1.bf16.msra.mxu0 0
    %748 = vmatprep.subr.bf16.mxu0 0
    %749 = vmatpush1.bf16.msra.mxu0 0
    %750 = vmatprep.subr.bf16.mxu0 0
    %751 = vmatpush1.bf16.msra.mxu0 0
    %752 = vmatprep.subr.bf16.mxu0 0
    %753 = vmatpush1.bf16.msra.mxu0 0
    %754 = vmatprep.subr.bf16.mxu0 0
    %755 = vmatpush1.bf16.msra.mxu0 0
    %756 = vmatprep.subr.bf16.mxu0 0
    %757 = vmatpush1.bf16.msra.mxu0 0
    %758 = vmatprep.subr.bf16.mxu0 0
    %759 = vmatpush1.bf16.msra.mxu0 0
    %760 = vmatprep.mubr.bf16.mxu0 0
    %761 = vmatmul.mubr.bf16.gmra.mrb[0].mxu0 %v599
    %v762 = vpop.f32.mrb[0].mxu0
    %v763 = vadd.f32 0.0, %v762
    %v764 = vpop.f32.mrb[0].mxu0
    %v765 = vadd.f32 0.0, %v764
    %v766 = vpop.f32.mrb[0].mxu0
    %v767 = vpop.f32.mrb[0].mxu0
    %768 = vdwg.mxu0
    %769 = vmatprep.subr.bf16.mxu0 0
    %770 = vmatpush1.bf16.msra.mxu0 %v682
    %771 = vmatprep.subr.bf16.mxu0 0
    %772 = vmatpush1.bf16.msra.mxu0 %v685
    %773 = vmatprep.subr.bf16.mxu0 0
    %774 = vmatpush1.bf16.msra.mxu0 %v688
    %775 = vmatprep.subr.bf16.mxu0 0
    %776 = vmatpush1.bf16.msra.mxu0 %v691
    %777 = vmatprep.subr.bf16.mxu0 0
    %778 = vmatpush1.bf16.msra.mxu0 %v694
    %779 = vmatprep.subr.bf16.mxu0 0
    %780 = vmatpush1.bf16.msra.mxu0 %v697
    %781 = vmatprep.subr.bf16.mxu0 0
    %782 = vmatpush1.bf16.msra.mxu0 %v700
    %783 = vmatprep.subr.bf16.mxu0 0
    %784 = vmatpush1.bf16.msra.mxu0 %v703
    %785 = vmatprep.subr.bf16.mxu0 0
    %786 = vmatpush1.bf16.msra.mxu0 0
    %787 = vmatprep.subr.bf16.mxu0 0
    %788 = vmatpush1.bf16.msra.mxu0 0
    %789 = vmatprep.subr.bf16.mxu0 0
    %790 = vmatpush1.bf16.msra.mxu0 0
    %791 = vmatprep.subr.bf16.mxu0 0
    %792 = vmatpush1.bf16.msra.mxu0 0
    %793 = vmatprep.subr.bf16.mxu0 0
    %794 = vmatpush1.bf16.msra.mxu0 0
    %795 = vmatprep.subr.bf16.mxu0 0
    %796 = vmatpush1.bf16.msra.mxu0 0
    %797 = vmatprep.subr.bf16.mxu0 0
    %798 = vmatpush1.bf16.msra.mxu0 0
    %799 = vmatprep.subr.bf16.mxu0 0
    %800 = vmatpush1.bf16.msra.mxu0 0
    %801 = vmatprep.mubr.bf16.mxu0 0
    %802 = vmatmul.mubr.bf16.gmra.mrb[0].mxu0 %v599
    %v803 = vpop.f32.mrb[0].mxu0
    %v804 = vadd.f32 0.0, %v803
    %v805 = vpop.f32.mrb[0].mxu0
    %v806 = vpop.f32.mrb[0].mxu0
    %v807 = vpop.f32.mrb[0].mxu0
    %808 = vdwg.mxu0
    %v809 = vadd.f32 %v596, %v763
    %v810 = vadd.f32 %v597, %v765
    %v811 = vxor.u32 %v809, 2147483648
    %v812 = vxor.u32 %v810, 2147483648
    %v813 = vmul.f32 %v811, 1.442695
    %v814 = vpow.pop %v813
    %v815 = vmul.f32 %v812, 1.442695
    %v816 = vpow.pop %v815
    %v817 = vadd.f32 %v814, 1.0
    %v818 = vadd.f32 %v816, 1.0
    %v819 = vrcp.pop %v817
    %v820 = vmul.f32 1.0, %v819
    %v821 = vrcp.pop %v818
    %v822 = vmul.f32 1.0, %v821
    %v823 = vadd.f32 %v804, %v588
    %v824 = vmul.f32 %v820, %v823
    %v825 = vadd.f32 %v598, %v824
    %v826 = vtanh.pop %v825
    %v827 = vsub.f32 1.0, %v822
    %v828 = vmul.f32 %v827, %v826
    %v829 = vmul.f32 %v822, %v594
    %v830 = vadd.f32 %v828, %v829
    %831 = vst [vmem:[#allocation3 + $0x8] sm:$0xff] %v830
    %v832 = vld [vmem:[#allocation2 + $0x30] sm:$0xff]
    %v833 = vld [vmem:[#allocation2 + $0x38] sm:$0xff]
    %v834 = vld [vmem:[#allocation2 + $0x40] sm:$0xff]
    %v835 = vpack.c.bf16 %v830, %v830
    %836 = vmatprep.subr.bf16.mxu0 %v681
    %837 = vmatpush1.bf16.msra.mxu0 %v680
    %838 = vmatprep.subr.bf16.mxu0 %v684
    %839 = vmatpush1.bf16.msra.mxu0 %v683
    %840 = vmatprep.subr.bf16.mxu0 %v687
    %841 = vmatpush1.bf16.msra.mxu0 %v686
    %842 = vmatprep.subr.bf16.mxu0 %v690
    %843 = vmatpush1.bf16.msra.mxu0 %v689
    %844 = vmatprep.subr.bf16.mxu0 %v693
    %845 = vmatpush1.bf16.msra.mxu0 %v692
    %846 = vmatprep.subr.bf16.mxu0 %v696
    %847 = vmatpush1.bf16.msra.mxu0 %v695
    %848 = vmatprep.subr.bf16.mxu0 %v699
    %849 = vmatpush1.bf16.msra.mxu0 %v698
    %850 = vmatprep.subr.bf16.mxu0 %v702
    %851 = vmatpush1.bf16.msra.mxu0 %v701
    %852 = vmatprep.subr.bf16.mxu0 0
    %853 = vmatpush1.bf16.msra.mxu0 0
    %854 = vmatprep.subr.bf16.mxu0 0
    %855 = vmatpush1.bf16.msra.mxu0 0
    %856 = vmatprep.subr.bf16.mxu0 0
    %857 = vmatpush1.bf16.msra.mxu0 0
    %858 = vmatprep.subr.bf16.mxu0 0
    %859 = vmatpush1.bf16.msra.mxu0 0
    %860 = vmatprep.subr.bf16.mxu0 0
    %861 = vmatpush1.bf16.msra.mxu0 0
    %862 = vmatprep.subr.bf16.mxu0 0
    %863 = vmatpush1.bf16.msra.mxu0 0
    %864 = vmatprep.subr.bf16.mxu0 0
    %865 = vmatpush1.bf16.msra.mxu0 0
    %866 = vmatprep.subr.bf16.mxu0 0
    %867 = vmatpush1.bf16.msra.mxu0 0
    %868 = vmatprep.mubr.bf16.mxu0 0
    %869 = vmatmul.mubr.bf16.gmra.mrb[0].mxu0 %v835
    %v870 = vpop.f32.mrb[0].mxu0
    %v871 = vadd.f32 0.0, %v870
    %v872 = vpop.f32.mrb[0].mxu0
    %v873 = vadd.f32 0.0, %v872
    %v874 = vpop.f32.mrb[0].mxu0
    %v875 = vpop.f32.mrb[0].mxu0
    %876 = vdwg.mxu0
    %877 = vmatprep.subr.bf16.mxu0 0
    %878 = vmatpush1.bf16.msra.mxu0 %v682
    %879 = vmatprep.subr.bf16.mxu0 0
    %880 = vmatpush1.bf16.msra.mxu0 %v685
    %881 = vmatprep.subr.bf16.mxu0 0
    %882 = vmatpush1.bf16.msra.mxu0 %v688
    %883 = vmatprep.subr.bf16.mxu0 0
    %884 = vmatpush1.bf16.msra.mxu0 %v691
    %885 = vmatprep.subr.bf16.mxu0 0
    %886 = vmatpush1.bf16.msra.mxu0 %v694
    %887 = vmatprep.subr.bf16.mxu0 0
    %888 = vmatpush1.bf16.msra.mxu0 %v697
    %889 = vmatprep.subr.bf16.mxu0 0
    %890 = vmatpush1.bf16.msra.mxu0 %v700
    %891 = vmatprep.subr.bf16.mxu0 0
    %892 = vmatpush1.bf16.msra.mxu0 %v703
    %893 = vmatprep.subr.bf16.mxu0 0
    %894 = vmatpush1.bf16.msra.mxu0 0
    %895 = vmatprep.subr.bf16.mxu0 0
    %896 = vmatpush1.bf16.msra.mxu0 0
    %897 = vmatprep.subr.bf16.mxu0 0
    %898 = vmatpush1.bf16.msra.mxu0 0
    %899 = vmatprep.subr.bf16.mxu0 0
    %900 = vmatpush1.bf16.msra.mxu0 0
    %901 = vmatprep.subr.bf16.mxu0 0
    %902 = vmatpush1.bf16.msra.mxu0 0
    %903 = vmatprep.subr.bf16.mxu0 0
    %904 = vmatpush1.bf16.msra.mxu0 0
    %905 = vmatprep.subr.bf16.mxu0 0
    %906 = vmatpush1.bf16.msra.mxu0 0
    %907 = vmatprep.subr.bf16.mxu0 0
    %908 = vmatpush1.bf16.msra.mxu0 0
    %909 = vmatprep.mubr.bf16.mxu0 0
    %910 = vmatmul.mubr.bf16.gmra.mrb[0].mxu0 %v835
    %v911 = vpop.f32.mrb[0].mxu0
    %v912 = vadd.f32 0.0, %v911
    %v913 = vpop.f32.mrb[0].mxu0
    %v914 = vpop.f32.mrb[0].mxu0
    %v915 = vpop.f32.mrb[0].mxu0
    %916 = vdwg.mxu0
    %v917 = vadd.f32 %v832, %v871
    %v918 = vadd.f32 %v833, %v873
    %v919 = vxor.u32 %v917, 2147483648
    %v920 = vxor.u32 %v918, 2147483648
    %v921 = vmul.f32 %v919, 1.442695
    %v922 = vpow.pop %v921
    %v923 = vmul.f32 %v920, 1.442695
    %v924 = vpow.pop %v923
    %v925 = vadd.f32 %v922, 1.0
    %v926 = vadd.f32 %v924, 1.0
    %v927 = vrcp.pop %v925
    %v928 = vmul.f32 1.0, %v927
    %v929 = vrcp.pop %v926
    %v930 = vmul.f32 1.0, %v929
    %v931 = vadd.f32 %v912, %v588
    %v932 = vmul.f32 %v928, %v931
    %v933 = vadd.f32 %v834, %v932
    %v934 = vtanh.pop %v933
    %v935 = vsub.f32 1.0, %v930
    %v936 = vmul.f32 %v935, %v934
    %v937 = vmul.f32 %v930, %v830
    %v938 = vadd.f32 %v936, %v937
    %939 = vst [vmem:[#allocation3 + $0x10] sm:$0xff] %v938
    %v940 = vld [vmem:[#allocation2 + $0x48] sm:$0xff]
    %v941 = vld [vmem:[#allocation2 + $0x50] sm:$0xff]
    %v942 = vld [vmem:[#allocation2 + $0x58] sm:$0xff]
    %v943 = vpack.c.bf16 %v938, %v938
    %944 = vmatprep.subr.bf16.mxu0 %v681
    %945 = vmatpush1.bf16.msra.mxu0 %v680
    %946 = vmatprep.subr.bf16.mxu0 %v684
    %947 = vmatpush1.bf16.msra.mxu0 %v683
    %948 = vmatprep.subr.bf16.mxu0 %v687
    %949 = vmatpush1.bf16.msra.mxu0 %v686
    %950 = vmatprep.subr.bf16.mxu0 %v690
    %951 = vmatpush1.bf16.msra.mxu0 %v689
    %952 = vmatprep.subr.bf16.mxu0 %v693
    %953 = vmatpush1.bf16.msra.mxu0 %v692
    %954 = vmatprep.subr.bf16.mxu0 %v696
    %955 = vmatpush1.bf16.msra.mxu0 %v695
    %956 = vmatprep.subr.bf16.mxu0 %v699
    %957 = vmatpush1.bf16.msra.mxu0 %v698
    %958 = vmatprep.subr.bf16.mxu0 %v702
    %959 = vmatpush1.bf16.msra.mxu0 %v701
    %960 = vmatprep.subr.bf16.mxu0 0
    %961 = vmatpush1.bf16.msra.mxu0 0
    %962 = vmatprep.subr.bf16.mxu0 0
    %963 = vmatpush1.bf16.msra.mxu0 0
    %964 = vmatprep.subr.bf16.mxu0 0
    %965 = vmatpush1.bf16.msra.mxu0 0
    %966 = vmatprep.subr.bf16.mxu0 0
    %967 = vmatpush1.bf16.msra.mxu0 0
    %968 = vmatprep.subr.bf16.mxu0 0
    %969 = vmatpush1.bf16.msra.mxu0 0
    %970 = vmatprep.subr.bf16.mxu0 0
    %971 = vmatpush1.bf16.msra.mxu0 0
    %972 = vmatprep.subr.bf16.mxu0 0
    %973 = vmatpush1.bf16.msra.mxu0 0
    %974 = vmatprep.subr.bf16.mxu0 0
    %975 = vmatpush1.bf16.msra.mxu0 0
    %976 = vmatprep.mubr.bf16.mxu0 0
    %977 = vmatmul.mubr.bf16.gmra.mrb[0].mxu0 %v943
    %v978 = vpop.f32.mrb[0].mxu0
    %v979 = vadd.f32 0.0, %v978
    %v980 = vpop.f32.mrb[0].mxu0
    %v981 = vadd.f32 0.0, %v980
    %v982 = vpop.f32.mrb[0].mxu0
    %v983 = vpop.f32.mrb[0].mxu0
    %984 = vdwg.mxu0
    %985 = vmatprep.subr.bf16.mxu0 0
    %986 = vmatpush1.bf16.msra.mxu0 %v682
    %987 = vmatprep.subr.bf16.mxu0 0
    %988 = vmatpush1.bf16.msra.mxu0 %v685
    %989 = vmatprep.subr.bf16.mxu0 0
    %990 = vmatpush1.bf16.msra.mxu0 %v688
    %991 = vmatprep.subr.bf16.mxu0 0
    %992 = vmatpush1.bf16.msra.mxu0 %v691
    %993 = vmatprep.subr.bf16.mxu0 0
    %994 = vmatpush1.bf16.msra.mxu0 %v694
    %995 = vmatprep.subr.bf16.mxu0 0
    %996 = vmatpush1.bf16.msra.mxu0 %v697
    %997 = vmatprep.subr.bf16.mxu0 0
    %998 = vmatpush1.bf16.msra.mxu0 %v700
    %999 = vmatprep.subr.bf16.mxu0 0
    %1000 = vmatpush1.bf16.msra.mxu0 %v703
    %1001 = vmatprep.subr.bf16.mxu0 0
    %1002 = vmatpush1.bf16.msra.mxu0 0
    %1003 = vmatprep.subr.bf16.mxu0 0
    %1004 = vmatpush1.bf16.msra.mxu0 0
    %1005 = vmatprep.subr.bf16.mxu0 0
    %1006 = vmatpush1.bf16.msra.mxu0 0
    %1007 = vmatprep.subr.bf16.mxu0 0
    %1008 = vmatpush1.bf16.msra.mxu0 0
    %1009 = vmatprep.subr.bf16.mxu0 0
    %1010 = vmatpush1.bf16.msra.mxu0 0
    %1011 = vmatprep.subr.bf16.mxu0 0
    %1012 = vmatpush1.bf16.msra.mxu0 0
    %1013 = vmatprep.subr.bf16.mxu0 0
    %1014 = vmatpush1.bf16.msra.mxu0 0
    %1015 = vmatprep.subr.bf16.mxu0 0
    %1016 = vmatpush1.bf16.msra.mxu0 0
    %1017 = vmatprep.mubr.bf16.mxu0 0
    %1018 = vmatmul.mubr.bf16.gmra.mrb[0].mxu0 %v943
    %v1019 = vpop.f32.mrb[0].mxu0
    %v1020 = vadd.f32 0.0, %v1019
    %v1021 = vpop.f32.mrb[0].mxu0
    %v1022 = vpop.f32.mrb[0].mxu0
    %v1023 = vpop.f32.mrb[0].mxu0
    %1024 = vdwg.mxu0
    %v1025 = vadd.f32 %v940, %v979
    %v1026 = vadd.f32 %v941, %v981
    %v1027 = vxor.u32 %v1025, 2147483648
    %v1028 = vxor.u32 %v1026, 2147483648
    %v1029 = vmul.f32 %v1027, 1.442695
    %v1030 = vpow.pop %v1029
    %v1031 = vmul.f32 %v1028, 1.442695
    %v1032 = vpow.pop %v1031
    %v1033 = vadd.f32 %v1030, 1.0
    %v1034 = vadd.f32 %v1032, 1.0
    %v1035 = vrcp.pop %v1033
    %v1036 = vmul.f32 1.0, %v1035
    %v1037 = vrcp.pop %v1034
    %v1038 = vmul.f32 1.0, %v1037
    %v1039 = vadd.f32 %v1020, %v588
    %v1040 = vmul.f32 %v1036, %v1039
    %v1041 = vadd.f32 %v942, %v1040
    %v1042 = vtanh.pop %v1041
    %v1043 = vsub.f32 1.0, %v1038
    %v1044 = vmul.f32 %v1043, %v1042
    %v1045 = vmul.f32 %v1038, %v938
    %v1046 = vadd.f32 %v1044, %v1045
    %1047 = vst [vmem:[#allocation3 + $0x18] sm:$0xff] %v1046
    %v1048 = vld [vmem:[#allocation2 + $0x60] sm:$0xff]
    %v1049 = vld [vmem:[#allocation2 + $0x68] sm:$0xff]
    %v1050 = vld [vmem:[#allocation2 + $0x70] sm:$0xff]
    %v1051 = vpack.c.bf16 %v1046, %v1046
    %1052 = vmatprep.subr.bf16.mxu0 %v681
    %1053 = vmatpush1.bf16.msra.mxu0 %v680
    %1054 = vmatprep.subr.bf16.mxu0 %v684
    %1055 = vmatpush1.bf16.msra.mxu0 %v683
    %1056 = vmatprep.subr.bf16.mxu0 %v687
    %1057 = vmatpush1.bf16.msra.mxu0 %v686
    %1058 = vmatprep.subr.bf16.mxu0 %v690
    %1059 = vmatpush1.bf16.msra.mxu0 %v689
    %1060 = vmatprep.subr.bf16.mxu0 %v693
    %1061 = vmatpush1.bf16.msra.mxu0 %v692
    %1062 = vmatprep.subr.bf16.mxu0 %v696
    %1063 = vmatpush1.bf16.msra.mxu0 %v695
    %1064 = vmatprep.subr.bf16.mxu0 %v699
    %1065 = vmatpush1.bf16.msra.mxu0 %v698
    %1066 = vmatprep.subr.bf16.mxu0 %v702
    %1067 = vmatpush1.bf16.msra.mxu0 %v701
    %1068 = vmatprep.subr.bf16.mxu0 0
    %1069 = vmatpush1.bf16.msra.mxu0 0
    %1070 = vmatprep.subr.bf16.mxu0 0
    %1071 = vmatpush1.bf16.msra.mxu0 0
    %1072 = vmatprep.subr.bf16.mxu0 0
    %1073 = vmatpush1.bf16.msra.mxu0 0
    %1074 = vmatprep.subr.bf16.mxu0 0
    %1075 = vmatpush1.bf16.msra.mxu0 0
    %1076 = vmatprep.subr.bf16.mxu0 0
    %1077 = vmatpush1.bf16.msra.mxu0 0
    %1078 = vmatprep.subr.bf16.mxu0 0
    %1079 = vmatpush1.bf16.msra.mxu0 0
    %1080 = vmatprep.subr.bf16.mxu0 0
    %1081 = vmatpush1.bf16.msra.mxu0 0
    %1082 = vmatprep.subr.bf16.mxu0 0
    %1083 = vmatpush1.bf16.msra.mxu0 0
    %1084 = vmatprep.mubr.bf16.mxu0 0
    %1085 = vmatmul.mubr.bf16.gmra.mrb[0].mxu0 %v1051
    %v1086 = vpop.f32.mrb[0].mxu0
    %v1087 = vadd.f32 0.0, %v1086
    %v1088 = vpop.f32.mrb[0].mxu0
    %v1089 = vadd.f32 0.0, %v1088
    %v1090 = vpop.f32.mrb[0].mxu0
    %v1091 = vpop.f32.mrb[0].mxu0
    %1092 = vdwg.mxu0
    %1093 = vmatprep.subr.bf16.mxu0 0
    %1094 = vmatpush1.bf16.msra.mxu0 %v682
    %1095 = vmatprep.subr.bf16.mxu0 0
    %1096 = vmatpush1.bf16.msra.mxu0 %v685
    %1097 = vmatprep.subr.bf16.mxu0 0
    %1098 = vmatpush1.bf16.msra.mxu0 %v688
    %1099 = vmatprep.subr.bf16.mxu0 0
    %1100 = vmatpush1.bf16.msra.mxu0 %v691
    %1101 = vmatprep.subr.bf16.mxu0 0
    %1102 = vmatpush1.bf16.msra.mxu0 %v694
    %1103 = vmatprep.subr.bf16.mxu0 0
    %1104 = vmatpush1.bf16.msra.mxu0 %v697
    %1105 = vmatprep.subr.bf16.mxu0 0
    %1106 = vmatpush1.bf16.msra.mxu0 %v700
    %1107 = vmatprep.subr.bf16.mxu0 0
    %1108 = vmatpush1.bf16.msra.mxu0 %v703
    %1109 = vmatprep.subr.bf16.mxu0 0
    %1110 = vmatpush1.bf16.msra.mxu0 0
    %1111 = vmatprep.subr.bf16.mxu0 0
    %1112 = vmatpush1.bf16.msra.mxu0 0
    %1113 = vmatprep.subr.bf16.mxu0 0
    %1114 = vmatpush1.bf16.msra.mxu0 0
    %1115 = vmatprep.subr.bf16.mxu0 0
    %1116 = vmatpush1.bf16.msra.mxu0 0
    %1117 = vmatprep.subr.bf16.mxu0 0
    %1118 = vmatpush1.bf16.msra.mxu0 0
    %1119 = vmatprep.subr.bf16.mxu0 0
    %1120 = vmatpush1.bf16.msra.mxu0 0
    %1121 = vmatprep.subr.bf16.mxu0 0
    %1122 = vmatpush1.bf16.msra.mxu0 0
    %1123 = vmatprep.subr.bf16.mxu0 0
    %1124 = vmatpush1.bf16.msra.mxu0 0
    %1125 = vmatprep.mubr.bf16.mxu0 0
    %1126 = vmatmul.mubr.bf16.gmra.mrb[0].mxu0 %v1051
    %v1127 = vpop.f32.mrb[0].mxu0
    %v1128 = vadd.f32 0.0, %v1127
    %v1129 = vpop.f32.mrb[0].mxu0
    %v1130 = vpop.f32.mrb[0].mxu0
    %v1131 = vpop.f32.mrb[0].mxu0
    %1132 = vdwg.mxu0
    %v1133 = vadd.f32 %v1048, %v1087
    %v1134 = vadd.f32 %v1049, %v1089
    %v1135 = vxor.u32 %v1133, 2147483648
    %v1136 = vxor.u32 %v1134, 2147483648
    %v1137 = vmul.f32 %v1135, 1.442695
    %v1138 = vpow.pop %v1137
    %v1139 = vmul.f32 %v1136, 1.442695
    %v1140 = vpow.pop %v1139
    %v1141 = vadd.f32 %v1138, 1.0
    %v1142 = vadd.f32 %v1140, 1.0
    %v1143 = vrcp.pop %v1141
    %v1144 = vmul.f32 1.0, %v1143
    %v1145 = vrcp.pop %v1142
    %v1146 = vmul.f32 1.0, %v1145
    %v1147 = vadd.f32 %v1128, %v588
    %v1148 = vmul.f32 %v1144, %v1147
    %v1149 = vadd.f32 %v1050, %v1148
    %v1150 = vtanh.pop %v1149
    %v1151 = vsub.f32 1.0, %v1146
    %v1152 = vmul.f32 %v1151, %v1150
    %v1153 = vmul.f32 %v1146, %v1046
    %v1154 = vadd.f32 %v1152, %v1153
    %1155 = vst [vmem:[#allocation3 + $0x20] sm:$0xff] %v1154
    %v1156 = vld [vmem:[#allocation2 + $0x78] sm:$0xff]
    %v1157 = vld [vmem:[#allocation2 + $0x80] sm:$0xff]
    %v1158 = vld [vmem:[#allocation2 + $0x88] sm:$0xff]
    %v1159 = vpack.c.bf16 %v1154, %v1154
    %1160 = vmatprep.subr.bf16.mxu0 %v681
    %1161 = vmatpush1.bf16.msra.mxu0 %v680
    %1162 = vmatprep.subr.bf16.mxu0 %v684
    %1163 = vmatpush1.bf16.msra.mxu0 %v683
    %1164 = vmatprep.subr.bf16.mxu0 %v687
    %1165 = vmatpush1.bf16.msra.mxu0 %v686
    %1166 = vmatprep.subr.bf16.mxu0 %v690
    %1167 = vmatpush1.bf16.msra.mxu0 %v689
    %1168 = vmatprep.subr.bf16.mxu0 %v693
    %1169 = vmatpush1.bf16.msra.mxu0 %v692
    %1170 = vmatprep.subr.bf16.mxu0 %v696
    %1171 = vmatpush1.bf16.msra.mxu0 %v695
    %1172 = vmatprep.subr.bf16.mxu0 %v699
    %1173 = vmatpush1.bf16.msra.mxu0 %v698
    %1174 = vmatprep.subr.bf16.mxu0 %v702
    %1175 = vmatpush1.bf16.msra.mxu0 %v701
    %1176 = vmatprep.subr.bf16.mxu0 0
    %1177 = vmatpush1.bf16.msra.mxu0 0
    %1178 = vmatprep.subr.bf16.mxu0 0
    %1179 = vmatpush1.bf16.msra.mxu0 0
    %1180 = vmatprep.subr.bf16.mxu0 0
    %1181 = vmatpush1.bf16.msra.mxu0 0
    %1182 = vmatprep.subr.bf16.mxu0 0
    %1183 = vmatpush1.bf16.msra.mxu0 0
    %1184 = vmatprep.subr.bf16.mxu0 0
    %1185 = vmatpush1.bf16.msra.mxu0 0
    %1186 = vmatprep.subr.bf16.mxu0 0
    %1187 = vmatpush1.bf16.msra.mxu0 0
    %1188 = vmatprep.subr.bf16.mxu0 0
    %1189 = vmatpush1.bf16.msra.mxu0 0
    %1190 = vmatprep.subr.bf16.mxu0 0
    %1191 = vmatpush1.bf16.msra.mxu0 0
    %1192 = vmatprep.mubr.bf16.mxu0 0
    %1193 = vmatmul.mubr.bf16.gmra.mrb[0].mxu0 %v1159
    %v1194 = vpop.f32.mrb[0].mxu0
    %v1195 = vadd.f32 0.0, %v1194
    %v1196 = vpop.f32.mrb[0].mxu0
    %v1197 = vadd.f32 0.0, %v1196
    %v1198 = vpop.f32.mrb[0].mxu0
    %v1199 = vpop.f32.mrb[0].mxu0
    %1200 = vdwg.mxu0
    %1201 = vmatprep.subr.bf16.mxu0 0
    %1202 = vmatpush1.bf16.msra.mxu0 %v682
    %1203 = vmatprep.subr.bf16.mxu0 0
    %1204 = vmatpush1.bf16.msra.mxu0 %v685
    %1205 = vmatprep.subr.bf16.mxu0 0
    %1206 = vmatpush1.bf16.msra.mxu0 %v688
    %1207 = vmatprep.subr.bf16.mxu0 0
    %1208 = vmatpush1.bf16.msra.mxu0 %v691
    %1209 = vmatprep.subr.bf16.mxu0 0
    %1210 = vmatpush1.bf16.msra.mxu0 %v694
    %1211 = vmatprep.subr.bf16.mxu0 0
    %1212 = vmatpush1.bf16.msra.mxu0 %v697
    %1213 = vmatprep.subr.bf16.mxu0 0
    %1214 = vmatpush1.bf16.msra.mxu0 %v700
    %1215 = vmatprep.subr.bf16.mxu0 0
    %1216 = vmatpush1.bf16.msra.mxu0 %v703
    %1217 = vmatprep.subr.bf16.mxu0 0
    %1218 = vmatpush1.bf16.msra.mxu0 0
    %1219 = vmatprep.subr.bf16.mxu0 0
    %1220 = vmatpush1.bf16.msra.mxu0 0
    %1221 = vmatprep.subr.bf16.mxu0 0
    %1222 = vmatpush1.bf16.msra.mxu0 0
    %1223 = vmatprep.subr.bf16.mxu0 0
    %1224 = vmatpush1.bf16.msra.mxu0 0
    %1225 = vmatprep.subr.bf16.mxu0 0
    %1226 = vmatpush1.bf16.msra.mxu0 0
    %1227 = vmatprep.subr.bf16.mxu0 0
    %1228 = vmatpush1.bf16.msra.mxu0 0
    %1229 = vmatprep.subr.bf16.mxu0 0
    %1230 = vmatpush1.bf16.msra.mxu0 0
    %1231 = vmatprep.subr.bf16.mxu0 0
    %1232 = vmatpush1.bf16.msra.mxu0 0
    %1233 = vmatprep.mubr.bf16.mxu0 0
    %1234 = vmatmul.mubr.bf16.gmra.mrb[0].mxu0 %v1159
    %v1235 = vpop.f32.mrb[0].mxu0
    %v1236 = vadd.f32 0.0, %v1235
    %v1237 = vpop.f32.mrb[0].mxu0
    %v1238 = vpop.f32.mrb[0].mxu0
    %v1239 = vpop.f32.mrb[0].mxu0
    %1240 = vdwg.mxu0
    %v1241 = vadd.f32 %v1156, %v1195
    %v1242 = vadd.f32 %v1157, %v1197
    %v1243 = vxor.u32 %v1241, 2147483648
    %v1244 = vxor.u32 %v1242, 2147483648
    %v1245 = vmul.f32 %v1243, 1.442695
    %v1246 = vpow.pop %v1245
    %v1247 = vmul.f32 %v1244, 1.442695
    %v1248 = vpow.pop %v1247
    %v1249 = vadd.f32 %v1246, 1.0
    %v1250 = vadd.f32 %v1248, 1.0
    %v1251 = vrcp.pop %v1249
    %v1252 = vmul.f32 1.0, %v1251
    %v1253 = vrcp.pop %v1250
    %v1254 = vmul.f32 1.0, %v1253
    %v1255 = vadd.f32 %v1236, %v588
    %v1256 = vmul.f32 %v1252, %v1255
    %v1257 = vadd.f32 %v1158, %v1256
    %v1258 = vtanh.pop %v1257
    %v1259 = vsub.f32 1.0, %v1254
    %v1260 = vmul.f32 %v1259, %v1258
    %v1261 = vmul.f32 %v1254, %v1154
    %v1262 = vadd.f32 %v1260, %v1261
    %1263 = vst [vmem:[#allocation3 + $0x28] sm:$0xff] %v1262
    %v1264 = vld [vmem:[#allocation2 + $0x90] sm:$0xff]
    %v1265 = vld [vmem:[#allocation2 + $0x98] sm:$0xff]
    %v1266 = vld [vmem:[#allocation2 + $0xa0] sm:$0xff]
    %v1267 = vpack.c.bf16 %v1262, %v1262
    %1268 = vmatprep.subr.bf16.mxu0 %v681
    %1269 = vmatpush1.bf16.msra.mxu0 %v680
    %1270 = vmatprep.subr.bf16.mxu0 %v684
    %1271 = vmatpush1.bf16.msra.mxu0 %v683
    %1272 = vmatprep.subr.bf16.mxu0 %v687
    %1273 = vmatpush1.bf16.msra.mxu0 %v686
    %1274 = vmatprep.subr.bf16.mxu0 %v690
    %1275 = vmatpush1.bf16.msra.mxu0 %v689
    %1276 = vmatprep.subr.bf16.mxu0 %v693
    %1277 = vmatpush1.bf16.msra.mxu0 %v692
    %1278 = vmatprep.subr.bf16.mxu0 %v696
    %1279 = vmatpush1.bf16.msra.mxu0 %v695
    %1280 = vmatprep.subr.bf16.mxu0 %v699
    %1281 = vmatpush1.bf16.msra.mxu0 %v698
    %1282 = vmatprep.subr.bf16.mxu0 %v702
    %1283 = vmatpush1.bf16.msra.mxu0 %v701
    %1284 = vmatprep.subr.bf16.mxu0 0
    %1285 = vmatpush1.bf16.msra.mxu0 0
    %1286 = vmatprep.subr.bf16.mxu0 0
    %1287 = vmatpush1.bf16.msra.mxu0 0
    %1288 = vmatprep.subr.bf16.mxu0 0
    %1289 = vmatpush1.bf16.msra.mxu0 0
    %1290 = vmatprep.subr.bf16.mxu0 0
    %1291 = vmatpush1.bf16.msra.mxu0 0
    %1292 = vmatprep.subr.bf16.mxu0 0
    %1293 = vmatpush1.bf16.msra.mxu0 0
    %1294 = vmatprep.subr.bf16.mxu0 0
    %1295 = vmatpush1.bf16.msra.mxu0 0
    %1296 = vmatprep.subr.bf16.mxu0 0
    %1297 = vmatpush1.bf16.msra.mxu0 0
    %1298 = vmatprep.subr.bf16.mxu0 0
    %1299 = vmatpush1.bf16.msra.mxu0 0
    %1300 = vmatprep.mubr.bf16.mxu0 0
    %1301 = vmatmul.mubr.bf16.gmra.mrb[0].mxu0 %v1267
    %v1302 = vpop.f32.mrb[0].mxu0
    %v1303 = vadd.f32 0.0, %v1302
    %v1304 = vpop.f32.mrb[0].mxu0
    %v1305 = vadd.f32 0.0, %v1304
    %v1306 = vpop.f32.mrb[0].mxu0
    %v1307 = vpop.f32.mrb[0].mxu0
    %1308 = vdwg.mxu0
    %1309 = vmatprep.subr.bf16.mxu0 0
    %1310 = vmatpush1.bf16.msra.mxu0 %v682
    %1311 = vmatprep.subr.bf16.mxu0 0
    %1312 = vmatpush1.bf16.msra.mxu0 %v685
    %1313 = vmatprep.subr.bf16.mxu0 0
    %1314 = vmatpush1.bf16.msra.mxu0 %v688
    %1315 = vmatprep.subr.bf16.mxu0 0
    %1316 = vmatpush1.bf16.msra.mxu0 %v691
    %1317 = vmatprep.subr.bf16.mxu0 0
    %1318 = vmatpush1.bf16.msra.mxu0 %v694
    %1319 = vmatprep.subr.bf16.mxu0 0
    %1320 = vmatpush1.bf16.msra.mxu0 %v697
    %1321 = vmatprep.subr.bf16.mxu0 0
    %1322 = vmatpush1.bf16.msra.mxu0 %v700
    %1323 = vmatprep.subr.bf16.mxu0 0
    %1324 = vmatpush1.bf16.msra.mxu0 %v703
    %1325 = vmatprep.subr.bf16.mxu0 0
    %1326 = vmatpush1.bf16.msra.mxu0 0
    %1327 = vmatprep.subr.bf16.mxu0 0
    %1328 = vmatpush1.bf16.msra.mxu0 0
    %1329 = vmatprep.subr.bf16.mxu0 0
    %1330 = vmatpush1.bf16.msra.mxu0 0
    %1331 = vmatprep.subr.bf16.mxu0 0
    %1332 = vmatpush1.bf16.msra.mxu0 0
    %1333 = vmatprep.subr.bf16.mxu0 0
    %1334 = vmatpush1.bf16.msra.mxu0 0
    %1335 = vmatprep.subr.bf16.mxu0 0
    %1336 = vmatpush1.bf16.msra.mxu0 0
    %1337 = vmatprep.subr.bf16.mxu0 0
    %1338 = vmatpush1.bf16.msra.mxu0 0
    %1339 = vmatprep.subr.bf16.mxu0 0
    %1340 = vmatpush1.bf16.msra.mxu0 0
    %1341 = vmatprep.mubr.bf16.mxu0 0
    %1342 = vmatmul.mubr.bf16.gmra.mrb[0].mxu0 %v1267
    %v1343 = vpop.f32.mrb[0].mxu0
    %v1344 = vadd.f32 0.0, %v1343
    %v1345 = vpop.f32.mrb[0].mxu0
    %v1346 = vpop.f32.mrb[0].mxu0
    %v1347 = vpop.f32.mrb[0].mxu0
    %1348 = vdwg.mxu0
    %v1349 = vadd.f32 %v1264, %v1303
    %v1350 = vadd.f32 %v1265, %v1305
    %v1351 = vxor.u32 %v1349, 2147483648
    %v1352 = vxor.u32 %v1350, 2147483648
    %v1353 = vmul.f32 %v1351, 1.442695
    %v1354 = vpow.pop %v1353
    %v1355 = vmul.f32 %v1352, 1.442695
    %v1356 = vpow.pop %v1355
    %v1357 = vadd.f32 %v1354, 1.0
    %v1358 = vadd.f32 %v1356, 1.0
    %v1359 = vrcp.pop %v1357
    %v1360 = vmul.f32 1.0, %v1359
    %v1361 = vrcp.pop %v1358
    %v1362 = vmul.f32 1.0, %v1361
    %v1363 = vadd.f32 %v1344, %v588
    %v1364 = vmul.f32 %v1360, %v1363
    %v1365 = vadd.f32 %v1266, %v1364
    %v1366 = vtanh.pop %v1365
    %v1367 = vsub.f32 1.0, %v1362
    %v1368 = vmul.f32 %v1367, %v1366
    %v1369 = vmul.f32 %v1362, %v1262
    %v1370 = vadd.f32 %v1368, %v1369
    %1371 = vst [vmem:[#allocation3 + $0x30] sm:$0xff] %v1370
    %v1372 = vld [vmem:[#allocation2 + $0xa8] sm:$0xff]
    %v1373 = vld [vmem:[#allocation2 + $0xb0] sm:$0xff]
    %v1374 = vld [vmem:[#allocation2 + $0xb8] sm:$0xff]
    %v1375 = vpack.c.bf16 %v1370, %v1370
    %1376 = vmatprep.subr.bf16.mxu0 %v681
    %1377 = vmatpush1.bf16.msra.mxu0 %v680
    %1378 = vmatprep.subr.bf16.mxu0 %v684
    %1379 = vmatpush1.bf16.msra.mxu0 %v683
    %1380 = vmatprep.subr.bf16.mxu0 %v687
    %1381 = vmatpush1.bf16.msra.mxu0 %v686
    %1382 = vmatprep.subr.bf16.mxu0 %v690
    %1383 = vmatpush1.bf16.msra.mxu0 %v689
    %1384 = vmatprep.subr.bf16.mxu0 %v693
    %1385 = vmatpush1.bf16.msra.mxu0 %v692
    %1386 = vmatprep.subr.bf16.mxu0 %v696
    %1387 = vmatpush1.bf16.msra.mxu0 %v695
    %1388 = vmatprep.subr.bf16.mxu0 %v699
    %1389 = vmatpush1.bf16.msra.mxu0 %v698
    %1390 = vmatprep.subr.bf16.mxu0 %v702
    %1391 = vmatpush1.bf16.msra.mxu0 %v701
    %1392 = vmatprep.subr.bf16.mxu0 0
    %1393 = vmatpush1.bf16.msra.mxu0 0
    %1394 = vmatprep.subr.bf16.mxu0 0
    %1395 = vmatpush1.bf16.msra.mxu0 0
    %1396 = vmatprep.subr.bf16.mxu0 0
    %1397 = vmatpush1.bf16.msra.mxu0 0
    %1398 = vmatprep.subr.bf16.mxu0 0
    %1399 = vmatpush1.bf16.msra.mxu0 0
    %1400 = vmatprep.subr.bf16.mxu0 0
    %1401 = vmatpush1.bf16.msra.mxu0 0
    %1402 = vmatprep.subr.bf16.mxu0 0
    %1403 = vmatpush1.bf16.msra.mxu0 0
    %1404 = vmatprep.subr.bf16.mxu0 0
    %1405 = vmatpush1.bf16.msra.mxu0 0
    %1406 = vmatprep.subr.bf16.mxu0 0
    %1407 = vmatpush1.bf16.msra.mxu0 0
    %1408 = vmatprep.mubr.bf16.mxu0 0
    %1409 = vmatmul.mubr.bf16.gmra.mrb[0].mxu0 %v1375
    %v1410 = vpop.f32.mrb[0].mxu0
    %v1411 = vadd.f32 0.0, %v1410
    %v1412 = vpop.f32.mrb[0].mxu0
    %v1413 = vadd.f32 0.0, %v1412
    %v1414 = vpop.f32.mrb[0].mxu0
    %v1415 = vpop.f32.mrb[0].mxu0
    %1416 = vdwg.mxu0
    %1417 = vmatprep.subr.bf16.mxu0 0
    %1418 = vmatpush1.bf16.msra.mxu0 %v682
    %1419 = vmatprep.subr.bf16.mxu0 0
    %1420 = vmatpush1.bf16.msra.mxu0 %v685
    %1421 = vmatprep.subr.bf16.mxu0 0
    %1422 = vmatpush1.bf16.msra.mxu0 %v688
    %1423 = vmatprep.subr.bf16.mxu0 0
    %1424 = vmatpush1.bf16.msra.mxu0 %v691
    %1425 = vmatprep.subr.bf16.mxu0 0
    %1426 = vmatpush1.bf16.msra.mxu0 %v694
    %1427 = vmatprep.subr.bf16.mxu0 0
    %1428 = vmatpush1.bf16.msra.mxu0 %v697
    %1429 = vmatprep.subr.bf16.mxu0 0
    %1430 = vmatpush1.bf16.msra.mxu0 %v700
    %1431 = vmatprep.subr.bf16.mxu0 0
    %1432 = vmatpush1.bf16.msra.mxu0 %v703
    %1433 = vmatprep.subr.bf16.mxu0 0
    %1434 = vmatpush1.bf16.msra.mxu0 0
    %1435 = vmatprep.subr.bf16.mxu0 0
    %1436 = vmatpush1.bf16.msra.mxu0 0
    %1437 = vmatprep.subr.bf16.mxu0 0
    %1438 = vmatpush1.bf16.msra.mxu0 0
    %1439 = vmatprep.subr.bf16.mxu0 0
    %1440 = vmatpush1.bf16.msra.mxu0 0
    %1441 = vmatprep.subr.bf16.mxu0 0
    %1442 = vmatpush1.bf16.msra.mxu0 0
    %1443 = vmatprep.subr.bf16.mxu0 0
    %1444 = vmatpush1.bf16.msra.mxu0 0
    %1445 = vmatprep.subr.bf16.mxu0 0
    %1446 = vmatpush1.bf16.msra.mxu0 0
    %1447 = vmatprep.subr.bf16.mxu0 0
    %1448 = vmatpush1.bf16.msra.mxu0 0
    %1449 = vmatprep.mubr.bf16.mxu0 0
    %1450 = vmatmul.mubr.bf16.gmra.mrb[0].mxu0 %v1375
    %v1451 = vpop.f32.mrb[0].mxu0
    %v1452 = vadd.f32 0.0, %v1451
    %v1453 = vpop.f32.mrb[0].mxu0
    %v1454 = vpop.f32.mrb[0].mxu0
    %v1455 = vpop.f32.mrb[0].mxu0
    %1456 = vdwg.mxu0
    %v1457 = vadd.f32 %v1372, %v1411
    %v1458 = vadd.f32 %v1373, %v1413
    %v1459 = vxor.u32 %v1457, 2147483648
    %v1460 = vxor.u32 %v1458, 2147483648
    %v1461 = vmul.f32 %v1459, 1.442695
    %v1462 = vpow.pop %v1461
    %v1463 = vmul.f32 %v1460, 1.442695
    %v1464 = vpow.pop %v1463
    %v1465 = vadd.f32 %v1462, 1.0
    %v1466 = vadd.f32 %v1464, 1.0
    %v1467 = vrcp.pop %v1465
    %v1468 = vmul.f32 1.0, %v1467
    %v1469 = vrcp.pop %v1466
    %v1470 = vmul.f32 1.0, %v1469
    %v1471 = vadd.f32 %v1452, %v588
    %v1472 = vmul.f32 %v1468, %v1471
    %v1473 = vadd.f32 %v1374, %v1472
    %v1474 = vtanh.pop %v1473
    %v1475 = vsub.f32 1.0, %v1470
    %v1476 = vmul.f32 %v1475, %v1474
    %v1477 = vmul.f32 %v1470, %v1370
    %v1478 = vadd.f32 %v1476, %v1477
    %1479 = vst [vmem:[#allocation3 + $0x38] sm:$0xff] %v1478
    %v1480 = vld [vmem:[#allocation3] sm:$0xff]
    %v1481 = vld [vmem:[#allocation3 + $0x8] sm:$0xff]
    %v1482 = vld [vmem:[#allocation3 + $0x10] sm:$0xff]
    %v1483 = vld [vmem:[#allocation3 + $0x18] sm:$0xff]
    %v1484 = vld [vmem:[#allocation3 + $0x20] sm:$0xff]
    %v1485 = vld [vmem:[#allocation3 + $0x28] sm:$0xff]
    %v1486 = vld [vmem:[#allocation3 + $0x30] sm:$0xff]
    %v1487 = vld [vmem:[#allocation3 + $0x38] sm:$0xff]
    %v1488 = vpack.c.bf16 %v1481, %v1480
    %v1489 = vpack.c.bf16 %v1483, %v1482
    %v1490 = vpack.c.bf16 %v1485, %v1484
    %v1491 = vpack.c.bf16 %v1487, %v1486
    %v1492 = vld [vmem:[#allocation12] sm:$0xff]
    %v1493 = vld [vmem:[#allocation12 + $0x8] sm:$0xf]
    %v1494 = vld [vmem:[#allocation12 + $0xc] sm:$0xff]
    %v1495 = vld [vmem:[#allocation12 + $0x14] sm:$0xf]
    %v1496 = vld [vmem:[#allocation12 + $0x18] sm:$0xff]
    %v1497 = vld [vmem:[#allocation12 + $0x20] sm:$0xf]
    %v1498 = vld [vmem:[#allocation12 + $0x24] sm:$0xff]
    %v1499 = vld [vmem:[#allocation12 + $0x2c] sm:$0xf]
    %v1500 = vld [vmem:[#allocation12 + $0x30] sm:$0xff]
    %v1501 = vld [vmem:[#allocation12 + $0x38] sm:$0xf]
    %v1502 = vld [vmem:[#allocation12 + $0x3c] sm:$0xff]
    %v1503 = vld [vmem:[#allocation12 + $0x44] sm:$0xf]
    %v1504 = vld [vmem:[#allocation12 + $0x48] sm:$0xff]
    %v1505 = vld [vmem:[#allocation12 + $0x50] sm:$0xf]
    %v1506 = vld [vmem:[#allocation12 + $0x54] sm:$0xff]
    %v1507 = vld [vmem:[#allocation12 + $0x5c] sm:$0xf]
    %v1508 = vld [vmem:[#allocation12 + $0x60] sm:$0xff]
    %v1509 = vld [vmem:[#allocation12 + $0x68] sm:$0xf]
    %v1510 = vld [vmem:[#allocation12 + $0x6c] sm:$0xff]
    %v1511 = vld [vmem:[#allocation12 + $0x74] sm:$0xf]
    %v1512 = vld [vmem:[#allocation12 + $0x78] sm:$0xff]
    %v1513 = vld [vmem:[#allocation12 + $0x80] sm:$0xf]
    %v1514 = vld [vmem:[#allocation12 + $0x84] sm:$0xff]
    %v1515 = vld [vmem:[#allocation12 + $0x8c] sm:$0xf]
    %v1516 = vld [vmem:[#allocation12 + $0x90] sm:$0xff]
    %v1517 = vld [vmem:[#allocation12 + $0x98] sm:$0xf]
    %v1518 = vld [vmem:[#allocation12 + $0x9c] sm:$0xff]
    %v1519 = vld [vmem:[#allocation12 + $0xa4] sm:$0xf]
    %v1520 = vld [vmem:[#allocation12 + $0xa8] sm:$0xff]
    %v1521 = vld [vmem:[#allocation12 + $0xb0] sm:$0xf]
    %v1522 = vld [vmem:[#allocation12 + $0xb4] sm:$0xff]
    %v1523 = vld [vmem:[#allocation12 + $0xbc] sm:$0xf]
    %v1524 = vld [vmem:[#allocation15] sm:$0x7]
    %v1526 = vlaneseq
    %v1527 = vshrl.u32 %v1526, 7
    %v1528 = vsub.s32 0, %v1527
    %v1529 = vrot.slane %v1524, %v1528
    %v1530 = vlaneseq
    %v1531 = vshrl.u32 %v1530, 7
    %v1532 = vsub.s32 1, %v1531
    %v1533 = vrot.slane %v1524, %v1532
    %v1534 = vlaneseq
    %v1535 = vshrl.u32 %v1534, 7
    %v1536 = vsub.s32 2, %v1535
    %v1537 = vrot.slane %v1524, %v1536
    %v1573 = vunpack.c.l.b16 %v1492
    %v1574 = vunpack.c.h.b16 %v1492
    %v1575 = vunpack.c.l.b16 %v1493
    %v1576 = vunpack.c.l.b16 %v1494
    %v1577 = vunpack.c.h.b16 %v1494
    %v1578 = vunpack.c.l.b16 %v1495
    %v1579 = vunpack.c.l.b16 %v1496
    %v1580 = vunpack.c.h.b16 %v1496
    %v1581 = vunpack.c.l.b16 %v1497
    %v1582 = vunpack.c.l.b16 %v1498
    %v1583 = vunpack.c.h.b16 %v1498
    %v1584 = vunpack.c.l.b16 %v1499
    %v1585 = vunpack.c.l.b16 %v1500
    %v1586 = vunpack.c.h.b16 %v1500
    %v1587 = vunpack.c.l.b16 %v1501
    %v1588 = vunpack.c.l.b16 %v1502
    %v1589 = vunpack.c.h.b16 %v1502
    %v1590 = vunpack.c.l.b16 %v1503
    %v1591 = vunpack.c.l.b16 %v1504
    %v1592 = vunpack.c.h.b16 %v1504
    %v1593 = vunpack.c.l.b16 %v1505
    %v1594 = vunpack.c.l.b16 %v1506
    %v1595 = vunpack.c.h.b16 %v1506
    %v1596 = vunpack.c.l.b16 %v1507
    %v1597 = vunpack.c.l.b16 %v1508
    %v1598 = vunpack.c.h.b16 %v1508
    %v1599 = vunpack.c.l.b16 %v1509
    %v1600 = vunpack.c.l.b16 %v1510
    %v1601 = vunpack.c.h.b16 %v1510
    %v1602 = vunpack.c.l.b16 %v1511
    %v1603 = vunpack.c.l.b16 %v1512
    %v1604 = vunpack.c.h.b16 %v1512
    %v1605 = vunpack.c.l.b16 %v1513
    %v1606 = vunpack.c.l.b16 %v1514
    %v1607 = vunpack.c.h.b16 %v1514
    %v1608 = vunpack.c.l.b16 %v1515
    %v1609 = vunpack.c.l.b16 %v1516
    %v1610 = vunpack.c.h.b16 %v1516
    %v1611 = vunpack.c.l.b16 %v1517
    %v1612 = vunpack.c.l.b16 %v1518
    %v1613 = vunpack.c.h.b16 %v1518
    %v1614 = vunpack.c.l.b16 %v1519
    %v1615 = vunpack.c.l.b16 %v1520
    %v1616 = vunpack.c.h.b16 %v1520
    %v1617 = vunpack.c.l.b16 %v1521
    %v1618 = vunpack.c.l.b16 %v1522
    %v1619 = vunpack.c.h.b16 %v1522
    %v1620 = vunpack.c.l.b16 %v1523
    %v1621 = vpack.c.b16 %v1576, %v1573
    %v1622 = vpack.c.b16 %v1577, %v1574
    %v1623 = vpack.c.b16 %v1578, %v1575
    %v1624 = vpack.c.b16 %v1582, %v1579
    %v1625 = vpack.c.b16 %v1583, %v1580
    %v1626 = vpack.c.b16 %v1584, %v1581
    %v1627 = vpack.c.b16 %v1588, %v1585
    %v1628 = vpack.c.b16 %v1589, %v1586
    %v1629 = vpack.c.b16 %v1590, %v1587
    %v1630 = vpack.c.b16 %v1594, %v1591
    %v1631 = vpack.c.b16 %v1595, %v1592
    %v1632 = vpack.c.b16 %v1596, %v1593
    %v1633 = vpack.c.b16 %v1600, %v1597
    %v1634 = vpack.c.b16 %v1601, %v1598
    %v1635 = vpack.c.b16 %v1602, %v1599
    %v1636 = vpack.c.b16 %v1606, %v1603
    %v1637 = vpack.c.b16 %v1607, %v1604
    %v1638 = vpack.c.b16 %v1608, %v1605
    %v1639 = vpack.c.b16 %v1612, %v1609
    %v1640 = vpack.c.b16 %v1613, %v1610
    %v1641 = vpack.c.b16 %v1614, %v1611
    %v1642 = vpack.c.b16 %v1618, %v1615
    %v1643 = vpack.c.b16 %v1619, %v1616
    %v1644 = vpack.c.b16 %v1620, %v1617
    %1669 = vmatprep.subr.bf16.mxu0 %v1622
    %1670 = vmatpush1.bf16.msra.mxu0 %v1621
    %1671 = vmatprep.subr.bf16.mxu0 %v1625
    %1672 = vmatpush1.bf16.msra.mxu0 %v1624
    %1673 = vmatprep.subr.bf16.mxu0 %v1628
    %1674 = vmatpush1.bf16.msra.mxu0 %v1627
    %1675 = vmatprep.subr.bf16.mxu0 %v1631
    %1676 = vmatpush1.bf16.msra.mxu0 %v1630
    %1677 = vmatprep.subr.bf16.mxu0 %v1634
    %1678 = vmatpush1.bf16.msra.mxu0 %v1633
    %1679 = vmatprep.subr.bf16.mxu0 %v1637
    %1680 = vmatpush1.bf16.msra.mxu0 %v1636
    %1681 = vmatprep.subr.bf16.mxu0 %v1640
    %1682 = vmatpush1.bf16.msra.mxu0 %v1639
    %1683 = vmatprep.subr.bf16.mxu0 %v1643
    %1684 = vmatpush1.bf16.msra.mxu0 %v1642
    %1685 = vmatprep.subr.bf16.mxu0 0
    %1686 = vmatpush1.bf16.msra.mxu0 0
    %1687 = vmatprep.subr.bf16.mxu0 0
    %1688 = vmatpush1.bf16.msra.mxu0 0
    %1689 = vmatprep.subr.bf16.mxu0 0
    %1690 = vmatpush1.bf16.msra.mxu0 0
    %1691 = vmatprep.subr.bf16.mxu0 0
    %1692 = vmatpush1.bf16.msra.mxu0 0
    %1693 = vmatprep.subr.bf16.mxu0 0
    %1694 = vmatpush1.bf16.msra.mxu0 0
    %1695 = vmatprep.subr.bf16.mxu0 0
    %1696 = vmatpush1.bf16.msra.mxu0 0
    %1697 = vmatprep.subr.bf16.mxu0 0
    %1698 = vmatpush1.bf16.msra.mxu0 0
    %1699 = vmatprep.subr.bf16.mxu0 0
    %1700 = vmatpush1.bf16.msra.mxu0 0
    %1701 = vmatprep.mubr.bf16.mxu0 0
    %1702 = vmatmul.mubr.bf16.gmra.mrb[0].mxu0 %v1488
    %v1703 = vpop.f32.mrb[0].mxu0
    %v1704 = vadd.f32 %v1529, %v1703
    %v1705 = vpop.f32.mrb[0].mxu0
    %v1706 = vadd.f32 %v1533, %v1705
    %v1707 = vpop.f32.mrb[0].mxu0
    %v1708 = vadd.f32 %v1529, %v1707
    %v1709 = vpop.f32.mrb[0].mxu0
    %v1710 = vadd.f32 %v1533, %v1709
    %1711 = vmatprep.mubr.bf16.mxu0 0
    %1712 = vmatmul.mubr.bf16.gmra.mrb[0].mxu0 %v1489
    %v1713 = vpop.f32.mrb[0].mxu0
    %v1714 = vadd.f32 %v1529, %v1713
    %v1715 = vpop.f32.mrb[0].mxu0
    %v1716 = vadd.f32 %v1533, %v1715
    %v1717 = vpop.f32.mrb[0].mxu0
    %v1718 = vadd.f32 %v1529, %v1717
    %v1719 = vpop.f32.mrb[0].mxu0
    %v1720 = vadd.f32 %v1533, %v1719
    %1721 = vmatprep.mubr.bf16.mxu0 0
    %1722 = vmatmul.mubr.bf16.gmra.mrb[0].mxu0 %v1490
    %v1723 = vpop.f32.mrb[0].mxu0
    %v1724 = vadd.f32 %v1529, %v1723
    %v1725 = vpop.f32.mrb[0].mxu0
    %v1726 = vadd.f32 %v1533, %v1725
    %v1727 = vpop.f32.mrb[0].mxu0
    %v1728 = vadd.f32 %v1529, %v1727
    %v1729 = vpop.f32.mrb[0].mxu0
    %v1730 = vadd.f32 %v1533, %v1729
    %1731 = vmatprep.mubr.bf16.mxu0 0
    %1732 = vmatmul.mubr.bf16.gmra.mrb[0].mxu0 %v1491
    %v1733 = vpop.f32.mrb[0].mxu0
    %v1734 = vadd.f32 %v1529, %v1733
    %v1735 = vpop.f32.mrb[0].mxu0
    %v1736 = vadd.f32 %v1533, %v1735
    %v1737 = vpop.f32.mrb[0].mxu0
    %v1738 = vadd.f32 %v1529, %v1737
    %v1739 = vpop.f32.mrb[0].mxu0
    %v1740 = vadd.f32 %v1533, %v1739
    %1741 = vdwg.mxu0
    %1742 = vmatprep.subr.bf16.mxu0 0
    %1743 = vmatpush1.bf16.msra.mxu0 %v1623
    %1744 = vmatprep.subr.bf16.mxu0 0
    %1745 = vmatpush1.bf16.msra.mxu0 %v1626
    %1746 = vmatprep.subr.bf16.mxu0 0
    %1747 = vmatpush1.bf16.msra.mxu0 %v1629
    %1748 = vmatprep.subr.bf16.mxu0 0
    %1749 = vmatpush1.bf16.msra.mxu0 %v1632
    %1750 = vmatprep.subr.bf16.mxu0 0
    %1751 = vmatpush1.bf16.msra.mxu0 %v1635
    %1752 = vmatprep.subr.bf16.mxu0 0
    %1753 = vmatpush1.bf16.msra.mxu0 %v1638
    %1754 = vmatprep.subr.bf16.mxu0 0
    %1755 = vmatpush1.bf16.msra.mxu0 %v1641
    %1756 = vmatprep.subr.bf16.mxu0 0
    %1757 = vmatpush1.bf16.msra.mxu0 %v1644
    %1758 = vmatprep.subr.bf16.mxu0 0
    %1759 = vmatpush1.bf16.msra.mxu0 0
    %1760 = vmatprep.subr.bf16.mxu0 0
    %1761 = vmatpush1.bf16.msra.mxu0 0
    %1762 = vmatprep.subr.bf16.mxu0 0
    %1763 = vmatpush1.bf16.msra.mxu0 0
    %1764 = vmatprep.subr.bf16.mxu0 0
    %1765 = vmatpush1.bf16.msra.mxu0 0
    %1766 = vmatprep.subr.bf16.mxu0 0
    %1767 = vmatpush1.bf16.msra.mxu0 0
    %1768 = vmatprep.subr.bf16.mxu0 0
    %1769 = vmatpush1.bf16.msra.mxu0 0
    %1770 = vmatprep.subr.bf16.mxu0 0
    %1771 = vmatpush1.bf16.msra.mxu0 0
    %1772 = vmatprep.subr.bf16.mxu0 0
    %1773 = vmatpush1.bf16.msra.mxu0 0
    %1774 = vmatprep.mubr.bf16.mxu0 0
    %1775 = vmatmul.mubr.bf16.gmra.mrb[0].mxu0 %v1488
    %v1776 = vpop.f32.mrb[0].mxu0
    %v1777 = vadd.f32 %v1537, %v1776
    %v1778 = vpop.f32.mrb[0].mxu0
    %v1779 = vpop.f32.mrb[0].mxu0
    %v1780 = vadd.f32 %v1537, %v1779
    %v1781 = vpop.f32.mrb[0].mxu0
    %1782 = vmatprep.mubr.bf16.mxu0 0
    %1783 = vmatmul.mubr.bf16.gmra.mrb[0].mxu0 %v1489
    %v1784 = vpop.f32.mrb[0].mxu0
    %v1785 = vadd.f32 %v1537, %v1784
    %v1786 = vpop.f32.mrb[0].mxu0
    %v1787 = vpop.f32.mrb[0].mxu0
    %v1788 = vadd.f32 %v1537, %v1787
    %v1789 = vpop.f32.mrb[0].mxu0
    %1790 = vmatprep.mubr.bf16.mxu0 0
    %1791 = vmatmul.mubr.bf16.gmra.mrb[0].mxu0 %v1490
    %v1792 = vpop.f32.mrb[0].mxu0
    %v1793 = vadd.f32 %v1537, %v1792
    %v1794 = vpop.f32.mrb[0].mxu0
    %v1795 = vpop.f32.mrb[0].mxu0
    %v1796 = vadd.f32 %v1537, %v1795
    %v1797 = vpop.f32.mrb[0].mxu0
    %1798 = vmatprep.mubr.bf16.mxu0 0
    %1799 = vmatmul.mubr.bf16.gmra.mrb[0].mxu0 %v1491
    %v1800 = vpop.f32.mrb[0].mxu0
    %v1801 = vadd.f32 %v1537, %v1800
    %v1802 = vpop.f32.mrb[0].mxu0
    %v1803 = vpop.f32.mrb[0].mxu0
    %v1804 = vadd.f32 %v1537, %v1803
    %v1805 = vpop.f32.mrb[0].mxu0
    %1806 = vdwg.mxu0
    %1807 = vst [vmem:[#allocation2] sm:$0xff] %v1704
    %1808 = vst [vmem:[#allocation2 + $0x8] sm:$0xff] %v1706
    %1809 = vst [vmem:[#allocation2 + $0x10] sm:$0xff] %v1777
    %1810 = vst [vmem:[#allocation2 + $0x18] sm:$0xff] %v1708
    %1811 = vst [vmem:[#allocation2 + $0x20] sm:$0xff] %v1710
    %1812 = vst [vmem:[#allocation2 + $0x28] sm:$0xff] %v1780
    %1813 = vst [vmem:[#allocation2 + $0x30] sm:$0xff] %v1714
    %1814 = vst [vmem:[#allocation2 + $0x38] sm:$0xff] %v1716
    %1815 = vst [vmem:[#allocation2 + $0x40] sm:$0xff] %v1785
    %1816 = vst [vmem:[#allocation2 + $0x48] sm:$0xff] %v1718
    %1817 = vst [vmem:[#allocation2 + $0x50] sm:$0xff] %v1720
    %1818 = vst [vmem:[#allocation2 + $0x58] sm:$0xff] %v1788
    %1819 = vst [vmem:[#allocation2 + $0x60] sm:$0xff] %v1724
    %1820 = vst [vmem:[#allocation2 + $0x68] sm:$0xff] %v1726
    %1821 = vst [vmem:[#allocation2 + $0x70] sm:$0xff] %v1793
    %1822 = vst [vmem:[#allocation2 + $0x78] sm:$0xff] %v1728
    %1823 = vst [vmem:[#allocation2 + $0x80] sm:$0xff] %v1730
    %1824 = vst [vmem:[#allocation2 + $0x88] sm:$0xff] %v1796
    %1825 = vst [vmem:[#allocation2 + $0x90] sm:$0xff] %v1734
    %1826 = vst [vmem:[#allocation2 + $0x98] sm:$0xff] %v1736
    %1827 = vst [vmem:[#allocation2 + $0xa0] sm:$0xff] %v1801
    %1828 = vst [vmem:[#allocation2 + $0xa8] sm:$0xff] %v1738
    %1829 = vst [vmem:[#allocation2 + $0xb0] sm:$0xff] %v1740
    %1830 = vst [vmem:[#allocation2 + $0xb8] sm:$0xff] %v1804
    %v1831 = vld [vmem:[#allocation13] sm:$0xff]
    %v1832 = vld [vmem:[#allocation13 + $0x8] sm:$0xf]
    %v1833 = vld [vmem:[#allocation13 + $0xc] sm:$0xff]
    %v1834 = vld [vmem:[#allocation13 + $0x14] sm:$0xf]
    %v1835 = vld [vmem:[#allocation13 + $0x18] sm:$0xff]
    %v1836 = vld [vmem:[#allocation13 + $0x20] sm:$0xf]
    %v1837 = vld [vmem:[#allocation13 + $0x24] sm:$0xff]
    %v1838 = vld [vmem:[#allocation13 + $0x2c] sm:$0xf]
    %v1839 = vld [vmem:[#allocation13 + $0x30] sm:$0xff]
    %v1840 = vld [vmem:[#allocation13 + $0x38] sm:$0xf]
    %v1841 = vld [vmem:[#allocation13 + $0x3c] sm:$0xff]
    %v1842 = vld [vmem:[#allocation13 + $0x44] sm:$0xf]
    %v1843 = vld [vmem:[#allocation13 + $0x48] sm:$0xff]
    %v1844 = vld [vmem:[#allocation13 + $0x50] sm:$0xf]
    %v1845 = vld [vmem:[#allocation13 + $0x54] sm:$0xff]
    %v1846 = vld [vmem:[#allocation13 + $0x5c] sm:$0xf]
    %v1847 = vld [vmem:[#allocation13 + $0x60] sm:$0xff]
    %v1848 = vld [vmem:[#allocation13 + $0x68] sm:$0xf]
    %v1849 = vld [vmem:[#allocation13 + $0x6c] sm:$0xff]
    %v1850 = vld [vmem:[#allocation13 + $0x74] sm:$0xf]
    %v1851 = vld [vmem:[#allocation13 + $0x78] sm:$0xff]
    %v1852 = vld [vmem:[#allocation13 + $0x80] sm:$0xf]
    %v1853 = vld [vmem:[#allocation13 + $0x84] sm:$0xff]
    %v1854 = vld [vmem:[#allocation13 + $0x8c] sm:$0xf]
    %v1855 = vld [vmem:[#allocation13 + $0x90] sm:$0xff]
    %v1856 = vld [vmem:[#allocation13 + $0x98] sm:$0xf]
    %v1857 = vld [vmem:[#allocation13 + $0x9c] sm:$0xff]
    %v1858 = vld [vmem:[#allocation13 + $0xa4] sm:$0xf]
    %v1859 = vld [vmem:[#allocation13 + $0xa8] sm:$0xff]
    %v1860 = vld [vmem:[#allocation13 + $0xb0] sm:$0xf]
    %v1861 = vld [vmem:[#allocation13 + $0xb4] sm:$0xff]
    %v1862 = vld [vmem:[#allocation13 + $0xbc] sm:$0xf]
    %v1863 = vld [vmem:[#allocation16] sm:$0x1]
    %v1864 = vld [vmem:[#allocation2] sm:$0xff]
    %v1865 = vld [vmem:[#allocation2 + $0x8] sm:$0xff]
    %v1866 = vld [vmem:[#allocation2 + $0x10] sm:$0xff]
    %v1867 = vxor.u32 %v1864, 2147483648
    %v1868 = vxor.u32 %v1865, 2147483648
    %v1869 = vmul.f32 %v1867, 1.442695
    %v1870 = vpow.pop %v1869
    %v1871 = vmul.f32 %v1868, 1.442695
    %v1872 = vpow.pop %v1871
    %v1873 = vadd.f32 %v1870, 1.0
    %v1874 = vadd.f32 %v1872, 1.0
    %v1875 = vrcp.pop %v1873
    %v1876 = vmul.f32 1.0, %v1875
    %v1877 = vrcp.pop %v1874
    %v1878 = vmul.f32 1.0, %v1877
    %v1880 = vlaneseq
    %v1881 = vshrl.u32 %v1880, 7
    %v1882 = vsub.s32 0, %v1881
    %v1883 = vrot.slane %v1863, %v1882
    %v1885 = vmul.f32 %v1876, %v1883
    %v1886 = vadd.f32 %v1866, %v1885
    %v1887 = vtanh.pop %v1886
    %v1888 = vsub.f32 1.0, %v1878
    %v1889 = vmul.f32 %v1888, %v1887
    %1890 = vst [vmem:[#allocation3] sm:$0xff] %v1889
    %v1891 = vld [vmem:[#allocation2 + $0x18] sm:$0xff]
    %v1892 = vld [vmem:[#allocation2 + $0x20] sm:$0xff]
    %v1893 = vld [vmem:[#allocation2 + $0x28] sm:$0xff]
    %v1894 = vpack.c.bf16 %v1889, %v1889
    %v1927 = vunpack.c.l.b16 %v1831
    %v1928 = vunpack.c.h.b16 %v1831
    %v1929 = vunpack.c.l.b16 %v1832
    %v1930 = vunpack.c.l.b16 %v1833
    %v1931 = vunpack.c.h.b16 %v1833
    %v1932 = vunpack.c.l.b16 %v1834
    %v1933 = vunpack.c.l.b16 %v1835
    %v1934 = vunpack.c.h.b16 %v1835
    %v1935 = vunpack.c.l.b16 %v1836
    %v1936 = vunpack.c.l.b16 %v1837
    %v1937 = vunpack.c.h.b16 %v1837
    %v1938 = vunpack.c.l.b16 %v1838
    %v1939 = vunpack.c.l.b16 %v1839
    %v1940 = vunpack.c.h.b16 %v1839
    %v1941 = vunpack.c.l.b16 %v1840
    %v1942 = vunpack.c.l.b16 %v1841
    %v1943 = vunpack.c.h.b16 %v1841
    %v1944 = vunpack.c.l.b16 %v1842
    %v1945 = vunpack.c.l.b16 %v1843
    %v1946 = vunpack.c.h.b16 %v1843
    %v1947 = vunpack.c.l.b16 %v1844
    %v1948 = vunpack.c.l.b16 %v1845
    %v1949 = vunpack.c.h.b16 %v1845
    %v1950 = vunpack.c.l.b16 %v1846
    %v1951 = vunpack.c.l.b16 %v1847
    %v1952 = vunpack.c.h.b16 %v1847
    %v1953 = vunpack.c.l.b16 %v1848
    %v1954 = vunpack.c.l.b16 %v1849
    %v1955 = vunpack.c.h.b16 %v1849
    %v1956 = vunpack.c.l.b16 %v1850
    %v1957 = vunpack.c.l.b16 %v1851
    %v1958 = vunpack.c.h.b16 %v1851
    %v1959 = vunpack.c.l.b16 %v1852
    %v1960 = vunpack.c.l.b16 %v1853
    %v1961 = vunpack.c.h.b16 %v1853
    %v1962 = vunpack.c.l.b16 %v1854
    %v1963 = vunpack.c.l.b16 %v1855
    %v1964 = vunpack.c.h.b16 %v1855
    %v1965 = vunpack.c.l.b16 %v1856
    %v1966 = vunpack.c.l.b16 %v1857
    %v1967 = vunpack.c.h.b16 %v1857
    %v1968 = vunpack.c.l.b16 %v1858
    %v1969 = vunpack.c.l.b16 %v1859
    %v1970 = vunpack.c.h.b16 %v1859
    %v1971 = vunpack.c.l.b16 %v1860
    %v1972 = vunpack.c.l.b16 %v1861
    %v1973 = vunpack.c.h.b16 %v1861
    %v1974 = vunpack.c.l.b16 %v1862
    %v1975 = vpack.c.b16 %v1930, %v1927
    %v1976 = vpack.c.b16 %v1931, %v1928
    %v1977 = vpack.c.b16 %v1932, %v1929
    %v1978 = vpack.c.b16 %v1936, %v1933
    %v1979 = vpack.c.b16 %v1937, %v1934
    %v1980 = vpack.c.b16 %v1938, %v1935
    %v1981 = vpack.c.b16 %v1942, %v1939
    %v1982 = vpack.c.b16 %v1943, %v1940
    %v1983 = vpack.c.b16 %v1944, %v1941
    %v1984 = vpack.c.b16 %v1948, %v1945
    %v1985 = vpack.c.b16 %v1949, %v1946
    %v1986 = vpack.c.b16 %v1950, %v1947
    %v1987 = vpack.c.b16 %v1954, %v1951
    %v1988 = vpack.c.b16 %v1955, %v1952
    %v1989 = vpack.c.b16 %v1956, %v1953
    %v1990 = vpack.c.b16 %v1960, %v1957
    %v1991 = vpack.c.b16 %v1961, %v1958
    %v1992 = vpack.c.b16 %v1962, %v1959
    %v1993 = vpack.c.b16 %v1966, %v1963
    %v1994 = vpack.c.b16 %v1967, %v1964
    %v1995 = vpack.c.b16 %v1968, %v1965
    %v1996 = vpack.c.b16 %v1972, %v1969
    %v1997 = vpack.c.b16 %v1973, %v1970
    %v1998 = vpack.c.b16 %v1974, %v1971
    %2023 = vmatprep.subr.bf16.mxu0 %v1976
    %2024 = vmatpush1.bf16.msra.mxu0 %v1975
    %2025 = vmatprep.subr.bf16.mxu0 %v1979
    %2026 = vmatpush1.bf16.msra.mxu0 %v1978
    %2027 = vmatprep.subr.bf16.mxu0 %v1982
    %2028 = vmatpush1.bf16.msra.mxu0 %v1981
    %2029 = vmatprep.subr.bf16.mxu0 %v1985
    %2030 = vmatpush1.bf16.msra.mxu0 %v1984
    %2031 = vmatprep.subr.bf16.mxu0 %v1988
    %2032 = vmatpush1.bf16.msra.mxu0 %v1987
    %2033 = vmatprep.subr.bf16.mxu0 %v1991
    %2034 = vmatpush1.bf16.msra.mxu0 %v1990
    %2035 = vmatprep.subr.bf16.mxu0 %v1994
    %2036 = vmatpush1.bf16.msra.mxu0 %v1993
    %2037 = vmatprep.subr.bf16.mxu0 %v1997
    %2038 = vmatpush1.bf16.msra.mxu0 %v1996
    %2039 = vmatprep.subr.bf16.mxu0 0
    %2040 = vmatpush1.bf16.msra.mxu0 0
    %2041 = vmatprep.subr.bf16.mxu0 0
    %2042 = vmatpush1.bf16.msra.mxu0 0
    %2043 = vmatprep.subr.bf16.mxu0 0
    %2044 = vmatpush1.bf16.msra.mxu0 0
    %2045 = vmatprep.subr.bf16.mxu0 0
    %2046 = vmatpush1.bf16.msra.mxu0 0
    %2047 = vmatprep.subr.bf16.mxu0 0
    %2048 = vmatpush1.bf16.msra.mxu0 0
    %2049 = vmatprep.subr.bf16.mxu0 0
    %2050 = vmatpush1.bf16.msra.mxu0 0
    %2051 = vmatprep.subr.bf16.mxu0 0
    %2052 = vmatpush1.bf16.msra.mxu0 0
    %2053 = vmatprep.subr.bf16.mxu0 0
    %2054 = vmatpush1.bf16.msra.mxu0 0
    %2055 = vmatprep.mubr.bf16.mxu0 0
    %2056 = vmatmul.mubr.bf16.gmra.mrb[0].mxu0 %v1894
    %v2057 = vpop.f32.mrb[0].mxu0
    %v2058 = vadd.f32 0.0, %v2057
    %v2059 = vpop.f32.mrb[0].mxu0
    %v2060 = vadd.f32 0.0, %v2059
    %v2061 = vpop.f32.mrb[0].mxu0
    %v2062 = vpop.f32.mrb[0].mxu0
    %2063 = vdwg.mxu0
    %2064 = vmatprep.subr.bf16.mxu0 0
    %2065 = vmatpush1.bf16.msra.mxu0 %v1977
    %2066 = vmatprep.subr.bf16.mxu0 0
    %2067 = vmatpush1.bf16.msra.mxu0 %v1980
    %2068 = vmatprep.subr.bf16.mxu0 0
    %2069 = vmatpush1.bf16.msra.mxu0 %v1983
    %2070 = vmatprep.subr.bf16.mxu0 0
    %2071 = vmatpush1.bf16.msra.mxu0 %v1986
    %2072 = vmatprep.subr.bf16.mxu0 0
    %2073 = vmatpush1.bf16.msra.mxu0 %v1989
    %2074 = vmatprep.subr.bf16.mxu0 0
    %2075 = vmatpush1.bf16.msra.mxu0 %v1992
    %2076 = vmatprep.subr.bf16.mxu0 0
    %2077 = vmatpush1.bf16.msra.mxu0 %v1995
    %2078 = vmatprep.subr.bf16.mxu0 0
    %2079 = vmatpush1.bf16.msra.mxu0 %v1998
    %2080 = vmatprep.subr.bf16.mxu0 0
    %2081 = vmatpush1.bf16.msra.mxu0 0
    %2082 = vmatprep.subr.bf16.mxu0 0
    %2083 = vmatpush1.bf16.msra.mxu0 0
    %2084 = vmatprep.subr.bf16.mxu0 0
    %2085 = vmatpush1.bf16.msra.mxu0 0
    %2086 = vmatprep.subr.bf16.mxu0 0
    %2087 = vmatpush1.bf16.msra.mxu0 0
    %2088 = vmatprep.subr.bf16.mxu0 0
    %2089 = vmatpush1.bf16.msra.mxu0 0
    %2090 = vmatprep.subr.bf16.mxu0 0
    %2091 = vmatpush1.bf16.msra.mxu0 0
    %2092 = vmatprep.subr.bf16.mxu0 0
    %2093 = vmatpush1.bf16.msra.mxu0 0
    %2094 = vmatprep.subr.bf16.mxu0 0
    %2095 = vmatpush1.bf16.msra.mxu0 0
    %2096 = vmatprep.mubr.bf16.mxu0 0
    %2097 = vmatmul.mubr.bf16.gmra.mrb[0].mxu0 %v1894
    %v2098 = vpop.f32.mrb[0].mxu0
    %v2099 = vadd.f32 0.0, %v2098
    %v2100 = vpop.f32.mrb[0].mxu0
    %v2101 = vpop.f32.mrb[0].mxu0
    %v2102 = vpop.f32.mrb[0].mxu0
    %2103 = vdwg.mxu0
    %v2104 = vadd.f32 %v1891, %v2058
    %v2105 = vadd.f32 %v1892, %v2060
    %v2106 = vxor.u32 %v2104, 2147483648
    %v2107 = vxor.u32 %v2105, 2147483648
    %v2108 = vmul.f32 %v2106, 1.442695
    %v2109 = vpow.pop %v2108
    %v2110 = vmul.f32 %v2107, 1.442695
    %v2111 = vpow.pop %v2110
    %v2112 = vadd.f32 %v2109, 1.0
    %v2113 = vadd.f32 %v2111, 1.0
    %v2114 = vrcp.pop %v2112
    %v2115 = vmul.f32 1.0, %v2114
    %v2116 = vrcp.pop %v2113
    %v2117 = vmul.f32 1.0, %v2116
    %v2118 = vadd.f32 %v2099, %v1883
    %v2119 = vmul.f32 %v2115, %v2118
    %v2120 = vadd.f32 %v1893, %v2119
    %v2121 = vtanh.pop %v2120
    %v2122 = vsub.f32 1.0, %v2117
    %v2123 = vmul.f32 %v2122, %v2121
    %v2124 = vmul.f32 %v2117, %v1889
    %v2125 = vadd.f32 %v2123, %v2124
    %2126 = vst [vmem:[#allocation3 + $0x8] sm:$0xff] %v2125
    %v2127 = vld [vmem:[#allocation2 + $0x30] sm:$0xff]
    %v2128 = vld [vmem:[#allocation2 + $0x38] sm:$0xff]
    %v2129 = vld [vmem:[#allocation2 + $0x40] sm:$0xff]
    %v2130 = vpack.c.bf16 %v2125, %v2125
    %2131 = vmatprep.subr.bf16.mxu0 %v1976
    %2132 = vmatpush1.bf16.msra.mxu0 %v1975
    %2133 = vmatprep.subr.bf16.mxu0 %v1979
    %2134 = vmatpush1.bf16.msra.mxu0 %v1978
    %2135 = vmatprep.subr.bf16.mxu0 %v1982
    %2136 = vmatpush1.bf16.msra.mxu0 %v1981
    %2137 = vmatprep.subr.bf16.mxu0 %v1985
    %2138 = vmatpush1.bf16.msra.mxu0 %v1984
    %2139 = vmatprep.subr.bf16.mxu0 %v1988
    %2140 = vmatpush1.bf16.msra.mxu0 %v1987
    %2141 = vmatprep.subr.bf16.mxu0 %v1991
    %2142 = vmatpush1.bf16.msra.mxu0 %v1990
    %2143 = vmatprep.subr.bf16.mxu0 %v1994
    %2144 = vmatpush1.bf16.msra.mxu0 %v1993
    %2145 = vmatprep.subr.bf16.mxu0 %v1997
    %2146 = vmatpush1.bf16.msra.mxu0 %v1996
    %2147 = vmatprep.subr.bf16.mxu0 0
    %2148 = vmatpush1.bf16.msra.mxu0 0
    %2149 = vmatprep.subr.bf16.mxu0 0
    %2150 = vmatpush1.bf16.msra.mxu0 0
    %2151 = vmatprep.subr.bf16.mxu0 0
    %2152 = vmatpush1.bf16.msra.mxu0 0
    %2153 = vmatprep.subr.bf16.mxu0 0
    %2154 = vmatpush1.bf16.msra.mxu0 0
    %2155 = vmatprep.subr.bf16.mxu0 0
    %2156 = vmatpush1.bf16.msra.mxu0 0
    %2157 = vmatprep.subr.bf16.mxu0 0
    %2158 = vmatpush1.bf16.msra.mxu0 0
    %2159 = vmatprep.subr.bf16.mxu0 0
    %2160 = vmatpush1.bf16.msra.mxu0 0
    %2161 = vmatprep.subr.bf16.mxu0 0
    %2162 = vmatpush1.bf16.msra.mxu0 0
    %2163 = vmatprep.mubr.bf16.mxu0 0
    %2164 = vmatmul.mubr.bf16.gmra.mrb[0].mxu0 %v2130
    %v2165 = vpop.f32.mrb[0].mxu0
    %v2166 = vadd.f32 0.0, %v2165
    %v2167 = vpop.f32.mrb[0].mxu0
    %v2168 = vadd.f32 0.0, %v2167
    %v2169 = vpop.f32.mrb[0].mxu0
    %v2170 = vpop.f32.mrb[0].mxu0
    %2171 = vdwg.mxu0
    %2172 = vmatprep.subr.bf16.mxu0 0
    %2173 = vmatpush1.bf16.msra.mxu0 %v1977
    %2174 = vmatprep.subr.bf16.mxu0 0
    %2175 = vmatpush1.bf16.msra.mxu0 %v1980
    %2176 = vmatprep.subr.bf16.mxu0 0
    %2177 = vmatpush1.bf16.msra.mxu0 %v1983
    %2178 = vmatprep.subr.bf16.mxu0 0
    %2179 = vmatpush1.bf16.msra.mxu0 %v1986
    %2180 = vmatprep.subr.bf16.mxu0 0
    %2181 = vmatpush1.bf16.msra.mxu0 %v1989
    %2182 = vmatprep.subr.bf16.mxu0 0
    %2183 = vmatpush1.bf16.msra.mxu0 %v1992
    %2184 = vmatprep.subr.bf16.mxu0 0
    %2185 = vmatpush1.bf16.msra.mxu0 %v1995
    %2186 = vmatprep.subr.bf16.mxu0 0
    %2187 = vmatpush1.bf16.msra.mxu0 %v1998
    %2188 = vmatprep.subr.bf16.mxu0 0
    %2189 = vmatpush1.bf16.msra.mxu0 0
    %2190 = vmatprep.subr.bf16.mxu0 0
    %2191 = vmatpush1.bf16.msra.mxu0 0
    %2192 = vmatprep.subr.bf16.mxu0 0
    %2193 = vmatpush1.bf16.msra.mxu0 0
    %2194 = vmatprep.subr.bf16.mxu0 0
    %2195 = vmatpush1.bf16.msra.mxu0 0
    %2196 = vmatprep.subr.bf16.mxu0 0
    %2197 = vmatpush1.bf16.msra.mxu0 0
    %2198 = vmatprep.subr.bf16.mxu0 0
    %2199 = vmatpush1.bf16.msra.mxu0 0
    %2200 = vmatprep.subr.bf16.mxu0 0
    %2201 = vmatpush1.bf16.msra.mxu0 0
    %2202 = vmatprep.subr.bf16.mxu0 0
    %2203 = vmatpush1.bf16.msra.mxu0 0
    %2204 = vmatprep.mubr.bf16.mxu0 0
    %2205 = vmatmul.mubr.bf16.gmra.mrb[0].mxu0 %v2130
    %v2206 = vpop.f32.mrb[0].mxu0
    %v2207 = vadd.f32 0.0, %v2206
    %v2208 = vpop.f32.mrb[0].mxu0
    %v2209 = vpop.f32.mrb[0].mxu0
    %v2210 = vpop.f32.mrb[0].mxu0
    %2211 = vdwg.mxu0
    %v2212 = vadd.f32 %v2127, %v2166
    %v2213 = vadd.f32 %v2128, %v2168
    %v2214 = vxor.u32 %v2212, 2147483648
    %v2215 = vxor.u32 %v2213, 2147483648
    %v2216 = vmul.f32 %v2214, 1.442695
    %v2217 = vpow.pop %v2216
    %v2218 = vmul.f32 %v2215, 1.442695
    %v2219 = vpow.pop %v2218
    %v2220 = vadd.f32 %v2217, 1.0
    %v2221 = vadd.f32 %v2219, 1.0
    %v2222 = vrcp.pop %v2220
    %v2223 = vmul.f32 1.0, %v2222
    %v2224 = vrcp.pop %v2221
    %v2225 = vmul.f32 1.0, %v2224
    %v2226 = vadd.f32 %v2207, %v1883
    %v2227 = vmul.f32 %v2223, %v2226
    %v2228 = vadd.f32 %v2129, %v2227
    %v2229 = vtanh.pop %v2228
    %v2230 = vsub.f32 1.0, %v2225
    %v2231 = vmul.f32 %v2230, %v2229
    %v2232 = vmul.f32 %v2225, %v2125
    %v2233 = vadd.f32 %v2231, %v2232
    %2234 = vst [vmem:[#allocation3 + $0x10] sm:$0xff] %v2233
    %v2235 = vld [vmem:[#allocation2 + $0x48] sm:$0xff]
    %v2236 = vld [vmem:[#allocation2 + $0x50] sm:$0xff]
    %v2237 = vld [vmem:[#allocation2 + $0x58] sm:$0xff]
    %v2238 = vpack.c.bf16 %v2233, %v2233
    %2239 = vmatprep.subr.bf16.mxu0 %v1976
    %2240 = vmatpush1.bf16.msra.mxu0 %v1975
    %2241 = vmatprep.subr.bf16.mxu0 %v1979
    %2242 = vmatpush1.bf16.msra.mxu0 %v1978
    %2243 = vmatprep.subr.bf16.mxu0 %v1982
    %2244 = vmatpush1.bf16.msra.mxu0 %v1981
    %2245 = vmatprep.subr.bf16.mxu0 %v1985
    %2246 = vmatpush1.bf16.msra.mxu0 %v1984
    %2247 = vmatprep.subr.bf16.mxu0 %v1988
    %2248 = vmatpush1.bf16.msra.mxu0 %v1987
    %2249 = vmatprep.subr.bf16.mxu0 %v1991
    %2250 = vmatpush1.bf16.msra.mxu0 %v1990
    %2251 = vmatprep.subr.bf16.mxu0 %v1994
    %2252 = vmatpush1.bf16.msra.mxu0 %v1993
    %2253 = vmatprep.subr.bf16.mxu0 %v1997
    %2254 = vmatpush1.bf16.msra.mxu0 %v1996
    %2255 = vmatprep.subr.bf16.mxu0 0
    %2256 = vmatpush1.bf16.msra.mxu0 0
    %2257 = vmatprep.subr.bf16.mxu0 0
    %2258 = vmatpush1.bf16.msra.mxu0 0
    %2259 = vmatprep.subr.bf16.mxu0 0
    %2260 = vmatpush1.bf16.msra.mxu0 0
    %2261 = vmatprep.subr.bf16.mxu0 0
    %2262 = vmatpush1.bf16.msra.mxu0 0
    %2263 = vmatprep.subr.bf16.mxu0 0
    %2264 = vmatpush1.bf16.msra.mxu0 0
    %2265 = vmatprep.subr.bf16.mxu0 0
    %2266 = vmatpush1.bf16.msra.mxu0 0
    %2267 = vmatprep.subr.bf16.mxu0 0
    %2268 = vmatpush1.bf16.msra.mxu0 0
    %2269 = vmatprep.subr.bf16.mxu0 0
    %2270 = vmatpush1.bf16.msra.mxu0 0
    %2271 = vmatprep.mubr.bf16.mxu0 0
    %2272 = vmatmul.mubr.bf16.gmra.mrb[0].mxu0 %v2238
    %v2273 = vpop.f32.mrb[0].mxu0
    %v2274 = vadd.f32 0.0, %v2273
    %v2275 = vpop.f32.mrb[0].mxu0
    %v2276 = vadd.f32 0.0, %v2275
    %v2277 = vpop.f32.mrb[0].mxu0
    %v2278 = vpop.f32.mrb[0].mxu0
    %2279 = vdwg.mxu0
    %2280 = vmatprep.subr.bf16.mxu0 0
    %2281 = vmatpush1.bf16.msra.mxu0 %v1977
    %2282 = vmatprep.subr.bf16.mxu0 0
    %2283 = vmatpush1.bf16.msra.mxu0 %v1980
    %2284 = vmatprep.subr.bf16.mxu0 0
    %2285 = vmatpush1.bf16.msra.mxu0 %v1983
    %2286 = vmatprep.subr.bf16.mxu0 0
    %2287 = vmatpush1.bf16.msra.mxu0 %v1986
    %2288 = vmatprep.subr.bf16.mxu0 0
    %2289 = vmatpush1.bf16.msra.mxu0 %v1989
    %2290 = vmatprep.subr.bf16.mxu0 0
    %2291 = vmatpush1.bf16.msra.mxu0 %v1992
    %2292 = vmatprep.subr.bf16.mxu0 0
    %2293 = vmatpush1.bf16.msra.mxu0 %v1995
    %2294 = vmatprep.subr.bf16.mxu0 0
    %2295 = vmatpush1.bf16.msra.mxu0 %v1998
    %2296 = vmatprep.subr.bf16.mxu0 0
    %2297 = vmatpush1.bf16.msra.mxu0 0
    %2298 = vmatprep.subr.bf16.mxu0 0
    %2299 = vmatpush1.bf16.msra.mxu0 0
    %2300 = vmatprep.subr.bf16.mxu0 0
    %2301 = vmatpush1.bf16.msra.mxu0 0
    %2302 = vmatprep.subr.bf16.mxu0 0
    %2303 = vmatpush1.bf16.msra.mxu0 0
    %2304 = vmatprep.subr.bf16.mxu0 0
    %2305 = vmatpush1.bf16.msra.mxu0 0
    %2306 = vmatprep.subr.bf16.mxu0 0
    %2307 = vmatpush1.bf16.msra.mxu0 0
    %2308 = vmatprep.subr.bf16.mxu0 0
    %2309 = vmatpush1.bf16.msra.mxu0 0
    %2310 = vmatprep.subr.bf16.mxu0 0
    %2311 = vmatpush1.bf16.msra.mxu0 0
    %2312 = vmatprep.mubr.bf16.mxu0 0
    %2313 = vmatmul.mubr.bf16.gmra.mrb[0].mxu0 %v2238
    %v2314 = vpop.f32.mrb[0].mxu0
    %v2315 = vadd.f32 0.0, %v2314
    %v2316 = vpop.f32.mrb[0].mxu0
    %v2317 = vpop.f32.mrb[0].mxu0
    %v2318 = vpop.f32.mrb[0].mxu0
    %2319 = vdwg.mxu0
    %v2320 = vadd.f32 %v2235, %v2274
    %v2321 = vadd.f32 %v2236, %v2276
    %v2322 = vxor.u32 %v2320, 2147483648
    %v2323 = vxor.u32 %v2321, 2147483648
    %v2324 = vmul.f32 %v2322, 1.442695
    %v2325 = vpow.pop %v2324
    %v2326 = vmul.f32 %v2323, 1.442695
    %v2327 = vpow.pop %v2326
    %v2328 = vadd.f32 %v2325, 1.0
    %v2329 = vadd.f32 %v2327, 1.0
    %v2330 = vrcp.pop %v2328
    %v2331 = vmul.f32 1.0, %v2330
    %v2332 = vrcp.pop %v2329
    %v2333 = vmul.f32 1.0, %v2332
    %v2334 = vadd.f32 %v2315, %v1883
    %v2335 = vmul.f32 %v2331, %v2334
    %v2336 = vadd.f32 %v2237, %v2335
    %v2337 = vtanh.pop %v2336
    %v2338 = vsub.f32 1.0, %v2333
    %v2339 = vmul.f32 %v2338, %v2337
    %v2340 = vmul.f32 %v2333, %v2233
    %v2341 = vadd.f32 %v2339, %v2340
    %2342 = vst [vmem:[#allocation3 + $0x18] sm:$0xff] %v2341
    %v2343 = vld [vmem:[#allocation2 + $0x60] sm:$0xff]
    %v2344 = vld [vmem:[#allocation2 + $0x68] sm:$0xff]
    %v2345 = vld [vmem:[#allocation2 + $0x70] sm:$0xff]
    %v2346 = vpack.c.bf16 %v2341, %v2341
    %2347 = vmatprep.subr.bf16.mxu0 %v1976
    %2348 = vmatpush1.bf16.msra.mxu0 %v1975
    %2349 = vmatprep.subr.bf16.mxu0 %v1979
    %2350 = vmatpush1.bf16.msra.mxu0 %v1978
    %2351 = vmatprep.subr.bf16.mxu0 %v1982
    %2352 = vmatpush1.bf16.msra.mxu0 %v1981
    %2353 = vmatprep.subr.bf16.mxu0 %v1985
    %2354 = vmatpush1.bf16.msra.mxu0 %v1984
    %2355 = vmatprep.subr.bf16.mxu0 %v1988
    %2356 = vmatpush1.bf16.msra.mxu0 %v1987
    %2357 = vmatprep.subr.bf16.mxu0 %v1991
    %2358 = vmatpush1.bf16.msra.mxu0 %v1990
    %2359 = vmatprep.subr.bf16.mxu0 %v1994
    %2360 = vmatpush1.bf16.msra.mxu0 %v1993
    %2361 = vmatprep.subr.bf16.mxu0 %v1997
    %2362 = vmatpush1.bf16.msra.mxu0 %v1996
    %2363 = vmatprep.subr.bf16.mxu0 0
    %2364 = vmatpush1.bf16.msra.mxu0 0
    %2365 = vmatprep.subr.bf16.mxu0 0
    %2366 = vmatpush1.bf16.msra.mxu0 0
    %2367 = vmatprep.subr.bf16.mxu0 0
    %2368 = vmatpush1.bf16.msra.mxu0 0
    %2369 = vmatprep.subr.bf16.mxu0 0
    %2370 = vmatpush1.bf16.msra.mxu0 0
    %2371 = vmatprep.subr.bf16.mxu0 0
    %2372 = vmatpush1.bf16.msra.mxu0 0
    %2373 = vmatprep.subr.bf16.mxu0 0
    %2374 = vmatpush1.bf16.msra.mxu0 0
    %2375 = vmatprep.subr.bf16.mxu0 0
    %2376 = vmatpush1.bf16.msra.mxu0 0
    %2377 = vmatprep.subr.bf16.mxu0 0
    %2378 = vmatpush1.bf16.msra.mxu0 0
    %2379 = vmatprep.mubr.bf16.mxu0 0
    %2380 = vmatmul.mubr.bf16.gmra.mrb[0].mxu0 %v2346
    %v2381 = vpop.f32.mrb[0].mxu0
    %v2382 = vadd.f32 0.0, %v2381
    %v2383 = vpop.f32.mrb[0].mxu0
    %v2384 = vadd.f32 0.0, %v2383
    %v2385 = vpop.f32.mrb[0].mxu0
    %v2386 = vpop.f32.mrb[0].mxu0
    %2387 = vdwg.mxu0
    %2388 = vmatprep.subr.bf16.mxu0 0
    %2389 = vmatpush1.bf16.msra.mxu0 %v1977
    %2390 = vmatprep.subr.bf16.mxu0 0
    %2391 = vmatpush1.bf16.msra.mxu0 %v1980
    %2392 = vmatprep.subr.bf16.mxu0 0
    %2393 = vmatpush1.bf16.msra.mxu0 %v1983
    %2394 = vmatprep.subr.bf16.mxu0 0
    %2395 = vmatpush1.bf16.msra.mxu0 %v1986
    %2396 = vmatprep.subr.bf16.mxu0 0
    %2397 = vmatpush1.bf16.msra.mxu0 %v1989
    %2398 = vmatprep.subr.bf16.mxu0 0
    %2399 = vmatpush1.bf16.msra.mxu0 %v1992
    %2400 = vmatprep.subr.bf16.mxu0 0
    %2401 = vmatpush1.bf16.msra.mxu0 %v1995
    %2402 = vmatprep.subr.bf16.mxu0 0
    %2403 = vmatpush1.bf16.msra.mxu0 %v1998
    %2404 = vmatprep.subr.bf16.mxu0 0
    %2405 = vmatpush1.bf16.msra.mxu0 0
    %2406 = vmatprep.subr.bf16.mxu0 0
    %2407 = vmatpush1.bf16.msra.mxu0 0
    %2408 = vmatprep.subr.bf16.mxu0 0
    %2409 = vmatpush1.bf16.msra.mxu0 0
    %2410 = vmatprep.subr.bf16.mxu0 0
    %2411 = vmatpush1.bf16.msra.mxu0 0
    %2412 = vmatprep.subr.bf16.mxu0 0
    %2413 = vmatpush1.bf16.msra.mxu0 0
    %2414 = vmatprep.subr.bf16.mxu0 0
    %2415 = vmatpush1.bf16.msra.mxu0 0
    %2416 = vmatprep.subr.bf16.mxu0 0
    %2417 = vmatpush1.bf16.msra.mxu0 0
    %2418 = vmatprep.subr.bf16.mxu0 0
    %2419 = vmatpush1.bf16.msra.mxu0 0
    %2420 = vmatprep.mubr.bf16.mxu0 0
    %2421 = vmatmul.mubr.bf16.gmra.mrb[0].mxu0 %v2346
    %v2422 = vpop.f32.mrb[0].mxu0
    %v2423 = vadd.f32 0.0, %v2422
    %v2424 = vpop.f32.mrb[0].mxu0
    %v2425 = vpop.f32.mrb[0].mxu0
    %v2426 = vpop.f32.mrb[0].mxu0
    %2427 = vdwg.mxu0
    %v2428 = vadd.f32 %v2343, %v2382
    %v2429 = vadd.f32 %v2344, %v2384
    %v2430 = vxor.u32 %v2428, 2147483648
    %v2431 = vxor.u32 %v2429, 2147483648
    %v2432 = vmul.f32 %v2430, 1.442695
    %v2433 = vpow.pop %v2432
    %v2434 = vmul.f32 %v2431, 1.442695
    %v2435 = vpow.pop %v2434
    %v2436 = vadd.f32 %v2433, 1.0
    %v2437 = vadd.f32 %v2435, 1.0
    %v2438 = vrcp.pop %v2436
    %v2439 = vmul.f32 1.0, %v2438
    %v2440 = vrcp.pop %v2437
    %v2441 = vmul.f32 1.0, %v2440
    %v2442 = vadd.f32 %v2423, %v1883
    %v2443 = vmul.f32 %v2439, %v2442
    %v2444 = vadd.f32 %v2345, %v2443
    %v2445 = vtanh.pop %v2444
    %v2446 = vsub.f32 1.0, %v2441
    %v2447 = vmul.f32 %v2446, %v2445
    %v2448 = vmul.f32 %v2441, %v2341
    %v2449 = vadd.f32 %v2447, %v2448
    %2450 = vst [vmem:[#allocation3 + $0x20] sm:$0xff] %v2449
    %v2451 = vld [vmem:[#allocation2 + $0x78] sm:$0xff]
    %v2452 = vld [vmem:[#allocation2 + $0x80] sm:$0xff]
    %v2453 = vld [vmem:[#allocation2 + $0x88] sm:$0xff]
    %v2454 = vpack.c.bf16 %v2449, %v2449
    %2455 = vmatprep.subr.bf16.mxu0 %v1976
    %2456 = vmatpush1.bf16.msra.mxu0 %v1975
    %2457 = vmatprep.subr.bf16.mxu0 %v1979
    %2458 = vmatpush1.bf16.msra.mxu0 %v1978
    %2459 = vmatprep.subr.bf16.mxu0 %v1982
    %2460 = vmatpush1.bf16.msra.mxu0 %v1981
    %2461 = vmatprep.subr.bf16.mxu0 %v1985
    %2462 = vmatpush1.bf16.msra.mxu0 %v1984
    %2463 = vmatprep.subr.bf16.mxu0 %v1988
    %2464 = vmatpush1.bf16.msra.mxu0 %v1987
    %2465 = vmatprep.subr.bf16.mxu0 %v1991
    %2466 = vmatpush1.bf16.msra.mxu0 %v1990
    %2467 = vmatprep.subr.bf16.mxu0 %v1994
    %2468 = vmatpush1.bf16.msra.mxu0 %v1993
    %2469 = vmatprep.subr.bf16.mxu0 %v1997
    %2470 = vmatpush1.bf16.msra.mxu0 %v1996
    %2471 = vmatprep.subr.bf16.mxu0 0
    %2472 = vmatpush1.bf16.msra.mxu0 0
    %2473 = vmatprep.subr.bf16.mxu0 0
    %2474 = vmatpush1.bf16.msra.mxu0 0
    %2475 = vmatprep.subr.bf16.mxu0 0
    %2476 = vmatpush1.bf16.msra.mxu0 0
    %2477 = vmatprep.subr.bf16.mxu0 0
    %2478 = vmatpush1.bf16.msra.mxu0 0
    %2479 = vmatprep.subr.bf16.mxu0 0
    %2480 = vmatpush1.bf16.msra.mxu0 0
    %2481 = vmatprep.subr.bf16.mxu0 0
    %2482 = vmatpush1.bf16.msra.mxu0 0
    %2483 = vmatprep.subr.bf16.mxu0 0
    %2484 = vmatpush1.bf16.msra.mxu0 0
    %2485 = vmatprep.subr.bf16.mxu0 0
    %2486 = vmatpush1.bf16.msra.mxu0 0
    %2487 = vmatprep.mubr.bf16.mxu0 0
    %2488 = vmatmul.mubr.bf16.gmra.mrb[0].mxu0 %v2454
    %v2489 = vpop.f32.mrb[0].mxu0
    %v2490 = vadd.f32 0.0, %v2489
    %v2491 = vpop.f32.mrb[0].mxu0
    %v2492 = vadd.f32 0.0, %v2491
    %v2493 = vpop.f32.mrb[0].mxu0
    %v2494 = vpop.f32.mrb[0].mxu0
    %2495 = vdwg.mxu0
    %2496 = vmatprep.subr.bf16.mxu0 0
    %2497 = vmatpush1.bf16.msra.mxu0 %v1977
    %2498 = vmatprep.subr.bf16.mxu0 0
    %2499 = vmatpush1.bf16.msra.mxu0 %v1980
    %2500 = vmatprep.subr.bf16.mxu0 0
    %2501 = vmatpush1.bf16.msra.mxu0 %v1983
    %2502 = vmatprep.subr.bf16.mxu0 0
    %2503 = vmatpush1.bf16.msra.mxu0 %v1986
    %2504 = vmatprep.subr.bf16.mxu0 0
    %2505 = vmatpush1.bf16.msra.mxu0 %v1989
    %2506 = vmatprep.subr.bf16.mxu0 0
    %2507 = vmatpush1.bf16.msra.mxu0 %v1992
    %2508 = vmatprep.subr.bf16.mxu0 0
    %2509 = vmatpush1.bf16.msra.mxu0 %v1995
    %2510 = vmatprep.subr.bf16.mxu0 0
    %2511 = vmatpush1.bf16.msra.mxu0 %v1998
    %2512 = vmatprep.subr.bf16.mxu0 0
    %2513 = vmatpush1.bf16.msra.mxu0 0
    %2514 = vmatprep.subr.bf16.mxu0 0
    %2515 = vmatpush1.bf16.msra.mxu0 0
    %2516 = vmatprep.subr.bf16.mxu0 0
    %2517 = vmatpush1.bf16.msra.mxu0 0
    %2518 = vmatprep.subr.bf16.mxu0 0
    %2519 = vmatpush1.bf16.msra.mxu0 0
    %2520 = vmatprep.subr.bf16.mxu0 0
    %2521 = vmatpush1.bf16.msra.mxu0 0
    %2522 = vmatprep.subr.bf16.mxu0 0
    %2523 = vmatpush1.bf16.msra.mxu0 0
    %2524 = vmatprep.subr.bf16.mxu0 0
    %2525 = vmatpush1.bf16.msra.mxu0 0
    %2526 = vmatprep.subr.bf16.mxu0 0
    %2527 = vmatpush1.bf16.msra.mxu0 0
    %2528 = vmatprep.mubr.bf16.mxu0 0
    %2529 = vmatmul.mubr.bf16.gmra.mrb[0].mxu0 %v2454
    %v2530 = vpop.f32.mrb[0].mxu0
    %v2531 = vadd.f32 0.0, %v2530
    %v2532 = vpop.f32.mrb[0].mxu0
    %v2533 = vpop.f32.mrb[0].mxu0
    %v2534 = vpop.f32.mrb[0].mxu0
    %2535 = vdwg.mxu0
    %v2536 = vadd.f32 %v2451, %v2490
    %v2537 = vadd.f32 %v2452, %v2492
    %v2538 = vxor.u32 %v2536, 2147483648
    %v2539 = vxor.u32 %v2537, 2147483648
    %v2540 = vmul.f32 %v2538, 1.442695
    %v2541 = vpow.pop %v2540
    %v2542 = vmul.f32 %v2539, 1.442695
    %v2543 = vpow.pop %v2542
    %v2544 = vadd.f32 %v2541, 1.0
    %v2545 = vadd.f32 %v2543, 1.0
    %v2546 = vrcp.pop %v2544
    %v2547 = vmul.f32 1.0, %v2546
    %v2548 = vrcp.pop %v2545
    %v2549 = vmul.f32 1.0, %v2548
    %v2550 = vadd.f32 %v2531, %v1883
    %v2551 = vmul.f32 %v2547, %v2550
    %v2552 = vadd.f32 %v2453, %v2551
    %v2553 = vtanh.pop %v2552
    %v2554 = vsub.f32 1.0, %v2549
    %v2555 = vmul.f32 %v2554, %v2553
    %v2556 = vmul.f32 %v2549, %v2449
    %v2557 = vadd.f32 %v2555, %v2556
    %2558 = vst [vmem:[#allocation3 + $0x28] sm:$0xff] %v2557
    %v2559 = vld [vmem:[#allocation2 + $0x90] sm:$0xff]
    %v2560 = vld [vmem:[#allocation2 + $0x98] sm:$0xff]
    %v2561 = vld [vmem:[#allocation2 + $0xa0] sm:$0xff]
    %v2562 = vpack.c.bf16 %v2557, %v2557
    %2563 = vmatprep.subr.bf16.mxu0 %v1976
    %2564 = vmatpush1.bf16.msra.mxu0 %v1975
    %2565 = vmatprep.subr.bf16.mxu0 %v1979
    %2566 = vmatpush1.bf16.msra.mxu0 %v1978
    %2567 = vmatprep.subr.bf16.mxu0 %v1982
    %2568 = vmatpush1.bf16.msra.mxu0 %v1981
    %2569 = vmatprep.subr.bf16.mxu0 %v1985
    %2570 = vmatpush1.bf16.msra.mxu0 %v1984
    %2571 = vmatprep.subr.bf16.mxu0 %v1988
    %2572 = vmatpush1.bf16.msra.mxu0 %v1987
    %2573 = vmatprep.subr.bf16.mxu0 %v1991
    %2574 = vmatpush1.bf16.msra.mxu0 %v1990
    %2575 = vmatprep.subr.bf16.mxu0 %v1994
    %2576 = vmatpush1.bf16.msra.mxu0 %v1993
    %2577 = vmatprep.subr.bf16.mxu0 %v1997
    %2578 = vmatpush1.bf16.msra.mxu0 %v1996
    %2579 = vmatprep.subr.bf16.mxu0 0
    %2580 = vmatpush1.bf16.msra.mxu0 0
    %2581 = vmatprep.subr.bf16.mxu0 0
    %2582 = vmatpush1.bf16.msra.mxu0 0
    %2583 = vmatprep.subr.bf16.mxu0 0
    %2584 = vmatpush1.bf16.msra.mxu0 0
    %2585 = vmatprep.subr.bf16.mxu0 0
    %2586 = vmatpush1.bf16.msra.mxu0 0
    %2587 = vmatprep.subr.bf16.mxu0 0
    %2588 = vmatpush1.bf16.msra.mxu0 0
    %2589 = vmatprep.subr.bf16.mxu0 0
    %2590 = vmatpush1.bf16.msra.mxu0 0
    %2591 = vmatprep.subr.bf16.mxu0 0
    %2592 = vmatpush1.bf16.msra.mxu0 0
    %2593 = vmatprep.subr.bf16.mxu0 0
    %2594 = vmatpush1.bf16.msra.mxu0 0
    %2595 = vmatprep.mubr.bf16.mxu0 0
    %2596 = vmatmul.mubr.bf16.gmra.mrb[0].mxu0 %v2562
    %v2597 = vpop.f32.mrb[0].mxu0
    %v2598 = vadd.f32 0.0, %v2597
    %v2599 = vpop.f32.mrb[0].mxu0
    %v2600 = vadd.f32 0.0, %v2599
    %v2601 = vpop.f32.mrb[0].mxu0
    %v2602 = vpop.f32.mrb[0].mxu0
    %2603 = vdwg.mxu0
    %2604 = vmatprep.subr.bf16.mxu0 0
    %2605 = vmatpush1.bf16.msra.mxu0 %v1977
    %2606 = vmatprep.subr.bf16.mxu0 0
    %2607 = vmatpush1.bf16.msra.mxu0 %v1980
    %2608 = vmatprep.subr.bf16.mxu0 0
    %2609 = vmatpush1.bf16.msra.mxu0 %v1983
    %2610 = vmatprep.subr.bf16.mxu0 0
    %2611 = vmatpush1.bf16.msra.mxu0 %v1986
    %2612 = vmatprep.subr.bf16.mxu0 0
    %2613 = vmatpush1.bf16.msra.mxu0 %v1989
    %2614 = vmatprep.subr.bf16.mxu0 0
    %2615 = vmatpush1.bf16.msra.mxu0 %v1992
    %2616 = vmatprep.subr.bf16.mxu0 0
    %2617 = vmatpush1.bf16.msra.mxu0 %v1995
    %2618 = vmatprep.subr.bf16.mxu0 0
    %2619 = vmatpush1.bf16.msra.mxu0 %v1998
    %2620 = vmatprep.subr.bf16.mxu0 0
    %2621 = vmatpush1.bf16.msra.mxu0 0
    %2622 = vmatprep.subr.bf16.mxu0 0
    %2623 = vmatpush1.bf16.msra.mxu0 0
    %2624 = vmatprep.subr.bf16.mxu0 0
    %2625 = vmatpush1.bf16.msra.mxu0 0
    %2626 = vmatprep.subr.bf16.mxu0 0
    %2627 = vmatpush1.bf16.msra.mxu0 0
    %2628 = vmatprep.subr.bf16.mxu0 0
    %2629 = vmatpush1.bf16.msra.mxu0 0
    %2630 = vmatprep.subr.bf16.mxu0 0
    %2631 = vmatpush1.bf16.msra.mxu0 0
    %2632 = vmatprep.subr.bf16.mxu0 0
    %2633 = vmatpush1.bf16.msra.mxu0 0
    %2634 = vmatprep.subr.bf16.mxu0 0
    %2635 = vmatpush1.bf16.msra.mxu0 0
    %2636 = vmatprep.mubr.bf16.mxu0 0
    %2637 = vmatmul.mubr.bf16.gmra.mrb[0].mxu0 %v2562
    %v2638 = vpop.f32.mrb[0].mxu0
    %v2639 = vadd.f32 0.0, %v2638
    %v2640 = vpop.f32.mrb[0].mxu0
    %v2641 = vpop.f32.mrb[0].mxu0
    %v2642 = vpop.f32.mrb[0].mxu0
    %2643 = vdwg.mxu0
    %v2644 = vadd.f32 %v2559, %v2598
    %v2645 = vadd.f32 %v2560, %v2600
    %v2646 = vxor.u32 %v2644, 2147483648
    %v2647 = vxor.u32 %v2645, 2147483648
    %v2648 = vmul.f32 %v2646, 1.442695
    %v2649 = vpow.pop %v2648
    %v2650 = vmul.f32 %v2647, 1.442695
    %v2651 = vpow.pop %v2650
    %v2652 = vadd.f32 %v2649, 1.0
    %v2653 = vadd.f32 %v2651, 1.0
    %v2654 = vrcp.pop %v2652
    %v2655 = vmul.f32 1.0, %v2654
    %v2656 = vrcp.pop %v2653
    %v2657 = vmul.f32 1.0, %v2656
    %v2658 = vadd.f32 %v2639, %v1883
    %v2659 = vmul.f32 %v2655, %v2658
    %v2660 = vadd.f32 %v2561, %v2659
    %v2661 = vtanh.pop %v2660
    %v2662 = vsub.f32 1.0, %v2657
    %v2663 = vmul.f32 %v2662, %v2661
    %v2664 = vmul.f32 %v2657, %v2557
    %v2665 = vadd.f32 %v2663, %v2664
    %2666 = vst [vmem:[#allocation3 + $0x30] sm:$0xff] %v2665
    %v2667 = vld [vmem:[#allocation2 + $0xa8] sm:$0xff]
    %v2668 = vld [vmem:[#allocation2 + $0xb0] sm:$0xff]
    %v2669 = vld [vmem:[#allocation2 + $0xb8] sm:$0xff]
    %v2670 = vpack.c.bf16 %v2665, %v2665
    %2671 = vmatprep.subr.bf16.mxu0 %v1976
    %2672 = vmatpush1.bf16.msra.mxu0 %v1975
    %2673 = vmatprep.subr.bf16.mxu0 %v1979
    %2674 = vmatpush1.bf16.msra.mxu0 %v1978
    %2675 = vmatprep.subr.bf16.mxu0 %v1982
    %2676 = vmatpush1.bf16.msra.mxu0 %v1981
    %2677 = vmatprep.subr.bf16.mxu0 %v1985
    %2678 = vmatpush1.bf16.msra.mxu0 %v1984
    %2679 = vmatprep.subr.bf16.mxu0 %v1988
    %2680 = vmatpush1.bf16.msra.mxu0 %v1987
    %2681 = vmatprep.subr.bf16.mxu0 %v1991
    %2682 = vmatpush1.bf16.msra.mxu0 %v1990
    %2683 = vmatprep.subr.bf16.mxu0 %v1994
    %2684 = vmatpush1.bf16.msra.mxu0 %v1993
    %2685 = vmatprep.subr.bf16.mxu0 %v1997
    %2686 = vmatpush1.bf16.msra.mxu0 %v1996
    %2687 = vmatprep.subr.bf16.mxu0 0
    %2688 = vmatpush1.bf16.msra.mxu0 0
    %2689 = vmatprep.subr.bf16.mxu0 0
    %2690 = vmatpush1.bf16.msra.mxu0 0
    %2691 = vmatprep.subr.bf16.mxu0 0
    %2692 = vmatpush1.bf16.msra.mxu0 0
    %2693 = vmatprep.subr.bf16.mxu0 0
    %2694 = vmatpush1.bf16.msra.mxu0 0
    %2695 = vmatprep.subr.bf16.mxu0 0
    %2696 = vmatpush1.bf16.msra.mxu0 0
    %2697 = vmatprep.subr.bf16.mxu0 0
    %2698 = vmatpush1.bf16.msra.mxu0 0
    %2699 = vmatprep.subr.bf16.mxu0 0
    %2700 = vmatpush1.bf16.msra.mxu0 0
    %2701 = vmatprep.subr.bf16.mxu0 0
    %2702 = vmatpush1.bf16.msra.mxu0 0
    %2703 = vmatprep.mubr.bf16.mxu0 0
    %2704 = vmatmul.mubr.bf16.gmra.mrb[0].mxu0 %v2670
    %v2705 = vpop.f32.mrb[0].mxu0
    %v2706 = vadd.f32 0.0, %v2705
    %v2707 = vpop.f32.mrb[0].mxu0
    %v2708 = vadd.f32 0.0, %v2707
    %v2709 = vpop.f32.mrb[0].mxu0
    %v2710 = vpop.f32.mrb[0].mxu0
    %2711 = vdwg.mxu0
    %2712 = vmatprep.subr.bf16.mxu0 0
    %2713 = vmatpush1.bf16.msra.mxu0 %v1977
    %2714 = vmatprep.subr.bf16.mxu0 0
    %2715 = vmatpush1.bf16.msra.mxu0 %v1980
    %2716 = vmatprep.subr.bf16.mxu0 0
    %2717 = vmatpush1.bf16.msra.mxu0 %v1983
    %2718 = vmatprep.subr.bf16.mxu0 0
    %2719 = vmatpush1.bf16.msra.mxu0 %v1986
    %2720 = vmatprep.subr.bf16.mxu0 0
    %2721 = vmatpush1.bf16.msra.mxu0 %v1989
    %2722 = vmatprep.subr.bf16.mxu0 0
    %2723 = vmatpush1.bf16.msra.mxu0 %v1992
    %2724 = vmatprep.subr.bf16.mxu0 0
    %2725 = vmatpush1.bf16.msra.mxu0 %v1995
    %2726 = vmatprep.subr.bf16.mxu0 0
    %2727 = vmatpush1.bf16.msra.mxu0 %v1998
    %2728 = vmatprep.subr.bf16.mxu0 0
    %2729 = vmatpush1.bf16.msra.mxu0 0
    %2730 = vmatprep.subr.bf16.mxu0 0
    %2731 = vmatpush1.bf16.msra.mxu0 0
    %2732 = vmatprep.subr.bf16.mxu0 0
    %2733 = vmatpush1.bf16.msra.mxu0 0
    %2734 = vmatprep.subr.bf16.mxu0 0
    %2735 = vmatpush1.bf16.msra.mxu0 0
    %2736 = vmatprep.subr.bf16.mxu0 0
    %2737 = vmatpush1.bf16.msra.mxu0 0
    %2738 = vmatprep.subr.bf16.mxu0 0
    %2739 = vmatpush1.bf16.msra.mxu0 0
    %2740 = vmatprep.subr.bf16.mxu0 0
    %2741 = vmatpush1.bf16.msra.mxu0 0
    %2742 = vmatprep.subr.bf16.mxu0 0
    %2743 = vmatpush1.bf16.msra.mxu0 0
    %2744 = vmatprep.mubr.bf16.mxu0 0
    %2745 = vmatmul.mubr.bf16.gmra.mrb[0].mxu0 %v2670
    %v2746 = vpop.f32.mrb[0].mxu0
    %v2747 = vadd.f32 0.0, %v2746
    %v2748 = vpop.f32.mrb[0].mxu0
    %v2749 = vpop.f32.mrb[0].mxu0
    %v2750 = vpop.f32.mrb[0].mxu0
    %2751 = vdwg.mxu0
    %v2752 = vadd.f32 %v2667, %v2706
    %v2753 = vadd.f32 %v2668, %v2708
    %v2754 = vxor.u32 %v2752, 2147483648
    %v2755 = vxor.u32 %v2753, 2147483648
    %v2756 = vmul.f32 %v2754, 1.442695
    %v2757 = vpow.pop %v2756
    %v2758 = vmul.f32 %v2755, 1.442695
    %v2759 = vpow.pop %v2758
    %v2760 = vadd.f32 %v2757, 1.0
    %v2761 = vadd.f32 %v2759, 1.0
    %v2762 = vrcp.pop %v2760
    %v2763 = vmul.f32 1.0, %v2762
    %v2764 = vrcp.pop %v2761
    %v2765 = vmul.f32 1.0, %v2764
    %v2766 = vadd.f32 %v2747, %v1883
    %v2767 = vmul.f32 %v2763, %v2766
    %v2768 = vadd.f32 %v2669, %v2767
    %v2769 = vtanh.pop %v2768
    %v2770 = vsub.f32 1.0, %v2765
    %v2771 = vmul.f32 %v2770, %v2769
    %v2772 = vmul.f32 %v2765, %v2665
    %v2773 = vadd.f32 %v2771, %v2772
    %2774 = vst [vmem:[#allocation3 + $0x38] sm:$0xff] %v2773
    %v2775 = vld [vmem:[#allocation3] sm:$0xff]
    %v2776 = vld [vmem:[#allocation3 + $0x8] sm:$0xff]
    %v2777 = vld [vmem:[#allocation3 + $0x10] sm:$0xff]
    %v2778 = vld [vmem:[#allocation3 + $0x18] sm:$0xff]
    %v2779 = vld [vmem:[#allocation3 + $0x20] sm:$0xff]
    %v2780 = vld [vmem:[#allocation3 + $0x28] sm:$0xff]
    %v2781 = vld [vmem:[#allocation3 + $0x30] sm:$0xff]
    %v2782 = vld [vmem:[#allocation3 + $0x38] sm:$0xff]
    %v2783 = vpack.c.bf16 %v2776, %v2775
    %v2784 = vpack.c.bf16 %v2778, %v2777
    %v2785 = vpack.c.bf16 %v2780, %v2779
    %v2786 = vpack.c.bf16 %v2782, %v2781
    %v2787 = vld [vmem:[%s11] sm:$0xff]
    %v2788 = vld [vmem:[%s11 + $0x8] sm:$0xf]
    %v2789 = vld [vmem:[%s11 + $0xc] sm:$0xff]
    %v2790 = vld [vmem:[%s11 + $0x14] sm:$0xf]
    %v2791 = vld [vmem:[%s11 + $0x18] sm:$0xff]
    %v2792 = vld [vmem:[%s11 + $0x20] sm:$0xf]
    %v2793 = vld [vmem:[%s11 + $0x24] sm:$0xff]
    %v2794 = vld [vmem:[%s11 + $0x2c] sm:$0xf]
    %v2795 = vld [vmem:[%s11 + $0x30] sm:$0xff]
    %v2796 = vld [vmem:[%s11 + $0x38] sm:$0xf]
    %v2797 = vld [vmem:[%s11 + $0x3c] sm:$0xff]
    %v2798 = vld [vmem:[%s11 + $0x44] sm:$0xf]
    %v2799 = vld [vmem:[%s11 + $0x48] sm:$0xff]
    %v2800 = vld [vmem:[%s11 + $0x50] sm:$0xf]
    %v2801 = vld [vmem:[%s11 + $0x54] sm:$0xff]
    %v2802 = vld [vmem:[%s11 + $0x5c] sm:$0xf]
    %v2803 = vld [vmem:[%s11 + $0x60] sm:$0xff]
    %v2804 = vld [vmem:[%s11 + $0x68] sm:$0xf]
    %v2805 = vld [vmem:[%s11 + $0x6c] sm:$0xff]
    %v2806 = vld [vmem:[%s11 + $0x74] sm:$0xf]
    %v2807 = vld [vmem:[%s11 + $0x78] sm:$0xff]
    %v2808 = vld [vmem:[%s11 + $0x80] sm:$0xf]
    %v2809 = vld [vmem:[%s11 + $0x84] sm:$0xff]
    %v2810 = vld [vmem:[%s11 + $0x8c] sm:$0xf]
    %v2811 = vld [vmem:[%s11 + $0x90] sm:$0xff]
    %v2812 = vld [vmem:[%s11 + $0x98] sm:$0xf]
    %v2813 = vld [vmem:[%s11 + $0x9c] sm:$0xff]
    %v2814 = vld [vmem:[%s11 + $0xa4] sm:$0xf]
    %v2815 = vld [vmem:[%s11 + $0xa8] sm:$0xff]
    %v2816 = vld [vmem:[%s11 + $0xb0] sm:$0xf]
    %v2817 = vld [vmem:[%s11 + $0xb4] sm:$0xff]
    %v2818 = vld [vmem:[%s11 + $0xbc] sm:$0xf]
    %v2819 = vld [vmem:[#allocation19] sm:$0x7]
    %v2821 = vlaneseq
    %v2822 = vshrl.u32 %v2821, 7
    %v2823 = vsub.s32 0, %v2822
    %v2824 = vrot.slane %v2819, %v2823
    %v2825 = vlaneseq
    %v2826 = vshrl.u32 %v2825, 7
    %v2827 = vsub.s32 1, %v2826
    %v2828 = vrot.slane %v2819, %v2827
    %v2829 = vlaneseq
    %v2830 = vshrl.u32 %v2829, 7
    %v2831 = vsub.s32 2, %v2830
    %v2832 = vrot.slane %v2819, %v2831
    %v2868 = vunpack.c.l.b16 %v2787
    %v2869 = vunpack.c.h.b16 %v2787
    %v2870 = vunpack.c.l.b16 %v2788
    %v2871 = vunpack.c.l.b16 %v2789
    %v2872 = vunpack.c.h.b16 %v2789
    %v2873 = vunpack.c.l.b16 %v2790
    %v2874 = vunpack.c.l.b16 %v2791
    %v2875 = vunpack.c.h.b16 %v2791
    %v2876 = vunpack.c.l.b16 %v2792
    %v2877 = vunpack.c.l.b16 %v2793
    %v2878 = vunpack.c.h.b16 %v2793
    %v2879 = vunpack.c.l.b16 %v2794
    %v2880 = vunpack.c.l.b16 %v2795
    %v2881 = vunpack.c.h.b16 %v2795
    %v2882 = vunpack.c.l.b16 %v2796
    %v2883 = vunpack.c.l.b16 %v2797
    %v2884 = vunpack.c.h.b16 %v2797
    %v2885 = vunpack.c.l.b16 %v2798
    %v2886 = vunpack.c.l.b16 %v2799
    %v2887 = vunpack.c.h.b16 %v2799
    %v2888 = vunpack.c.l.b16 %v2800
    %v2889 = vunpack.c.l.b16 %v2801
    %v2890 = vunpack.c.h.b16 %v2801
    %v2891 = vunpack.c.l.b16 %v2802
    %v2892 = vunpack.c.l.b16 %v2803
    %v2893 = vunpack.c.h.b16 %v2803
    %v2894 = vunpack.c.l.b16 %v2804
    %v2895 = vunpack.c.l.b16 %v2805
    %v2896 = vunpack.c.h.b16 %v2805
    %v2897 = vunpack.c.l.b16 %v2806
    %v2898 = vunpack.c.l.b16 %v2807
    %v2899 = vunpack.c.h.b16 %v2807
    %v2900 = vunpack.c.l.b16 %v2808
    %v2901 = vunpack.c.l.b16 %v2809
    %v2902 = vunpack.c.h.b16 %v2809
    %v2903 = vunpack.c.l.b16 %v2810
    %v2904 = vunpack.c.l.b16 %v2811
    %v2905 = vunpack.c.h.b16 %v2811
    %v2906 = vunpack.c.l.b16 %v2812
    %v2907 = vunpack.c.l.b16 %v2813
    %v2908 = vunpack.c.h.b16 %v2813
    %v2909 = vunpack.c.l.b16 %v2814
    %v2910 = vunpack.c.l.b16 %v2815
    %v2911 = vunpack.c.h.b16 %v2815
    %v2912 = vunpack.c.l.b16 %v2816
    %v2913 = vunpack.c.l.b16 %v2817
    %v2914 = vunpack.c.h.b16 %v2817
    %v2915 = vunpack.c.l.b16 %v2818
    %v2916 = vpack.c.b16 %v2871, %v2868
    %v2917 = vpack.c.b16 %v2872, %v2869
    %v2918 = vpack.c.b16 %v2873, %v2870
    %v2919 = vpack.c.b16 %v2877, %v2874
    %v2920 = vpack.c.b16 %v2878, %v2875
    %v2921 = vpack.c.b16 %v2879, %v2876
    %v2922 = vpack.c.b16 %v2883, %v2880
    %v2923 = vpack.c.b16 %v2884, %v2881
    %v2924 = vpack.c.b16 %v2885, %v2882
    %v2925 = vpack.c.b16 %v2889, %v2886
    %v2926 = vpack.c.b16 %v2890, %v2887
    %v2927 = vpack.c.b16 %v2891, %v2888
    %v2928 = vpack.c.b16 %v2895, %v2892
    %v2929 = vpack.c.b16 %v2896, %v2893
    %v2930 = vpack.c.b16 %v2897, %v2894
    %v2931 = vpack.c.b16 %v2901, %v2898
    %v2932 = vpack.c.b16 %v2902, %v2899
    %v2933 = vpack.c.b16 %v2903, %v2900
    %v2934 = vpack.c.b16 %v2907, %v2904
    %v2935 = vpack.c.b16 %v2908, %v2905
    %v2936 = vpack.c.b16 %v2909, %v2906
    %v2937 = vpack.c.b16 %v2913, %v2910
    %v2938 = vpack.c.b16 %v2914, %v2911
    %v2939 = vpack.c.b16 %v2915, %v2912
    %2964 = vmatprep.subr.bf16.mxu0 %v2917
    %2965 = vmatpush1.bf16.msra.mxu0 %v2916
    %2966 = vmatprep.subr.bf16.mxu0 %v2920
    %2967 = vmatpush1.bf16.msra.mxu0 %v2919
    %2968 = vmatprep.subr.bf16.mxu0 %v2923
    %2969 = vmatpush1.bf16.msra.mxu0 %v2922
    %2970 = vmatprep.subr.bf16.mxu0 %v2926
    %2971 = vmatpush1.bf16.msra.mxu0 %v2925
    %2972 = vmatprep.subr.bf16.mxu0 %v2929
    %2973 = vmatpush1.bf16.msra.mxu0 %v2928
    %2974 = vmatprep.subr.bf16.mxu0 %v2932
    %2975 = vmatpush1.bf16.msra.mxu0 %v2931
    %2976 = vmatprep.subr.bf16.mxu0 %v2935
    %2977 = vmatpush1.bf16.msra.mxu0 %v2934
    %2978 = vmatprep.subr.bf16.mxu0 %v2938
    %2979 = vmatpush1.bf16.msra.mxu0 %v2937
    %2980 = vmatprep.subr.bf16.mxu0 0
    %2981 = vmatpush1.bf16.msra.mxu0 0
    %2982 = vmatprep.subr.bf16.mxu0 0
    %2983 = vmatpush1.bf16.msra.mxu0 0
    %2984 = vmatprep.subr.bf16.mxu0 0
    %2985 = vmatpush1.bf16.msra.mxu0 0
    %2986 = vmatprep.subr.bf16.mxu0 0
    %2987 = vmatpush1.bf16.msra.mxu0 0
    %2988 = vmatprep.subr.bf16.mxu0 0
    %2989 = vmatpush1.bf16.msra.mxu0 0
    %2990 = vmatprep.subr.bf16.mxu0 0
    %2991 = vmatpush1.bf16.msra.mxu0 0
    %2992 = vmatprep.subr.bf16.mxu0 0
    %2993 = vmatpush1.bf16.msra.mxu0 0
    %2994 = vmatprep.subr.bf16.mxu0 0
    %2995 = vmatpush1.bf16.msra.mxu0 0
    %2996 = vmatprep.mubr.bf16.mxu0 0
    %2997 = vmatmul.mubr.bf16.gmra.mrb[0].mxu0 %v2783
    %v2998 = vpop.f32.mrb[0].mxu0
    %v2999 = vadd.f32 %v2824, %v2998
    %v3000 = vpop.f32.mrb[0].mxu0
    %v3001 = vadd.f32 %v2828, %v3000
    %v3002 = vpop.f32.mrb[0].mxu0
    %v3003 = vadd.f32 %v2824, %v3002
    %v3004 = vpop.f32.mrb[0].mxu0
    %v3005 = vadd.f32 %v2828, %v3004
    %3006 = vmatprep.mubr.bf16.mxu0 0
    %3007 = vmatmul.mubr.bf16.gmra.mrb[0].mxu0 %v2784
    %v3008 = vpop.f32.mrb[0].mxu0
    %v3009 = vadd.f32 %v2824, %v3008
    %v3010 = vpop.f32.mrb[0].mxu0
    %v3011 = vadd.f32 %v2828, %v3010
    %v3012 = vpop.f32.mrb[0].mxu0
    %v3013 = vadd.f32 %v2824, %v3012
    %v3014 = vpop.f32.mrb[0].mxu0
    %v3015 = vadd.f32 %v2828, %v3014
    %3016 = vmatprep.mubr.bf16.mxu0 0
    %3017 = vmatmul.mubr.bf16.gmra.mrb[0].mxu0 %v2785
    %v3018 = vpop.f32.mrb[0].mxu0
    %v3019 = vadd.f32 %v2824, %v3018
    %v3020 = vpop.f32.mrb[0].mxu0
    %v3021 = vadd.f32 %v2828, %v3020
    %v3022 = vpop.f32.mrb[0].mxu0
    %v3023 = vadd.f32 %v2824, %v3022
    %v3024 = vpop.f32.mrb[0].mxu0
    %v3025 = vadd.f32 %v2828, %v3024
    %3026 = vmatprep.mubr.bf16.mxu0 0
    %3027 = vmatmul.mubr.bf16.gmra.mrb[0].mxu0 %v2786
    %v3028 = vpop.f32.mrb[0].mxu0
    %v3029 = vadd.f32 %v2824, %v3028
    %v3030 = vpop.f32.mrb[0].mxu0
    %v3031 = vadd.f32 %v2828, %v3030
    %v3032 = vpop.f32.mrb[0].mxu0
    %v3033 = vadd.f32 %v2824, %v3032
    %v3034 = vpop.f32.mrb[0].mxu0
    %v3035 = vadd.f32 %v2828, %v3034
    %3036 = vdwg.mxu0
    %3037 = vmatprep.subr.bf16.mxu0 0
    %3038 = vmatpush1.bf16.msra.mxu0 %v2918
    %3039 = vmatprep.subr.bf16.mxu0 0
    %3040 = vmatpush1.bf16.msra.mxu0 %v2921
    %3041 = vmatprep.subr.bf16.mxu0 0
    %3042 = vmatpush1.bf16.msra.mxu0 %v2924
    %3043 = vmatprep.subr.bf16.mxu0 0
    %3044 = vmatpush1.bf16.msra.mxu0 %v2927
    %3045 = vmatprep.subr.bf16.mxu0 0
    %3046 = vmatpush1.bf16.msra.mxu0 %v2930
    %3047 = vmatprep.subr.bf16.mxu0 0
    %3048 = vmatpush1.bf16.msra.mxu0 %v2933
    %3049 = vmatprep.subr.bf16.mxu0 0
    %3050 = vmatpush1.bf16.msra.mxu0 %v2936
    %3051 = vmatprep.subr.bf16.mxu0 0
    %3052 = vmatpush1.bf16.msra.mxu0 %v2939
    %3053 = vmatprep.subr.bf16.mxu0 0
    %3054 = vmatpush1.bf16.msra.mxu0 0
    %3055 = vmatprep.subr.bf16.mxu0 0
    %3056 = vmatpush1.bf16.msra.mxu0 0
    %3057 = vmatprep.subr.bf16.mxu0 0
    %3058 = vmatpush1.bf16.msra.mxu0 0
    %3059 = vmatprep.subr.bf16.mxu0 0
    %3060 = vmatpush1.bf16.msra.mxu0 0
    %3061 = vmatprep.subr.bf16.mxu0 0
    %3062 = vmatpush1.bf16.msra.mxu0 0
    %3063 = vmatprep.subr.bf16.mxu0 0
    %3064 = vmatpush1.bf16.msra.mxu0 0
    %3065 = vmatprep.subr.bf16.mxu0 0
    %3066 = vmatpush1.bf16.msra.mxu0 0
    %3067 = vmatprep.subr.bf16.mxu0 0
    %3068 = vmatpush1.bf16.msra.mxu0 0
    %3069 = vmatprep.mubr.bf16.mxu0 0
    %3070 = vmatmul.mubr.bf16.gmra.mrb[0].mxu0 %v2783
    %v3071 = vpop.f32.mrb[0].mxu0
    %v3072 = vadd.f32 %v2832, %v3071
    %v3073 = vpop.f32.mrb[0].mxu0
    %v3074 = vpop.f32.mrb[0].mxu0
    %v3075 = vadd.f32 %v2832, %v3074
    %v3076 = vpop.f32.mrb[0].mxu0
    %3077 = vmatprep.mubr.bf16.mxu0 0
    %3078 = vmatmul.mubr.bf16.gmra.mrb[0].mxu0 %v2784
    %v3079 = vpop.f32.mrb[0].mxu0
    %v3080 = vadd.f32 %v2832, %v3079
    %v3081 = vpop.f32.mrb[0].mxu0
    %v3082 = vpop.f32.mrb[0].mxu0
    %v3083 = vadd.f32 %v2832, %v3082
    %v3084 = vpop.f32.mrb[0].mxu0
    %3085 = vmatprep.mubr.bf16.mxu0 0
    %3086 = vmatmul.mubr.bf16.gmra.mrb[0].mxu0 %v2785
    %v3087 = vpop.f32.mrb[0].mxu0
    %v3088 = vadd.f32 %v2832, %v3087
    %v3089 = vpop.f32.mrb[0].mxu0
    %v3090 = vpop.f32.mrb[0].mxu0
    %v3091 = vadd.f32 %v2832, %v3090
    %v3092 = vpop.f32.mrb[0].mxu0
    %3093 = vmatprep.mubr.bf16.mxu0 0
    %3094 = vmatmul.mubr.bf16.gmra.mrb[0].mxu0 %v2786
    %v3095 = vpop.f32.mrb[0].mxu0
    %v3096 = vadd.f32 %v2832, %v3095
    %v3097 = vpop.f32.mrb[0].mxu0
    %v3098 = vpop.f32.mrb[0].mxu0
    %v3099 = vadd.f32 %v2832, %v3098
    %v3100 = vpop.f32.mrb[0].mxu0
    %3101 = vdwg.mxu0
    %3102 = vst [vmem:[#allocation2] sm:$0xff] %v2999
    %3103 = vst [vmem:[#allocation2 + $0x8] sm:$0xff] %v3001
    %3104 = vst [vmem:[#allocation2 + $0x10] sm:$0xff] %v3072
    %3105 = vst [vmem:[#allocation2 + $0x18] sm:$0xff] %v3003
    %3106 = vst [vmem:[#allocation2 + $0x20] sm:$0xff] %v3005
    %3107 = vst [vmem:[#allocation2 + $0x28] sm:$0xff] %v3075
    %3108 = vst [vmem:[#allocation2 + $0x30] sm:$0xff] %v3009
    %3109 = vst [vmem:[#allocation2 + $0x38] sm:$0xff] %v3011
    %3110 = vst [vmem:[#allocation2 + $0x40] sm:$0xff] %v3080
    %3111 = vst [vmem:[#allocation2 + $0x48] sm:$0xff] %v3013
    %3112 = vst [vmem:[#allocation2 + $0x50] sm:$0xff] %v3015
    %3113 = vst [vmem:[#allocation2 + $0x58] sm:$0xff] %v3083
    %3114 = vst [vmem:[#allocation2 + $0x60] sm:$0xff] %v3019
    %3115 = vst [vmem:[#allocation2 + $0x68] sm:$0xff] %v3021
    %3116 = vst [vmem:[#allocation2 + $0x70] sm:$0xff] %v3088
    %3117 = vst [vmem:[#allocation2 + $0x78] sm:$0xff] %v3023
    %3118 = vst [vmem:[#allocation2 + $0x80] sm:$0xff] %v3025
    %3119 = vst [vmem:[#allocation2 + $0x88] sm:$0xff] %v3091
    %3120 = vst [vmem:[#allocation2 + $0x90] sm:$0xff] %v3029
    %3121 = vst [vmem:[#allocation2 + $0x98] sm:$0xff] %v3031
    %3122 = vst [vmem:[#allocation2 + $0xa0] sm:$0xff] %v3096
    %3123 = vst [vmem:[#allocation2 + $0xa8] sm:$0xff] %v3033
    %3124 = vst [vmem:[#allocation2 + $0xb0] sm:$0xff] %v3035
    %3125 = vst [vmem:[#allocation2 + $0xb8] sm:$0xff] %v3099
    %v3126 = vld [vmem:[#allocation18] sm:$0xff]
    %v3127 = vld [vmem:[#allocation18 + $0x8] sm:$0xf]
    %v3128 = vld [vmem:[#allocation18 + $0xc] sm:$0xff]
    %v3129 = vld [vmem:[#allocation18 + $0x14] sm:$0xf]
    %v3130 = vld [vmem:[#allocation18 + $0x18] sm:$0xff]
    %v3131 = vld [vmem:[#allocation18 + $0x20] sm:$0xf]
    %v3132 = vld [vmem:[#allocation18 + $0x24] sm:$0xff]
    %v3133 = vld [vmem:[#allocation18 + $0x2c] sm:$0xf]
    %v3134 = vld [vmem:[#allocation18 + $0x30] sm:$0xff]
    %v3135 = vld [vmem:[#allocation18 + $0x38] sm:$0xf]
    %v3136 = vld [vmem:[#allocation18 + $0x3c] sm:$0xff]
    %v3137 = vld [vmem:[#allocation18 + $0x44] sm:$0xf]
    %v3138 = vld [vmem:[#allocation18 + $0x48] sm:$0xff]
    %v3139 = vld [vmem:[#allocation18 + $0x50] sm:$0xf]
    %v3140 = vld [vmem:[#allocation18 + $0x54] sm:$0xff]
    %v3141 = vld [vmem:[#allocation18 + $0x5c] sm:$0xf]
    %v3142 = vld [vmem:[#allocation18 + $0x60] sm:$0xff]
    %v3143 = vld [vmem:[#allocation18 + $0x68] sm:$0xf]
    %v3144 = vld [vmem:[#allocation18 + $0x6c] sm:$0xff]
    %v3145 = vld [vmem:[#allocation18 + $0x74] sm:$0xf]
    %v3146 = vld [vmem:[#allocation18 + $0x78] sm:$0xff]
    %v3147 = vld [vmem:[#allocation18 + $0x80] sm:$0xf]
    %v3148 = vld [vmem:[#allocation18 + $0x84] sm:$0xff]
    %v3149 = vld [vmem:[#allocation18 + $0x8c] sm:$0xf]
    %v3150 = vld [vmem:[#allocation18 + $0x90] sm:$0xff]
    %v3151 = vld [vmem:[#allocation18 + $0x98] sm:$0xf]
    %v3152 = vld [vmem:[#allocation18 + $0x9c] sm:$0xff]
    %v3153 = vld [vmem:[#allocation18 + $0xa4] sm:$0xf]
    %v3154 = vld [vmem:[#allocation18 + $0xa8] sm:$0xff]
    %v3155 = vld [vmem:[#allocation18 + $0xb0] sm:$0xf]
    %v3156 = vld [vmem:[#allocation18 + $0xb4] sm:$0xff]
    %v3157 = vld [vmem:[#allocation18 + $0xbc] sm:$0xf]
    %v3158 = vld [vmem:[#allocation21] sm:$0x1]
    %v3159 = vld [vmem:[#allocation2] sm:$0xff]
    %v3160 = vld [vmem:[#allocation2 + $0x8] sm:$0xff]
    %v3161 = vld [vmem:[#allocation2 + $0x10] sm:$0xff]
    %v3162 = vxor.u32 %v3159, 2147483648
    %v3163 = vxor.u32 %v3160, 2147483648
    %v3164 = vmul.f32 %v3162, 1.442695
    %v3165 = vpow.pop %v3164
    %v3166 = vmul.f32 %v3163, 1.442695
    %v3167 = vpow.pop %v3166
    %v3168 = vadd.f32 %v3165, 1.0
    %v3169 = vadd.f32 %v3167, 1.0
    %v3170 = vrcp.pop %v3168
    %v3171 = vmul.f32 1.0, %v3170
    %v3172 = vrcp.pop %v3169
    %v3173 = vmul.f32 1.0, %v3172
    %v3175 = vlaneseq
    %v3176 = vshrl.u32 %v3175, 7
    %v3177 = vsub.s32 0, %v3176
    %v3178 = vrot.slane %v3158, %v3177
    %v3180 = vmul.f32 %v3171, %v3178
    %v3181 = vadd.f32 %v3161, %v3180
    %v3182 = vtanh.pop %v3181
    %v3183 = vsub.f32 1.0, %v3173
    %v3184 = vmul.f32 %v3183, %v3182
    %v3185 = vld [vmem:[#allocation2 + $0x18] sm:$0xff]
    %v3186 = vld [vmem:[#allocation2 + $0x20] sm:$0xff]
    %v3187 = vld [vmem:[#allocation2 + $0x28] sm:$0xff]
    %v3188 = vpack.c.bf16 %v3184, %v3184
    %v3221 = vunpack.c.l.b16 %v3126
    %v3222 = vunpack.c.h.b16 %v3126
    %v3223 = vunpack.c.l.b16 %v3127
    %v3224 = vunpack.c.l.b16 %v3128
    %v3225 = vunpack.c.h.b16 %v3128
    %v3226 = vunpack.c.l.b16 %v3129
    %v3227 = vunpack.c.l.b16 %v3130
    %v3228 = vunpack.c.h.b16 %v3130
    %v3229 = vunpack.c.l.b16 %v3131
    %v3230 = vunpack.c.l.b16 %v3132
    %v3231 = vunpack.c.h.b16 %v3132
    %v3232 = vunpack.c.l.b16 %v3133
    %v3233 = vunpack.c.l.b16 %v3134
    %v3234 = vunpack.c.h.b16 %v3134
    %v3235 = vunpack.c.l.b16 %v3135
    %v3236 = vunpack.c.l.b16 %v3136
    %v3237 = vunpack.c.h.b16 %v3136
    %v3238 = vunpack.c.l.b16 %v3137
    %v3239 = vunpack.c.l.b16 %v3138
    %v3240 = vunpack.c.h.b16 %v3138
    %v3241 = vunpack.c.l.b16 %v3139
    %v3242 = vunpack.c.l.b16 %v3140
    %v3243 = vunpack.c.h.b16 %v3140
    %v3244 = vunpack.c.l.b16 %v3141
    %v3245 = vunpack.c.l.b16 %v3142
    %v3246 = vunpack.c.h.b16 %v3142
    %v3247 = vunpack.c.l.b16 %v3143
    %v3248 = vunpack.c.l.b16 %v3144
    %v3249 = vunpack.c.h.b16 %v3144
    %v3250 = vunpack.c.l.b16 %v3145
    %v3251 = vunpack.c.l.b16 %v3146
    %v3252 = vunpack.c.h.b16 %v3146
    %v3253 = vunpack.c.l.b16 %v3147
    %v3254 = vunpack.c.l.b16 %v3148
    %v3255 = vunpack.c.h.b16 %v3148
    %v3256 = vunpack.c.l.b16 %v3149
    %v3257 = vunpack.c.l.b16 %v3150
    %v3258 = vunpack.c.h.b16 %v3150
    %v3259 = vunpack.c.l.b16 %v3151
    %v3260 = vunpack.c.l.b16 %v3152
    %v3261 = vunpack.c.h.b16 %v3152
    %v3262 = vunpack.c.l.b16 %v3153
    %v3263 = vunpack.c.l.b16 %v3154
    %v3264 = vunpack.c.h.b16 %v3154
    %v3265 = vunpack.c.l.b16 %v3155
    %v3266 = vunpack.c.l.b16 %v3156
    %v3267 = vunpack.c.h.b16 %v3156
    %v3268 = vunpack.c.l.b16 %v3157
    %v3269 = vpack.c.b16 %v3224, %v3221
    %v3270 = vpack.c.b16 %v3225, %v3222
    %v3271 = vpack.c.b16 %v3226, %v3223
    %v3272 = vpack.c.b16 %v3230, %v3227
    %v3273 = vpack.c.b16 %v3231, %v3228
    %v3274 = vpack.c.b16 %v3232, %v3229
    %v3275 = vpack.c.b16 %v3236, %v3233
    %v3276 = vpack.c.b16 %v3237, %v3234
    %v3277 = vpack.c.b16 %v3238, %v3235
    %v3278 = vpack.c.b16 %v3242, %v3239
    %v3279 = vpack.c.b16 %v3243, %v3240
    %v3280 = vpack.c.b16 %v3244, %v3241
    %v3281 = vpack.c.b16 %v3248, %v3245
    %v3282 = vpack.c.b16 %v3249, %v3246
    %v3283 = vpack.c.b16 %v3250, %v3247
    %v3284 = vpack.c.b16 %v3254, %v3251
    %v3285 = vpack.c.b16 %v3255, %v3252
    %v3286 = vpack.c.b16 %v3256, %v3253
    %v3287 = vpack.c.b16 %v3260, %v3257
    %v3288 = vpack.c.b16 %v3261, %v3258
    %v3289 = vpack.c.b16 %v3262, %v3259
    %v3290 = vpack.c.b16 %v3266, %v3263
    %v3291 = vpack.c.b16 %v3267, %v3264
    %v3292 = vpack.c.b16 %v3268, %v3265
    %3317 = vmatprep.subr.bf16.mxu0 %v3270
    %3318 = vmatpush1.bf16.msra.mxu0 %v3269
    %3319 = vmatprep.subr.bf16.mxu0 %v3273
    %3320 = vmatpush1.bf16.msra.mxu0 %v3272
    %3321 = vmatprep.subr.bf16.mxu0 %v3276
    %3322 = vmatpush1.bf16.msra.mxu0 %v3275
    %3323 = vmatprep.subr.bf16.mxu0 %v3279
    %3324 = vmatpush1.bf16.msra.mxu0 %v3278
    %3325 = vmatprep.subr.bf16.mxu0 %v3282
    %3326 = vmatpush1.bf16.msra.mxu0 %v3281
    %3327 = vmatprep.subr.bf16.mxu0 %v3285
    %3328 = vmatpush1.bf16.msra.mxu0 %v3284
    %3329 = vmatprep.subr.bf16.mxu0 %v3288
    %3330 = vmatpush1.bf16.msra.mxu0 %v3287
    %3331 = vmatprep.subr.bf16.mxu0 %v3291
    %3332 = vmatpush1.bf16.msra.mxu0 %v3290
    %3333 = vmatprep.subr.bf16.mxu0 0
    %3334 = vmatpush1.bf16.msra.mxu0 0
    %3335 = vmatprep.subr.bf16.mxu0 0
    %3336 = vmatpush1.bf16.msra.mxu0 0
    %3337 = vmatprep.subr.bf16.mxu0 0
    %3338 = vmatpush1.bf16.msra.mxu0 0
    %3339 = vmatprep.subr.bf16.mxu0 0
    %3340 = vmatpush1.bf16.msra.mxu0 0
    %3341 = vmatprep.subr.bf16.mxu0 0
    %3342 = vmatpush1.bf16.msra.mxu0 0
    %3343 = vmatprep.subr.bf16.mxu0 0
    %3344 = vmatpush1.bf16.msra.mxu0 0
    %3345 = vmatprep.subr.bf16.mxu0 0
    %3346 = vmatpush1.bf16.msra.mxu0 0
    %3347 = vmatprep.subr.bf16.mxu0 0
    %3348 = vmatpush1.bf16.msra.mxu0 0
    %3349 = vmatprep.mubr.bf16.mxu0 0
    %3350 = vmatmul.mubr.bf16.gmra.mrb[0].mxu0 %v3188
    %v3351 = vpop.f32.mrb[0].mxu0
    %v3352 = vadd.f32 0.0, %v3351
    %v3353 = vpop.f32.mrb[0].mxu0
    %v3354 = vadd.f32 0.0, %v3353
    %v3355 = vpop.f32.mrb[0].mxu0
    %v3356 = vpop.f32.mrb[0].mxu0
    %3357 = vdwg.mxu0
    %3358 = vmatprep.subr.bf16.mxu0 0
    %3359 = vmatpush1.bf16.msra.mxu0 %v3271
    %3360 = vmatprep.subr.bf16.mxu0 0
    %3361 = vmatpush1.bf16.msra.mxu0 %v3274
    %3362 = vmatprep.subr.bf16.mxu0 0
    %3363 = vmatpush1.bf16.msra.mxu0 %v3277
    %3364 = vmatprep.subr.bf16.mxu0 0
    %3365 = vmatpush1.bf16.msra.mxu0 %v3280
    %3366 = vmatprep.subr.bf16.mxu0 0
    %3367 = vmatpush1.bf16.msra.mxu0 %v3283
    %3368 = vmatprep.subr.bf16.mxu0 0
    %3369 = vmatpush1.bf16.msra.mxu0 %v3286
    %3370 = vmatprep.subr.bf16.mxu0 0
    %3371 = vmatpush1.bf16.msra.mxu0 %v3289
    %3372 = vmatprep.subr.bf16.mxu0 0
    %3373 = vmatpush1.bf16.msra.mxu0 %v3292
    %3374 = vmatprep.subr.bf16.mxu0 0
    %3375 = vmatpush1.bf16.msra.mxu0 0
    %3376 = vmatprep.subr.bf16.mxu0 0
    %3377 = vmatpush1.bf16.msra.mxu0 0
    %3378 = vmatprep.subr.bf16.mxu0 0
    %3379 = vmatpush1.bf16.msra.mxu0 0
    %3380 = vmatprep.subr.bf16.mxu0 0
    %3381 = vmatpush1.bf16.msra.mxu0 0
    %3382 = vmatprep.subr.bf16.mxu0 0
    %3383 = vmatpush1.bf16.msra.mxu0 0
    %3384 = vmatprep.subr.bf16.mxu0 0
    %3385 = vmatpush1.bf16.msra.mxu0 0
    %3386 = vmatprep.subr.bf16.mxu0 0
    %3387 = vmatpush1.bf16.msra.mxu0 0
    %3388 = vmatprep.subr.bf16.mxu0 0
    %3389 = vmatpush1.bf16.msra.mxu0 0
    %3390 = vmatprep.mubr.bf16.mxu0 0
    %3391 = vmatmul.mubr.bf16.gmra.mrb[0].mxu0 %v3188
    %v3392 = vpop.f32.mrb[0].mxu0
    %v3393 = vadd.f32 0.0, %v3392
    %v3394 = vpop.f32.mrb[0].mxu0
    %v3395 = vpop.f32.mrb[0].mxu0
    %v3396 = vpop.f32.mrb[0].mxu0
    %3397 = vdwg.mxu0
    %v3398 = vadd.f32 %v3185, %v3352
    %v3399 = vadd.f32 %v3186, %v3354
    %v3400 = vxor.u32 %v3398, 2147483648
    %v3401 = vxor.u32 %v3399, 2147483648
    %v3402 = vmul.f32 %v3400, 1.442695
    %v3403 = vpow.pop %v3402
    %v3404 = vmul.f32 %v3401, 1.442695
    %v3405 = vpow.pop %v3404
    %v3406 = vadd.f32 %v3403, 1.0
    %v3407 = vadd.f32 %v3405, 1.0
    %v3408 = vrcp.pop %v3406
    %v3409 = vmul.f32 1.0, %v3408
    %v3410 = vrcp.pop %v3407
    %v3411 = vmul.f32 1.0, %v3410
    %v3412 = vadd.f32 %v3393, %v3178
    %v3413 = vmul.f32 %v3409, %v3412
    %v3414 = vadd.f32 %v3187, %v3413
    %v3415 = vtanh.pop %v3414
    %v3416 = vsub.f32 1.0, %v3411
    %v3417 = vmul.f32 %v3416, %v3415
    %v3418 = vmul.f32 %v3411, %v3184
    %v3419 = vadd.f32 %v3417, %v3418
    %v3420 = vld [vmem:[#allocation2 + $0x30] sm:$0xff]
    %v3421 = vld [vmem:[#allocation2 + $0x38] sm:$0xff]
    %v3422 = vld [vmem:[#allocation2 + $0x40] sm:$0xff]
    %v3423 = vpack.c.bf16 %v3419, %v3419
    %3424 = vmatprep.subr.bf16.mxu0 %v3270
    %3425 = vmatpush1.bf16.msra.mxu0 %v3269
    %3426 = vmatprep.subr.bf16.mxu0 %v3273
    %3427 = vmatpush1.bf16.msra.mxu0 %v3272
    %3428 = vmatprep.subr.bf16.mxu0 %v3276
    %3429 = vmatpush1.bf16.msra.mxu0 %v3275
    %3430 = vmatprep.subr.bf16.mxu0 %v3279
    %3431 = vmatpush1.bf16.msra.mxu0 %v3278
    %3432 = vmatprep.subr.bf16.mxu0 %v3282
    %3433 = vmatpush1.bf16.msra.mxu0 %v3281
    %3434 = vmatprep.subr.bf16.mxu0 %v3285
    %3435 = vmatpush1.bf16.msra.mxu0 %v3284
    %3436 = vmatprep.subr.bf16.mxu0 %v3288
    %3437 = vmatpush1.bf16.msra.mxu0 %v3287
    %3438 = vmatprep.subr.bf16.mxu0 %v3291
    %3439 = vmatpush1.bf16.msra.mxu0 %v3290
    %3440 = vmatprep.subr.bf16.mxu0 0
    %3441 = vmatpush1.bf16.msra.mxu0 0
    %3442 = vmatprep.subr.bf16.mxu0 0
    %3443 = vmatpush1.bf16.msra.mxu0 0
    %3444 = vmatprep.subr.bf16.mxu0 0
    %3445 = vmatpush1.bf16.msra.mxu0 0
    %3446 = vmatprep.subr.bf16.mxu0 0
    %3447 = vmatpush1.bf16.msra.mxu0 0
    %3448 = vmatprep.subr.bf16.mxu0 0
    %3449 = vmatpush1.bf16.msra.mxu0 0
    %3450 = vmatprep.subr.bf16.mxu0 0
    %3451 = vmatpush1.bf16.msra.mxu0 0
    %3452 = vmatprep.subr.bf16.mxu0 0
    %3453 = vmatpush1.bf16.msra.mxu0 0
    %3454 = vmatprep.subr.bf16.mxu0 0
    %3455 = vmatpush1.bf16.msra.mxu0 0
    %3456 = vmatprep.mubr.bf16.mxu0 0
    %3457 = vmatmul.mubr.bf16.gmra.mrb[0].mxu0 %v3423
    %v3458 = vpop.f32.mrb[0].mxu0
    %v3459 = vadd.f32 0.0, %v3458
    %v3460 = vpop.f32.mrb[0].mxu0
    %v3461 = vadd.f32 0.0, %v3460
    %v3462 = vpop.f32.mrb[0].mxu0
    %v3463 = vpop.f32.mrb[0].mxu0
    %3464 = vdwg.mxu0
    %3465 = vmatprep.subr.bf16.mxu0 0
    %3466 = vmatpush1.bf16.msra.mxu0 %v3271
    %3467 = vmatprep.subr.bf16.mxu0 0
    %3468 = vmatpush1.bf16.msra.mxu0 %v3274
    %3469 = vmatprep.subr.bf16.mxu0 0
    %3470 = vmatpush1.bf16.msra.mxu0 %v3277
    %3471 = vmatprep.subr.bf16.mxu0 0
    %3472 = vmatpush1.bf16.msra.mxu0 %v3280
    %3473 = vmatprep.subr.bf16.mxu0 0
    %3474 = vmatpush1.bf16.msra.mxu0 %v3283
    %3475 = vmatprep.subr.bf16.mxu0 0
    %3476 = vmatpush1.bf16.msra.mxu0 %v3286
    %3477 = vmatprep.subr.bf16.mxu0 0
    %3478 = vmatpush1.bf16.msra.mxu0 %v3289
    %3479 = vmatprep.subr.bf16.mxu0 0
    %3480 = vmatpush1.bf16.msra.mxu0 %v3292
    %3481 = vmatprep.subr.bf16.mxu0 0
    %3482 = vmatpush1.bf16.msra.mxu0 0
    %3483 = vmatprep.subr.bf16.mxu0 0
    %3484 = vmatpush1.bf16.msra.mxu0 0
    %3485 = vmatprep.subr.bf16.mxu0 0
    %3486 = vmatpush1.bf16.msra.mxu0 0
    %3487 = vmatprep.subr.bf16.mxu0 0
    %3488 = vmatpush1.bf16.msra.mxu0 0
    %3489 = vmatprep.subr.bf16.mxu0 0
    %3490 = vmatpush1.bf16.msra.mxu0 0
    %3491 = vmatprep.subr.bf16.mxu0 0
    %3492 = vmatpush1.bf16.msra.mxu0 0
    %3493 = vmatprep.subr.bf16.mxu0 0
    %3494 = vmatpush1.bf16.msra.mxu0 0
    %3495 = vmatprep.subr.bf16.mxu0 0
    %3496 = vmatpush1.bf16.msra.mxu0 0
    %3497 = vmatprep.mubr.bf16.mxu0 0
    %3498 = vmatmul.mubr.bf16.gmra.mrb[0].mxu0 %v3423
    %v3499 = vpop.f32.mrb[0].mxu0
    %v3500 = vadd.f32 0.0, %v3499
    %v3501 = vpop.f32.mrb[0].mxu0
    %v3502 = vpop.f32.mrb[0].mxu0
    %v3503 = vpop.f32.mrb[0].mxu0
    %3504 = vdwg.mxu0
    %v3505 = vadd.f32 %v3420, %v3459
    %v3506 = vadd.f32 %v3421, %v3461
    %v3507 = vxor.u32 %v3505, 2147483648
    %v3508 = vxor.u32 %v3506, 2147483648
    %v3509 = vmul.f32 %v3507, 1.442695
    %v3510 = vpow.pop %v3509
    %v3511 = vmul.f32 %v3508, 1.442695
    %v3512 = vpow.pop %v3511
    %v3513 = vadd.f32 %v3510, 1.0
    %v3514 = vadd.f32 %v3512, 1.0
    %v3515 = vrcp.pop %v3513
    %v3516 = vmul.f32 1.0, %v3515
    %v3517 = vrcp.pop %v3514
    %v3518 = vmul.f32 1.0, %v3517
    %v3519 = vadd.f32 %v3500, %v3178
    %v3520 = vmul.f32 %v3516, %v3519
    %v3521 = vadd.f32 %v3422, %v3520
    %v3522 = vtanh.pop %v3521
    %v3523 = vsub.f32 1.0, %v3518
    %v3524 = vmul.f32 %v3523, %v3522
    %v3525 = vmul.f32 %v3518, %v3419
    %v3526 = vadd.f32 %v3524, %v3525
    %v3527 = vld [vmem:[#allocation2 + $0x48] sm:$0xff]
    %v3528 = vld [vmem:[#allocation2 + $0x50] sm:$0xff]
    %v3529 = vld [vmem:[#allocation2 + $0x58] sm:$0xff]
    %v3530 = vpack.c.bf16 %v3526, %v3526
    %3531 = vmatprep.subr.bf16.mxu0 %v3270
    %3532 = vmatpush1.bf16.msra.mxu0 %v3269
    %3533 = vmatprep.subr.bf16.mxu0 %v3273
    %3534 = vmatpush1.bf16.msra.mxu0 %v3272
    %3535 = vmatprep.subr.bf16.mxu0 %v3276
    %3536 = vmatpush1.bf16.msra.mxu0 %v3275
    %3537 = vmatprep.subr.bf16.mxu0 %v3279
    %3538 = vmatpush1.bf16.msra.mxu0 %v3278
    %3539 = vmatprep.subr.bf16.mxu0 %v3282
    %3540 = vmatpush1.bf16.msra.mxu0 %v3281
    %3541 = vmatprep.subr.bf16.mxu0 %v3285
    %3542 = vmatpush1.bf16.msra.mxu0 %v3284
    %3543 = vmatprep.subr.bf16.mxu0 %v3288
    %3544 = vmatpush1.bf16.msra.mxu0 %v3287
    %3545 = vmatprep.subr.bf16.mxu0 %v3291
    %3546 = vmatpush1.bf16.msra.mxu0 %v3290
    %3547 = vmatprep.subr.bf16.mxu0 0
    %3548 = vmatpush1.bf16.msra.mxu0 0
    %3549 = vmatprep.subr.bf16.mxu0 0
    %3550 = vmatpush1.bf16.msra.mxu0 0
    %3551 = vmatprep.subr.bf16.mxu0 0
    %3552 = vmatpush1.bf16.msra.mxu0 0
    %3553 = vmatprep.subr.bf16.mxu0 0
    %3554 = vmatpush1.bf16.msra.mxu0 0
    %3555 = vmatprep.subr.bf16.mxu0 0
    %3556 = vmatpush1.bf16.msra.mxu0 0
    %3557 = vmatprep.subr.bf16.mxu0 0
    %3558 = vmatpush1.bf16.msra.mxu0 0
    %3559 = vmatprep.subr.bf16.mxu0 0
    %3560 = vmatpush1.bf16.msra.mxu0 0
    %3561 = vmatprep.subr.bf16.mxu0 0
    %3562 = vmatpush1.bf16.msra.mxu0 0
    %3563 = vmatprep.mubr.bf16.mxu0 0
    %3564 = vmatmul.mubr.bf16.gmra.mrb[0].mxu0 %v3530
    %v3565 = vpop.f32.mrb[0].mxu0
    %v3566 = vadd.f32 0.0, %v3565
    %v3567 = vpop.f32.mrb[0].mxu0
    %v3568 = vadd.f32 0.0, %v3567
    %v3569 = vpop.f32.mrb[0].mxu0
    %v3570 = vpop.f32.mrb[0].mxu0
    %3571 = vdwg.mxu0
    %3572 = vmatprep.subr.bf16.mxu0 0
    %3573 = vmatpush1.bf16.msra.mxu0 %v3271
    %3574 = vmatprep.subr.bf16.mxu0 0
    %3575 = vmatpush1.bf16.msra.mxu0 %v3274
    %3576 = vmatprep.subr.bf16.mxu0 0
    %3577 = vmatpush1.bf16.msra.mxu0 %v3277
    %3578 = vmatprep.subr.bf16.mxu0 0
    %3579 = vmatpush1.bf16.msra.mxu0 %v3280
    %3580 = vmatprep.subr.bf16.mxu0 0
    %3581 = vmatpush1.bf16.msra.mxu0 %v3283
    %3582 = vmatprep.subr.bf16.mxu0 0
    %3583 = vmatpush1.bf16.msra.mxu0 %v3286
    %3584 = vmatprep.subr.bf16.mxu0 0
    %3585 = vmatpush1.bf16.msra.mxu0 %v3289
    %3586 = vmatprep.subr.bf16.mxu0 0
    %3587 = vmatpush1.bf16.msra.mxu0 %v3292
    %3588 = vmatprep.subr.bf16.mxu0 0
    %3589 = vmatpush1.bf16.msra.mxu0 0
    %3590 = vmatprep.subr.bf16.mxu0 0
    %3591 = vmatpush1.bf16.msra.mxu0 0
    %3592 = vmatprep.subr.bf16.mxu0 0
    %3593 = vmatpush1.bf16.msra.mxu0 0
    %3594 = vmatprep.subr.bf16.mxu0 0
    %3595 = vmatpush1.bf16.msra.mxu0 0
    %3596 = vmatprep.subr.bf16.mxu0 0
    %3597 = vmatpush1.bf16.msra.mxu0 0
    %3598 = vmatprep.subr.bf16.mxu0 0
    %3599 = vmatpush1.bf16.msra.mxu0 0
    %3600 = vmatprep.subr.bf16.mxu0 0
    %3601 = vmatpush1.bf16.msra.mxu0 0
    %3602 = vmatprep.subr.bf16.mxu0 0
    %3603 = vmatpush1.bf16.msra.mxu0 0
    %3604 = vmatprep.mubr.bf16.mxu0 0
    %3605 = vmatmul.mubr.bf16.gmra.mrb[0].mxu0 %v3530
    %v3606 = vpop.f32.mrb[0].mxu0
    %v3607 = vadd.f32 0.0, %v3606
    %v3608 = vpop.f32.mrb[0].mxu0
    %v3609 = vpop.f32.mrb[0].mxu0
    %v3610 = vpop.f32.mrb[0].mxu0
    %3611 = vdwg.mxu0
    %v3612 = vadd.f32 %v3527, %v3566
    %v3613 = vadd.f32 %v3528, %v3568
    %v3614 = vxor.u32 %v3612, 2147483648
    %v3615 = vxor.u32 %v3613, 2147483648
    %v3616 = vmul.f32 %v3614, 1.442695
    %v3617 = vpow.pop %v3616
    %v3618 = vmul.f32 %v3615, 1.442695
    %v3619 = vpow.pop %v3618
    %v3620 = vadd.f32 %v3617, 1.0
    %v3621 = vadd.f32 %v3619, 1.0
    %v3622 = vrcp.pop %v3620
    %v3623 = vmul.f32 1.0, %v3622
    %v3624 = vrcp.pop %v3621
    %v3625 = vmul.f32 1.0, %v3624
    %v3626 = vadd.f32 %v3607, %v3178
    %v3627 = vmul.f32 %v3623, %v3626
    %v3628 = vadd.f32 %v3529, %v3627
    %v3629 = vtanh.pop %v3628
    %v3630 = vsub.f32 1.0, %v3625
    %v3631 = vmul.f32 %v3630, %v3629
    %v3632 = vmul.f32 %v3625, %v3526
    %v3633 = vadd.f32 %v3631, %v3632
    %v3634 = vld [vmem:[#allocation2 + $0x60] sm:$0xff]
    %v3635 = vld [vmem:[#allocation2 + $0x68] sm:$0xff]
    %v3636 = vld [vmem:[#allocation2 + $0x70] sm:$0xff]
    %v3637 = vpack.c.bf16 %v3633, %v3633
    %3638 = vmatprep.subr.bf16.mxu0 %v3270
    %3639 = vmatpush1.bf16.msra.mxu0 %v3269
    %3640 = vmatprep.subr.bf16.mxu0 %v3273
    %3641 = vmatpush1.bf16.msra.mxu0 %v3272
    %3642 = vmatprep.subr.bf16.mxu0 %v3276
    %3643 = vmatpush1.bf16.msra.mxu0 %v3275
    %3644 = vmatprep.subr.bf16.mxu0 %v3279
    %3645 = vmatpush1.bf16.msra.mxu0 %v3278
    %3646 = vmatprep.subr.bf16.mxu0 %v3282
    %3647 = vmatpush1.bf16.msra.mxu0 %v3281
    %3648 = vmatprep.subr.bf16.mxu0 %v3285
    %3649 = vmatpush1.bf16.msra.mxu0 %v3284
    %3650 = vmatprep.subr.bf16.mxu0 %v3288
    %3651 = vmatpush1.bf16.msra.mxu0 %v3287
    %3652 = vmatprep.subr.bf16.mxu0 %v3291
    %3653 = vmatpush1.bf16.msra.mxu0 %v3290
    %3654 = vmatprep.subr.bf16.mxu0 0
    %3655 = vmatpush1.bf16.msra.mxu0 0
    %3656 = vmatprep.subr.bf16.mxu0 0
    %3657 = vmatpush1.bf16.msra.mxu0 0
    %3658 = vmatprep.subr.bf16.mxu0 0
    %3659 = vmatpush1.bf16.msra.mxu0 0
    %3660 = vmatprep.subr.bf16.mxu0 0
    %3661 = vmatpush1.bf16.msra.mxu0 0
    %3662 = vmatprep.subr.bf16.mxu0 0
    %3663 = vmatpush1.bf16.msra.mxu0 0
    %3664 = vmatprep.subr.bf16.mxu0 0
    %3665 = vmatpush1.bf16.msra.mxu0 0
    %3666 = vmatprep.subr.bf16.mxu0 0
    %3667 = vmatpush1.bf16.msra.mxu0 0
    %3668 = vmatprep.subr.bf16.mxu0 0
    %3669 = vmatpush1.bf16.msra.mxu0 0
    %3670 = vmatprep.mubr.bf16.mxu0 0
    %3671 = vmatmul.mubr.bf16.gmra.mrb[0].mxu0 %v3637
    %v3672 = vpop.f32.mrb[0].mxu0
    %v3673 = vadd.f32 0.0, %v3672
    %v3674 = vpop.f32.mrb[0].mxu0
    %v3675 = vadd.f32 0.0, %v3674
    %v3676 = vpop.f32.mrb[0].mxu0
    %v3677 = vpop.f32.mrb[0].mxu0
    %3678 = vdwg.mxu0
    %3679 = vmatprep.subr.bf16.mxu0 0
    %3680 = vmatpush1.bf16.msra.mxu0 %v3271
    %3681 = vmatprep.subr.bf16.mxu0 0
    %3682 = vmatpush1.bf16.msra.mxu0 %v3274
    %3683 = vmatprep.subr.bf16.mxu0 0
    %3684 = vmatpush1.bf16.msra.mxu0 %v3277
    %3685 = vmatprep.subr.bf16.mxu0 0
    %3686 = vmatpush1.bf16.msra.mxu0 %v3280
    %3687 = vmatprep.subr.bf16.mxu0 0
    %3688 = vmatpush1.bf16.msra.mxu0 %v3283
    %3689 = vmatprep.subr.bf16.mxu0 0
    %3690 = vmatpush1.bf16.msra.mxu0 %v3286
    %3691 = vmatprep.subr.bf16.mxu0 0
    %3692 = vmatpush1.bf16.msra.mxu0 %v3289
    %3693 = vmatprep.subr.bf16.mxu0 0
    %3694 = vmatpush1.bf16.msra.mxu0 %v3292
    %3695 = vmatprep.subr.bf16.mxu0 0
    %3696 = vmatpush1.bf16.msra.mxu0 0
    %3697 = vmatprep.subr.bf16.mxu0 0
    %3698 = vmatpush1.bf16.msra.mxu0 0
    %3699 = vmatprep.subr.bf16.mxu0 0
    %3700 = vmatpush1.bf16.msra.mxu0 0
    %3701 = vmatprep.subr.bf16.mxu0 0
    %3702 = vmatpush1.bf16.msra.mxu0 0
    %3703 = vmatprep.subr.bf16.mxu0 0
    %3704 = vmatpush1.bf16.msra.mxu0 0
    %3705 = vmatprep.subr.bf16.mxu0 0
    %3706 = vmatpush1.bf16.msra.mxu0 0
    %3707 = vmatprep.subr.bf16.mxu0 0
    %3708 = vmatpush1.bf16.msra.mxu0 0
    %3709 = vmatprep.subr.bf16.mxu0 0
    %3710 = vmatpush1.bf16.msra.mxu0 0
    %3711 = vmatprep.mubr.bf16.mxu0 0
    %3712 = vmatmul.mubr.bf16.gmra.mrb[0].mxu0 %v3637
    %v3713 = vpop.f32.mrb[0].mxu0
    %v3714 = vadd.f32 0.0, %v3713
    %v3715 = vpop.f32.mrb[0].mxu0
    %v3716 = vpop.f32.mrb[0].mxu0
    %v3717 = vpop.f32.mrb[0].mxu0
    %3718 = vdwg.mxu0
    %v3719 = vadd.f32 %v3634, %v3673
    %v3720 = vadd.f32 %v3635, %v3675
    %v3721 = vxor.u32 %v3719, 2147483648
    %v3722 = vxor.u32 %v3720, 2147483648
    %v3723 = vmul.f32 %v3721, 1.442695
    %v3724 = vpow.pop %v3723
    %v3725 = vmul.f32 %v3722, 1.442695
    %v3726 = vpow.pop %v3725
    %v3727 = vadd.f32 %v3724, 1.0
    %v3728 = vadd.f32 %v3726, 1.0
    %v3729 = vrcp.pop %v3727
    %v3730 = vmul.f32 1.0, %v3729
    %v3731 = vrcp.pop %v3728
    %v3732 = vmul.f32 1.0, %v3731
    %v3733 = vadd.f32 %v3714, %v3178
    %v3734 = vmul.f32 %v3730, %v3733
    %v3735 = vadd.f32 %v3636, %v3734
    %v3736 = vtanh.pop %v3735
    %v3737 = vsub.f32 1.0, %v3732
    %v3738 = vmul.f32 %v3737, %v3736
    %v3739 = vmul.f32 %v3732, %v3633
    %v3740 = vadd.f32 %v3738, %v3739
    %v3741 = vld [vmem:[#allocation2 + $0x78] sm:$0xff]
    %v3742 = vld [vmem:[#allocation2 + $0x80] sm:$0xff]
    %v3743 = vld [vmem:[#allocation2 + $0x88] sm:$0xff]
    %v3744 = vpack.c.bf16 %v3740, %v3740
    %3745 = vmatprep.subr.bf16.mxu0 %v3270
    %3746 = vmatpush1.bf16.msra.mxu0 %v3269
    %3747 = vmatprep.subr.bf16.mxu0 %v3273
    %3748 = vmatpush1.bf16.msra.mxu0 %v3272
    %3749 = vmatprep.subr.bf16.mxu0 %v3276
    %3750 = vmatpush1.bf16.msra.mxu0 %v3275
    %3751 = vmatprep.subr.bf16.mxu0 %v3279
    %3752 = vmatpush1.bf16.msra.mxu0 %v3278
    %3753 = vmatprep.subr.bf16.mxu0 %v3282
    %3754 = vmatpush1.bf16.msra.mxu0 %v3281
    %3755 = vmatprep.subr.bf16.mxu0 %v3285
    %3756 = vmatpush1.bf16.msra.mxu0 %v3284
    %3757 = vmatprep.subr.bf16.mxu0 %v3288
    %3758 = vmatpush1.bf16.msra.mxu0 %v3287
    %3759 = vmatprep.subr.bf16.mxu0 %v3291
    %3760 = vmatpush1.bf16.msra.mxu0 %v3290
    %3761 = vmatprep.subr.bf16.mxu0 0
    %3762 = vmatpush1.bf16.msra.mxu0 0
    %3763 = vmatprep.subr.bf16.mxu0 0
    %3764 = vmatpush1.bf16.msra.mxu0 0
    %3765 = vmatprep.subr.bf16.mxu0 0
    %3766 = vmatpush1.bf16.msra.mxu0 0
    %3767 = vmatprep.subr.bf16.mxu0 0
    %3768 = vmatpush1.bf16.msra.mxu0 0
    %3769 = vmatprep.subr.bf16.mxu0 0
    %3770 = vmatpush1.bf16.msra.mxu0 0
    %3771 = vmatprep.subr.bf16.mxu0 0
    %3772 = vmatpush1.bf16.msra.mxu0 0
    %3773 = vmatprep.subr.bf16.mxu0 0
    %3774 = vmatpush1.bf16.msra.mxu0 0
    %3775 = vmatprep.subr.bf16.mxu0 0
    %3776 = vmatpush1.bf16.msra.mxu0 0
    %3777 = vmatprep.mubr.bf16.mxu0 0
    %3778 = vmatmul.mubr.bf16.gmra.mrb[0].mxu0 %v3744
    %v3779 = vpop.f32.mrb[0].mxu0
    %v3780 = vadd.f32 0.0, %v3779
    %v3781 = vpop.f32.mrb[0].mxu0
    %v3782 = vadd.f32 0.0, %v3781
    %v3783 = vpop.f32.mrb[0].mxu0
    %v3784 = vpop.f32.mrb[0].mxu0
    %3785 = vdwg.mxu0
    %3786 = vmatprep.subr.bf16.mxu0 0
    %3787 = vmatpush1.bf16.msra.mxu0 %v3271
    %3788 = vmatprep.subr.bf16.mxu0 0
    %3789 = vmatpush1.bf16.msra.mxu0 %v3274
    %3790 = vmatprep.subr.bf16.mxu0 0
    %3791 = vmatpush1.bf16.msra.mxu0 %v3277
    %3792 = vmatprep.subr.bf16.mxu0 0
    %3793 = vmatpush1.bf16.msra.mxu0 %v3280
    %3794 = vmatprep.subr.bf16.mxu0 0
    %3795 = vmatpush1.bf16.msra.mxu0 %v3283
    %3796 = vmatprep.subr.bf16.mxu0 0
    %3797 = vmatpush1.bf16.msra.mxu0 %v3286
    %3798 = vmatprep.subr.bf16.mxu0 0
    %3799 = vmatpush1.bf16.msra.mxu0 %v3289
    %3800 = vmatprep.subr.bf16.mxu0 0
    %3801 = vmatpush1.bf16.msra.mxu0 %v3292
    %3802 = vmatprep.subr.bf16.mxu0 0
    %3803 = vmatpush1.bf16.msra.mxu0 0
    %3804 = vmatprep.subr.bf16.mxu0 0
    %3805 = vmatpush1.bf16.msra.mxu0 0
    %3806 = vmatprep.subr.bf16.mxu0 0
    %3807 = vmatpush1.bf16.msra.mxu0 0
    %3808 = vmatprep.subr.bf16.mxu0 0
    %3809 = vmatpush1.bf16.msra.mxu0 0
    %3810 = vmatprep.subr.bf16.mxu0 0
    %3811 = vmatpush1.bf16.msra.mxu0 0
    %3812 = vmatprep.subr.bf16.mxu0 0
    %3813 = vmatpush1.bf16.msra.mxu0 0
    %3814 = vmatprep.subr.bf16.mxu0 0
    %3815 = vmatpush1.bf16.msra.mxu0 0
    %3816 = vmatprep.subr.bf16.mxu0 0
    %3817 = vmatpush1.bf16.msra.mxu0 0
    %3818 = vmatprep.mubr.bf16.mxu0 0
    %3819 = vmatmul.mubr.bf16.gmra.mrb[0].mxu0 %v3744
    %v3820 = vpop.f32.mrb[0].mxu0
    %v3821 = vadd.f32 0.0, %v3820
    %v3822 = vpop.f32.mrb[0].mxu0
    %v3823 = vpop.f32.mrb[0].mxu0
    %v3824 = vpop.f32.mrb[0].mxu0
    %3825 = vdwg.mxu0
    %v3826 = vadd.f32 %v3741, %v3780
    %v3827 = vadd.f32 %v3742, %v3782
    %v3828 = vxor.u32 %v3826, 2147483648
    %v3829 = vxor.u32 %v3827, 2147483648
    %v3830 = vmul.f32 %v3828, 1.442695
    %v3831 = vpow.pop %v3830
    %v3832 = vmul.f32 %v3829, 1.442695
    %v3833 = vpow.pop %v3832
    %v3834 = vadd.f32 %v3831, 1.0
    %v3835 = vadd.f32 %v3833, 1.0
    %v3836 = vrcp.pop %v3834
    %v3837 = vmul.f32 1.0, %v3836
    %v3838 = vrcp.pop %v3835
    %v3839 = vmul.f32 1.0, %v3838
    %v3840 = vadd.f32 %v3821, %v3178
    %v3841 = vmul.f32 %v3837, %v3840
    %v3842 = vadd.f32 %v3743, %v3841
    %v3843 = vtanh.pop %v3842
    %v3844 = vsub.f32 1.0, %v3839
    %v3845 = vmul.f32 %v3844, %v3843
    %v3846 = vmul.f32 %v3839, %v3740
    %v3847 = vadd.f32 %v3845, %v3846
    %v3848 = vld [vmem:[#allocation2 + $0x90] sm:$0xff]
    %v3849 = vld [vmem:[#allocation2 + $0x98] sm:$0xff]
    %v3850 = vld [vmem:[#allocation2 + $0xa0] sm:$0xff]
    %v3851 = vpack.c.bf16 %v3847, %v3847
    %3852 = vmatprep.subr.bf16.mxu0 %v3270
    %3853 = vmatpush1.bf16.msra.mxu0 %v3269
    %3854 = vmatprep.subr.bf16.mxu0 %v3273
    %3855 = vmatpush1.bf16.msra.mxu0 %v3272
    %3856 = vmatprep.subr.bf16.mxu0 %v3276
    %3857 = vmatpush1.bf16.msra.mxu0 %v3275
    %3858 = vmatprep.subr.bf16.mxu0 %v3279
    %3859 = vmatpush1.bf16.msra.mxu0 %v3278
    %3860 = vmatprep.subr.bf16.mxu0 %v3282
    %3861 = vmatpush1.bf16.msra.mxu0 %v3281
    %3862 = vmatprep.subr.bf16.mxu0 %v3285
    %3863 = vmatpush1.bf16.msra.mxu0 %v3284
    %3864 = vmatprep.subr.bf16.mxu0 %v3288
    %3865 = vmatpush1.bf16.msra.mxu0 %v3287
    %3866 = vmatprep.subr.bf16.mxu0 %v3291
    %3867 = vmatpush1.bf16.msra.mxu0 %v3290
    %3868 = vmatprep.subr.bf16.mxu0 0
    %3869 = vmatpush1.bf16.msra.mxu0 0
    %3870 = vmatprep.subr.bf16.mxu0 0
    %3871 = vmatpush1.bf16.msra.mxu0 0
    %3872 = vmatprep.subr.bf16.mxu0 0
    %3873 = vmatpush1.bf16.msra.mxu0 0
    %3874 = vmatprep.subr.bf16.mxu0 0
    %3875 = vmatpush1.bf16.msra.mxu0 0
    %3876 = vmatprep.subr.bf16.mxu0 0
    %3877 = vmatpush1.bf16.msra.mxu0 0
    %3878 = vmatprep.subr.bf16.mxu0 0
    %3879 = vmatpush1.bf16.msra.mxu0 0
    %3880 = vmatprep.subr.bf16.mxu0 0
    %3881 = vmatpush1.bf16.msra.mxu0 0
    %3882 = vmatprep.subr.bf16.mxu0 0
    %3883 = vmatpush1.bf16.msra.mxu0 0
    %3884 = vmatprep.mubr.bf16.mxu0 0
    %3885 = vmatmul.mubr.bf16.gmra.mrb[0].mxu0 %v3851
    %v3886 = vpop.f32.mrb[0].mxu0
    %v3887 = vadd.f32 0.0, %v3886
    %v3888 = vpop.f32.mrb[0].mxu0
    %v3889 = vadd.f32 0.0, %v3888
    %v3890 = vpop.f32.mrb[0].mxu0
    %v3891 = vpop.f32.mrb[0].mxu0
    %3892 = vdwg.mxu0
    %3893 = vmatprep.subr.bf16.mxu0 0
    %3894 = vmatpush1.bf16.msra.mxu0 %v3271
    %3895 = vmatprep.subr.bf16.mxu0 0
    %3896 = vmatpush1.bf16.msra.mxu0 %v3274
    %3897 = vmatprep.subr.bf16.mxu0 0
    %3898 = vmatpush1.bf16.msra.mxu0 %v3277
    %3899 = vmatprep.subr.bf16.mxu0 0
    %3900 = vmatpush1.bf16.msra.mxu0 %v3280
    %3901 = vmatprep.subr.bf16.mxu0 0
    %3902 = vmatpush1.bf16.msra.mxu0 %v3283
    %3903 = vmatprep.subr.bf16.mxu0 0
    %3904 = vmatpush1.bf16.msra.mxu0 %v3286
    %3905 = vmatprep.subr.bf16.mxu0 0
    %3906 = vmatpush1.bf16.msra.mxu0 %v3289
    %3907 = vmatprep.subr.bf16.mxu0 0
    %3908 = vmatpush1.bf16.msra.mxu0 %v3292
    %3909 = vmatprep.subr.bf16.mxu0 0
    %3910 = vmatpush1.bf16.msra.mxu0 0
    %3911 = vmatprep.subr.bf16.mxu0 0
    %3912 = vmatpush1.bf16.msra.mxu0 0
    %3913 = vmatprep.subr.bf16.mxu0 0
    %3914 = vmatpush1.bf16.msra.mxu0 0
    %3915 = vmatprep.subr.bf16.mxu0 0
    %3916 = vmatpush1.bf16.msra.mxu0 0
    %3917 = vmatprep.subr.bf16.mxu0 0
    %3918 = vmatpush1.bf16.msra.mxu0 0
    %3919 = vmatprep.subr.bf16.mxu0 0
    %3920 = vmatpush1.bf16.msra.mxu0 0
    %3921 = vmatprep.subr.bf16.mxu0 0
    %3922 = vmatpush1.bf16.msra.mxu0 0
    %3923 = vmatprep.subr.bf16.mxu0 0
    %3924 = vmatpush1.bf16.msra.mxu0 0
    %3925 = vmatprep.mubr.bf16.mxu0 0
    %3926 = vmatmul.mubr.bf16.gmra.mrb[0].mxu0 %v3851
    %v3927 = vpop.f32.mrb[0].mxu0
    %v3928 = vadd.f32 0.0, %v3927
    %v3929 = vpop.f32.mrb[0].mxu0
    %v3930 = vpop.f32.mrb[0].mxu0
    %v3931 = vpop.f32.mrb[0].mxu0
    %3932 = vdwg.mxu0
    %v3933 = vadd.f32 %v3848, %v3887
    %v3934 = vadd.f32 %v3849, %v3889
    %v3935 = vxor.u32 %v3933, 2147483648
    %v3936 = vxor.u32 %v3934, 2147483648
    %v3937 = vmul.f32 %v3935, 1.442695
    %v3938 = vpow.pop %v3937
    %v3939 = vmul.f32 %v3936, 1.442695
    %v3940 = vpow.pop %v3939
    %v3941 = vadd.f32 %v3938, 1.0
    %v3942 = vadd.f32 %v3940, 1.0
    %v3943 = vrcp.pop %v3941
    %v3944 = vmul.f32 1.0, %v3943
    %v3945 = vrcp.pop %v3942
    %v3946 = vmul.f32 1.0, %v3945
    %v3947 = vadd.f32 %v3928, %v3178
    %v3948 = vmul.f32 %v3944, %v3947
    %v3949 = vadd.f32 %v3850, %v3948
    %v3950 = vtanh.pop %v3949
    %v3951 = vsub.f32 1.0, %v3946
    %v3952 = vmul.f32 %v3951, %v3950
    %v3953 = vmul.f32 %v3946, %v3847
    %v3954 = vadd.f32 %v3952, %v3953
    %v3955 = vld [vmem:[#allocation2 + $0xa8] sm:$0xff]
    %v3956 = vld [vmem:[#allocation2 + $0xb0] sm:$0xff]
    %v3957 = vld [vmem:[#allocation2 + $0xb8] sm:$0xff]
    %v3958 = vpack.c.bf16 %v3954, %v3954
    %3959 = vmatprep.subr.bf16.mxu0 %v3270
    %3960 = vmatpush1.bf16.msra.mxu0 %v3269
    %3961 = vmatprep.subr.bf16.mxu0 %v3273
    %3962 = vmatpush1.bf16.msra.mxu0 %v3272
    %3963 = vmatprep.subr.bf16.mxu0 %v3276
    %3964 = vmatpush1.bf16.msra.mxu0 %v3275
    %3965 = vmatprep.subr.bf16.mxu0 %v3279
    %3966 = vmatpush1.bf16.msra.mxu0 %v3278
    %3967 = vmatprep.subr.bf16.mxu0 %v3282
    %3968 = vmatpush1.bf16.msra.mxu0 %v3281
    %3969 = vmatprep.subr.bf16.mxu0 %v3285
    %3970 = vmatpush1.bf16.msra.mxu0 %v3284
    %3971 = vmatprep.subr.bf16.mxu0 %v3288
    %3972 = vmatpush1.bf16.msra.mxu0 %v3287
    %3973 = vmatprep.subr.bf16.mxu0 %v3291
    %3974 = vmatpush1.bf16.msra.mxu0 %v3290
    %3975 = vmatprep.subr.bf16.mxu0 0
    %3976 = vmatpush1.bf16.msra.mxu0 0
    %3977 = vmatprep.subr.bf16.mxu0 0
    %3978 = vmatpush1.bf16.msra.mxu0 0
    %3979 = vmatprep.subr.bf16.mxu0 0
    %3980 = vmatpush1.bf16.msra.mxu0 0
    %3981 = vmatprep.subr.bf16.mxu0 0
    %3982 = vmatpush1.bf16.msra.mxu0 0
    %3983 = vmatprep.subr.bf16.mxu0 0
    %3984 = vmatpush1.bf16.msra.mxu0 0
    %3985 = vmatprep.subr.bf16.mxu0 0
    %3986 = vmatpush1.bf16.msra.mxu0 0
    %3987 = vmatprep.subr.bf16.mxu0 0
    %3988 = vmatpush1.bf16.msra.mxu0 0
    %3989 = vmatprep.subr.bf16.mxu0 0
    %3990 = vmatpush1.bf16.msra.mxu0 0
    %3991 = vmatprep.mubr.bf16.mxu0 0
    %3992 = vmatmul.mubr.bf16.gmra.mrb[0].mxu0 %v3958
    %v3993 = vpop.f32.mrb[0].mxu0
    %v3994 = vadd.f32 0.0, %v3993
    %v3995 = vpop.f32.mrb[0].mxu0
    %v3996 = vadd.f32 0.0, %v3995
    %v3997 = vpop.f32.mrb[0].mxu0
    %v3998 = vpop.f32.mrb[0].mxu0
    %3999 = vdwg.mxu0
    %4000 = vmatprep.subr.bf16.mxu0 0
    %4001 = vmatpush1.bf16.msra.mxu0 %v3271
    %4002 = vmatprep.subr.bf16.mxu0 0
    %4003 = vmatpush1.bf16.msra.mxu0 %v3274
    %4004 = vmatprep.subr.bf16.mxu0 0
    %4005 = vmatpush1.bf16.msra.mxu0 %v3277
    %4006 = vmatprep.subr.bf16.mxu0 0
    %4007 = vmatpush1.bf16.msra.mxu0 %v3280
    %4008 = vmatprep.subr.bf16.mxu0 0
    %4009 = vmatpush1.bf16.msra.mxu0 %v3283
    %4010 = vmatprep.subr.bf16.mxu0 0
    %4011 = vmatpush1.bf16.msra.mxu0 %v3286
    %4012 = vmatprep.subr.bf16.mxu0 0
    %4013 = vmatpush1.bf16.msra.mxu0 %v3289
    %4014 = vmatprep.subr.bf16.mxu0 0
    %4015 = vmatpush1.bf16.msra.mxu0 %v3292
    %4016 = vmatprep.subr.bf16.mxu0 0
    %4017 = vmatpush1.bf16.msra.mxu0 0
    %4018 = vmatprep.subr.bf16.mxu0 0
    %4019 = vmatpush1.bf16.msra.mxu0 0
    %4020 = vmatprep.subr.bf16.mxu0 0
    %4021 = vmatpush1.bf16.msra.mxu0 0
    %4022 = vmatprep.subr.bf16.mxu0 0
    %4023 = vmatpush1.bf16.msra.mxu0 0
    %4024 = vmatprep.subr.bf16.mxu0 0
    %4025 = vmatpush1.bf16.msra.mxu0 0
    %4026 = vmatprep.subr.bf16.mxu0 0
    %4027 = vmatpush1.bf16.msra.mxu0 0
    %4028 = vmatprep.subr.bf16.mxu0 0
    %4029 = vmatpush1.bf16.msra.mxu0 0
    %4030 = vmatprep.subr.bf16.mxu0 0
    %4031 = vmatpush1.bf16.msra.mxu0 0
    %4032 = vmatprep.mubr.bf16.mxu0 0
    %4033 = vmatmul.mubr.bf16.gmra.mrb[0].mxu0 %v3958
    %v4034 = vpop.f32.mrb[0].mxu0
    %v4035 = vadd.f32 0.0, %v4034
    %v4036 = vpop.f32.mrb[0].mxu0
    %v4037 = vpop.f32.mrb[0].mxu0
    %v4038 = vpop.f32.mrb[0].mxu0
    %4039 = vdwg.mxu0
    %v4040 = vadd.f32 %v3955, %v3994
    %v4041 = vadd.f32 %v3956, %v3996
    %v4042 = vxor.u32 %v4040, 2147483648
    %v4043 = vxor.u32 %v4041, 2147483648
    %v4044 = vmul.f32 %v4042, 1.442695
    %v4045 = vpow.pop %v4044
    %v4046 = vmul.f32 %v4043, 1.442695
    %v4047 = vpow.pop %v4046
    %v4048 = vadd.f32 %v4045, 1.0
    %v4049 = vadd.f32 %v4047, 1.0
    %v4050 = vrcp.pop %v4048
    %v4051 = vmul.f32 1.0, %v4050
    %v4052 = vrcp.pop %v4049
    %v4053 = vmul.f32 1.0, %v4052
    %v4054 = vadd.f32 %v4035, %v3178
    %v4055 = vmul.f32 %v4051, %v4054
    %v4056 = vadd.f32 %v3957, %v4055
    %v4057 = vtanh.pop %v4056
    %v4058 = vsub.f32 1.0, %v4053
    %v4059 = vmul.f32 %v4058, %v4057
    %v4060 = vmul.f32 %v4053, %v3954
    %v4061 = vadd.f32 %v4059, %v4060
    %4062 = vst [vmem:[#allocation22] sm:$0xff] %v4061
    // Predicated region
    $region106: #{gru_block_forward.1} parent=1 // pred_check
      _
    $region107: #{gru_block_forward.1} parent=1 // pred_check_branch
      %4064 = sbr.rel (0) target = $region109
    $region108: #{gru_block_forward.1} parent=1 // pred_region
      %s4066 = ssub.s32 128, 128
      %4067 = vsyncadd [#allocation6], %s4066
      %s4069 = sshll.u32 [#allocation22], 4
      %s4070 = int_to_ptr.vmem [resolvable:$true] %s4069
      %4072 = dma.vmem_to_hbm [thread:$0]  %s4070, 128, %s15, [#allocation6]
    $region109: #{gru_block_forward.1} parent=1 // pred_fallthru
      _
    // Predicated region
    $region110: #{gru_block_forward.1} parent=1 // pred_check
      _
    $region111: #{gru_block_forward.1} parent=1 // pred_check_branch
      %4074 = sbr.rel (0) target = $region113
    $region112: #{gru_block_forward.1} parent=1 // pred_region
      %4075 = dma.done [#allocation6], 128
    $region113: #{gru_block_forward.1} parent=1 // pred_fallthru
      _
    %4076 = vsyncpa [#allocation5], 1
    %4077 = vsyncpa [#allocation8], 1
    %4078 = vsyncpa [#allocation11], 1
    %4079 = vsyncpa [#allocation14], 1
    %4080 = vsyncpa [#allocation17], 1
    %4081 = vsyncpa [#allocation20], 1
    %4082 = vsyncpa [#allocation6], 1

</llo_original>
